<compile_context>
chip_gen: v6e
topology: v6e:2x2x1
jax: 0.10.0
libtpu: 0.0.40
codegen_flags: <defaults>
</compile_context>

<pallas_src>
import functools

import jax
import jax.numpy as jnp
from jax.experimental import pallas as pl
from jax.experimental.pallas import tpu as pltpu

_GAP = 8  # zero gap rows per image slab (>= 6 needed for the 7x7 halo; 8 keeps S % 8 == 0)


# ---------------------------------------------------------------------------
# Fused Pallas kernel: one grid step = B_tile images in slab-row layout.
# ---------------------------------------------------------------------------

def _mdfc4_kernel(x_ref, mask_ref, mf_ref, shf_ref, m1b_ref, sh1b_ref,
                  ct1w_ref, ct1b_ref, ct2fw_ref, ct2catw_ref, ct2b_ref,
                  b4w_ref, b4b_ref, ct3w_ref, ct3b_ref,
                  o_ref, bufx_ref, buft_ref):
    f32 = jnp.float32
    M, Ci = x_ref.shape            # M = B_tile * S rows, Ci = W*Cin lanes
    Co = o_ref.shape[1]            # W*Cout lanes
    mx = mf_ref.dtype              # MXU dtype (f32 default, bf16 optional)

    x = x_ref[...]                 # slab-space rows; gap rows are zero
    mask = mask_ref[...]           # (M, 1): 1.0 on real rows, 0.0 on gap rows

    # Padded x slab buffer: 4 zero halo rows, M content rows, 4 zero halo rows.
    bufx_ref[0:4, :] = jnp.zeros((4, Ci), mx)
    bufx_ref[4:4 + M, :] = x.astype(mx)
    bufx_ref[4 + M:8 + M, :] = jnp.zeros((4, Ci), mx)

    # Fused first-layer convs (3x3 | 5x5 | 7x7): 7 row-tap matmuls, M rows each.
    # BN scale is pre-folded into mf; only the shift + relu remain.
    acc = jnp.zeros((M, 3 * Co), f32)
    for j in range(7):
        acc = acc + jnp.dot(bufx_ref[j + 1:j + 1 + M, :], mf_ref[j],
                            preferred_element_type=f32)
    out1 = jnp.maximum(acc + shf_ref[...], 0.0)
    t = out1[:, 0:Co]              # branch-1 first conv (3x3)
    s = out1[:, Co:2 * Co]         # branch-2 conv       (5x5)
    u = out1[:, 2 * Co:3 * Co]     # branch-3 conv       (7x7)

    # Branch-1 second 3x3 conv: gap rows of t must be zero (they are t's padding).
    buft_ref[0:4, :] = jnp.zeros((4, Co), mx)
    buft_ref[4:4 + M, :] = (t * mask).astype(mx)
    buft_ref[4 + M:8 + M, :] = jnp.zeros((4, Co), mx)
    acc2 = jnp.zeros((M, Co), f32)
    for j in range(3):
        acc2 = acc2 + jnp.dot(buft_ref[j + 3:j + 3 + M, :], m1b_ref[j],
                              preferred_element_type=f32)
    t2 = jnp.maximum(acc2 + sh1b_ref[...], 0.0)

    # ct1 applied once to [t2 ; u] stacked along rows (serves branches 1 and 3).
    tu = jnp.concatenate([t2, u], axis=0).astype(mx)               # (2M, Co)
    tu_o = jnp.dot(tu, ct1w_ref[...], preferred_element_type=f32) + ct1b_ref[...]
    b1 = jnp.maximum(x + tu_o[:M], 0.0)
    b3 = jnp.maximum(x + tu_o[M:], 0.0)

    # Branch 2: ct2 on cat(s, s) with the weight pre-folded.
    b2 = jnp.maximum(x + jnp.dot(s.astype(mx), ct2fw_ref[...],
                                 preferred_element_type=f32) + ct2b_ref[...], 0.0)

    # Branch 4: 1x1 conv with bias (no relu).
    b4 = jnp.dot(x.astype(mx), b4w_ref[...], preferred_element_type=f32) + b4b_ref[...]

    # Final ct2 on cat(b1,b2,b3,b4): single matmul on the lane-concatenated slab.
    bcat = jnp.concatenate([b1, b2, b3, b4], axis=-1).astype(mx)   # (M, 4*Ci)
    y = jnp.dot(bcat, ct2catw_ref[...], preferred_element_type=f32) + ct2b_ref[...]
    bc = jnp.maximum(x + y, 0.0)

    o_ref[...] = (jnp.dot(bc.astype(mx), ct3w_ref[...], preferred_element_type=f32)
                  + ct3b_ref[...]).astype(o_ref.dtype)


# ---------------------------------------------------------------------------
# pallas_call wrapper
# ---------------------------------------------------------------------------

def _zero_index(nd, n):
    return (0,) * nd


def _const_spec(a):
    return pl.BlockSpec(a.shape, functools.partial(_zero_index, a.ndim))


def mdfc4_forward(q, x, b_tile=None):
    """x: (N, H, W, Cin) NHWC -> (N, H, W, Cout)."""
    N, H, W, Cin = x.shape
    Cout = q["ct3b"].shape[1] // W
    S = H + _GAP                                  # per-image slab height (multiple of 8)
    if b_tile is None:
        b_tile = N // 2 if (N % 2 == 0 and N >= 2) else N   # 2 parallel steps for v7x
    assert N % b_tile == 0
    Mslab = b_tile * S
    mx_dtype = q["mf"].dtype

    # Slab-space rows: image n occupies rows [n*S, n*S + H); gap rows are zeros.
    x_rows = jnp.pad(x.reshape(N, H, W * Cin), ((0, 0), (0, S - H), (0, 0)))
    x_rows = x_rows.reshape(N * S, W * Cin)
    # 1.0 on real rows, 0.0 on gap rows (re-zeroes t before the second 3x3 conv).
    mask = jnp.tile(
        jnp.concatenate([jnp.ones((H, 1), jnp.float32),
                         jnp.zeros((S - H, 1), jnp.float32)], axis=0),
        (b_tile, 1))

    weights = (q["mf"], q["shf"], q["m1b"], q["sh1b"], q["ct1w"], q["ct1b"],
               q["ct2fw"], q["ct2catw"], q["ct2b"], q["b4w"], q["b4b"],
               q["ct3w"], q["ct3b"])

    out_rows = pl.pallas_call(
        _mdfc4_kernel,
        out_shape=jax.ShapeDtypeStruct((N * S, W * Cout), jnp.float32),
        grid=(N // b_tile,),
        in_specs=[pl.BlockSpec((Mslab, W * Cin), lambda n: (n, 0)),
                  _const_spec(mask)]
                 + [_const_spec(a) for a in weights],
        out_specs=pl.BlockSpec((Mslab, W * Cout), lambda n: (n, 0)),
        scratch_shapes=[
            pltpu.VMEM((Mslab + 8, W * Cin), mx_dtype),   # haloed x slab buffer
            pltpu.VMEM((Mslab + 8, W * Cout), mx_dtype),  # haloed t slab buffer
        ],
        compiler_params=pltpu.CompilerParams(dimension_semantics=("parallel",)),
    )(x_rows, mask, *weights)

    return out_rows.reshape(N, S, W, Cout)[:, :H]


# ---------------------------------------------------------------------------
# One-time weight preparation: Toeplitz / block-diag / BN folding / conv fusion.
# ---------------------------------------------------------------------------

def prepare_params(p, W, in_ch, out_ch, mxu_dtype=jnp.float32):
    """mxu_dtype=jnp.bfloat16 is recommended on v6e/v7x (re-check tolerance)."""
    f32 = jnp.float32

    def toeplitz(w):
        # w: (K, K, Ci, Co) HWIO -> (K, W*Ci, W*Co) per-row-tap matrices.
        # Horizontal zero padding is absorbed (out-of-range columns simply vanish).
        K, _, Ci, Co = w.shape
        h = (K - 1) // 2
        wi = jnp.arange(W)[:, None, None]
        wo = jnp.arange(W)[None, :, None]
        kw = jnp.arange(K)[None, None, :]
        ind = (wi == wo + kw - h).astype(f32)                 # (W, W, K)
        m = jnp.einsum("rkio,xwk->rxiwo", w.astype(f32), ind)  # (K, W, Ci, W, Co)
        return m.reshape(K, W * Ci, W * Co)

    def rowify(v):        # per-channel (1, C) -> row layout (1, W*C)
        return jnp.tile(v.reshape(1, -1).astype(f32), (1, W))

    def blockdiag(wc):    # (Ci, Co) -> (W*Ci, W*Co)
        return jnp.kron(jnp.eye(W, dtype=f32), wc.astype(f32))

    WCo = W * out_ch
    (s1a, h1a), (s1b, h1b), (s2, h2), (s3, h3) = \
        p["bn1a"], p["bn1b"], p["bn2"], p["bn3"]

    # BN scale folded into the conv weight columns.
    t3 = toeplitz(p["w1a"]) * rowify(s1a)
    t5 = toeplitz(p["w2"]) * rowify(s2)
    t7 = toeplitz(p["w3"]) * rowify(s3)
    # Fused first-layer weight: lane blocks [3x3 | 5x5 | 7x7], 7 absolute row taps.
    mf = jnp.zeros((7, W * in_ch, 3 * WCo), f32)
    mf = mf.at[2:5, :, 0:WCo].set(t3)
    mf = mf.at[1:6, :, WCo:2 * WCo].set(t5)
    mf = mf.at[:, :, 2 * WCo:3 * WCo].set(t7)

    q = {}
    q["mf"] = mf
    q["shf"] = jnp.concatenate([rowify(h1a), rowify(h2), rowify(h3)], axis=1)
    q["m1b"] = toeplitz(p["w1b"]) * rowify(s1b)
    q["sh1b"] = rowify(h1b)
    q["ct1w"] = blockdiag(p["ct1_w"])
    q["ct1b"] = rowify(p["ct1_b"])
    ct2_fold = p["ct2_w"][:2 * in_ch] + p["ct2_w"][2 * in_ch:]     # cat(s,s) fold
    q["ct2fw"] = blockdiag(ct2_fold)
    q["ct2catw"] = jnp.concatenate(                                 # cat(b1..b4) fold
        [blockdiag(p["ct2_w"][i * in_ch:(i + 1) * in_ch]) for i in range(4)], axis=0)
    q["ct2b"] = rowify(p["ct2_b"])
    q["b4w"] = blockdiag(p["b4_w"])
    q["b4b"] = rowify(p["b4_b"])
    q["ct3w"] = blockdiag(p["ct3_w"])
    q["ct3b"] = rowify(p["ct3_b"])

    for k in ("mf", "m1b", "ct1w", "ct2fw", "ct2catw", "b4w", "ct3w"):
        q[k] = q[k].astype(mxu_dtype)          # MXU weights
    for k in ("shf", "sh1b", "ct1b", "ct2b", "b4b", "ct3b"):
        q[k] = q[k].astype(f32)                # shifts / biases stay f32
    return q


# ---------------------------------------------------------------------------
# Synthetic parameters + pure-JAX reference (correctness check only)
# ---------------------------------------------------------------------------

def _bn_affine(key, c, eps=1e-5):
    k1, k2, k3, k4 = jax.random.split(key, 4)
    gamma = jax.random.uniform(k1, (c,), jnp.float32, 0.5, 1.5)
    beta = 0.1 * jax.random.normal(k2, (c,), jnp.float32)
    mean = 0.1 * jax.random.normal(k3, (c,), jnp.float32)
    var = jax.random.uniform(k4, (c,), jnp.float32, 0.5, 1.5)
    scale = gamma / jnp.sqrt(var + eps)
    shift = beta - mean * scale
    return scale.reshape(1, c), shift.reshape(1, c)


def init_params(key, in_ch, out_ch):
    ks = jax.random.split(key, 16)
    p = {}
    p["w1a"] = 0.1 * jax.random.normal(ks[0], (3, 3, in_ch, out_ch), jnp.float32)
    p["bn1a"] = _bn_affine(ks[1], out_ch)
    p["w1b"] = 0.1 * jax.random.normal(ks[2], (3, 3, out_ch, out_ch), jnp.float32)
    p["bn1b"] = _bn_affine(ks[3], out_ch)
    p["w2"] = 0.1 * jax.random.normal(ks[4], (5, 5, in_ch, out_ch), jnp.float32)
    p["bn2"] = _bn_affine(ks[5], out_ch)
    p["w3"] = 0.1 * jax.random.normal(ks[6], (7, 7, in_ch, out_ch), jnp.float32)
    p["bn3"] = _bn_affine(ks[7], out_ch)
    p["b4_w"] = 0.1 * jax.random.normal(ks[8], (in_ch, in_ch), jnp.float32)
    p["b4_b"] = 0.1 * jax.random.normal(ks[9], (1, in_ch), jnp.float32)
    p["ct1_w"] = 0.1 * jax.random.normal(ks[10], (2 * in_ch, in_ch), jnp.float32)
    p["ct1_b"] = 0.1 * jax.random.normal(ks[11], (1, in_ch), jnp.float32)
    p["ct2_w"] = 0.1 * jax.random.normal(ks[12], (4 * in_ch, in_ch), jnp.float32)
    p["ct2_b"] = 0.1 * jax.random.normal(ks[13], (1, in_ch), jnp.float32)
    p["ct3_w"] = 0.1 * jax.random.normal(ks[14], (in_ch, out_ch), jnp.float32)
    p["ct3_b"] = 0.1 * jax.random.normal(ks[15], (1, out_ch), jnp.float32)
    return p


def _conv_ref(x, w, scale, shift):
    y = jax.lax.conv_general_dilated(
        x, w, window_strides=(1, 1), padding="SAME",
        dimension_numbers=("NHWC", "HWIO", "NHWC"))
    return jnp.maximum(y * scale + shift, 0.0)


def mdfc4_ref(p, x):
    t = _conv_ref(x, p["w1a"], *p["bn1a"])
    t = _conv_ref(t, p["w1b"], *p["bn1b"])
    b1 = jnp.maximum(x + (t @ p["ct1_w"] + p["ct1_b"]), 0.0)
    s = _conv_ref(x, p["w2"], *p["bn2"])
    s2 = jnp.concatenate([s, s], axis=-1)
    b2 = jnp.maximum(x + (s2 @ p["ct2_w"] + p["ct2_b"]), 0.0)
    u = _conv_ref(x, p["w3"], *p["bn3"])
    b3 = jnp.maximum(x + (u @ p["ct1_w"] + p["ct1_b"]), 0.0)
    b4 = x @ p["b4_w"] + p["b4_b"]
    bc = jnp.concatenate([b1, b2, b3, b4], axis=-1)
    bc = jnp.maximum(x + (bc @ p["ct2_w"] + p["ct2_b"]), 0.0)
    return bc @ p["ct3_w"] + p["ct3_b"]


# ---------------------------------------------------------------------------

if __name__ == "__main__":
    in_ch, out_ch = 4, 8          # module requires out_ch == 2 * in_ch
    N, H, W = 8, 16, 16

    key = jax.random.PRNGKey(0)
    kx, kp = jax.random.split(key)
    x = jax.random.normal(kx, (N, H, W, in_ch), jnp.float32)      # NHWC
    params = init_params(kp, in_ch, out_ch)
    # Use mxu_dtype=jnp.bfloat16 on v6e/v7x for ~2x MXU throughput (f32 here so the
    # tight reference tolerance holds; accumulation is always f32).
    prepared = prepare_params(params, W, in_ch, out_ch)

    fwd = jax.jit(mdfc4_forward)
    out = jax.block_until_ready(fwd(prepared, x))
    assert out.shape == (N, H, W, out_ch), out.shape

    ref = mdfc4_ref(params, x)
    max_err = float(jnp.max(jnp.abs(out - ref)))
    assert jnp.allclose(out, ref, atol=5e-4, rtol=5e-4), max_err

    print("KERNEL_OK")
</pallas_src>

<mosaic_0001>
module attributes {stable_mosaic.version = 11 : i64} {
  func.func @_mdfc4_kernel(%arg0: i32, %arg1: memref<96x64xf32, #tpu.memory_space<vmem>>, %arg2: memref<96x1xf32, #tpu.memory_space<vmem>>, %arg3: memref<7x64x384xf32, #tpu.memory_space<vmem>>, %arg4: memref<1x384xf32, #tpu.memory_space<vmem>>, %arg5: memref<3x128x128xf32, #tpu.memory_space<vmem>>, %arg6: memref<1x128xf32, #tpu.memory_space<vmem>>, %arg7: memref<128x64xf32, #tpu.memory_space<vmem>>, %arg8: memref<1x64xf32, #tpu.memory_space<vmem>>, %arg9: memref<128x64xf32, #tpu.memory_space<vmem>>, %arg10: memref<256x64xf32, #tpu.memory_space<vmem>>, %arg11: memref<1x64xf32, #tpu.memory_space<vmem>>, %arg12: memref<64x64xf32, #tpu.memory_space<vmem>>, %arg13: memref<1x64xf32, #tpu.memory_space<vmem>>, %arg14: memref<64x128xf32, #tpu.memory_space<vmem>>, %arg15: memref<1x128xf32, #tpu.memory_space<vmem>>, %arg16: memref<96x128xf32, #tpu.memory_space<vmem>>, %arg17: memref<104x64xf32, #tpu.memory_space<vmem>>, %arg18: memref<104x128xf32, #tpu.memory_space<vmem>>) attributes {dimension_semantics = [#tpu.dimension_semantics<parallel>], iteration_bounds = array<i64: 2>, scalar_prefetch = 0 : i64, scratch_operands = 2 : i64, tpu.core_type = #tpu.core_type<tc>, window_params = [{transform_indices = @transform_0, window_bounds = array<i64: 96, 64>}, {pipeline_mode = #tpu.pipeline_mode<synchronous>, transform_indices = @transform_1, window_bounds = array<i64: 96, 1>}, {pipeline_mode = #tpu.pipeline_mode<synchronous>, transform_indices = @transform_2, window_bounds = array<i64: 7, 64, 384>}, {pipeline_mode = #tpu.pipeline_mode<synchronous>, transform_indices = @transform_3, window_bounds = array<i64: 1, 384>}, {pipeline_mode = #tpu.pipeline_mode<synchronous>, transform_indices = @transform_4, window_bounds = array<i64: 3, 128, 128>}, {pipeline_mode = #tpu.pipeline_mode<synchronous>, transform_indices = @transform_5, window_bounds = array<i64: 1, 128>}, {pipeline_mode = #tpu.pipeline_mode<synchronous>, transform_indices = @transform_6, window_bounds = array<i64: 128, 64>}, {pipeline_mode = #tpu.pipeline_mode<synchronous>, transform_indices = @transform_7, window_bounds = array<i64: 1, 64>}, {pipeline_mode = #tpu.pipeline_mode<synchronous>, transform_indices = @transform_8, window_bounds = array<i64: 128, 64>}, {pipeline_mode = #tpu.pipeline_mode<synchronous>, transform_indices = @transform_9, window_bounds = array<i64: 256, 64>}, {pipeline_mode = #tpu.pipeline_mode<synchronous>, transform_indices = @transform_10, window_bounds = array<i64: 1, 64>}, {pipeline_mode = #tpu.pipeline_mode<synchronous>, transform_indices = @transform_11, window_bounds = array<i64: 64, 64>}, {pipeline_mode = #tpu.pipeline_mode<synchronous>, transform_indices = @transform_12, window_bounds = array<i64: 1, 64>}, {pipeline_mode = #tpu.pipeline_mode<synchronous>, transform_indices = @transform_13, window_bounds = array<i64: 64, 128>}, {pipeline_mode = #tpu.pipeline_mode<synchronous>, transform_indices = @transform_14, window_bounds = array<i64: 1, 128>}, {transform_indices = @transform_15, window_bounds = array<i64: 96, 128>}]} {
    %c0 = arith.constant 0 : index
    %c0_0 = arith.constant 0 : index
    %0 = vector.load %arg1[%c0, %c0_0] : memref<96x64xf32, #tpu.memory_space<vmem>>, vector<96x64xf32>
    %c0_1 = arith.constant 0 : index
    %c0_2 = arith.constant 0 : index
    %1 = vector.load %arg2[%c0_1, %c0_2] : memref<96x1xf32, #tpu.memory_space<vmem>>, vector<96x1xf32>
    %cst = arith.constant 0.000000e+00 : f32
    %2 = vector.broadcast %cst : f32 to vector<4x64xf32>
    %c0_3 = arith.constant 0 : index
    %c0_4 = arith.constant 0 : index
    %3 = vector.load %arg17[%c0_3, %c0_4] : memref<104x64xf32, #tpu.memory_space<vmem>>, vector<4x64xf32>
    tpu.vector_store %arg17[%c0_3, %c0_4], %2 {strides = array<i32>} : memref<104x64xf32, #tpu.memory_space<vmem>>, vector<4x64xf32>,
    %c4 = arith.constant 4 : index
    %c0_5 = arith.constant 0 : index
    %4 = vector.load %arg17[%c4, %c0_5] : memref<104x64xf32, #tpu.memory_space<vmem>>, vector<96x64xf32>
    tpu.vector_store %arg17[%c4, %c0_5], %0 {strides = array<i32>} : memref<104x64xf32, #tpu.memory_space<vmem>>, vector<96x64xf32>,
    %cst_6 = arith.constant 0.000000e+00 : f32
    %5 = vector.broadcast %cst_6 : f32 to vector<4x64xf32>
    %c100 = arith.constant 100 : index
    %c0_7 = arith.constant 0 : index
    %6 = vector.load %arg17[%c100, %c0_7] : memref<104x64xf32, #tpu.memory_space<vmem>>, vector<4x64xf32>
    tpu.vector_store %arg17[%c100, %c0_7], %5 {strides = array<i32>} : memref<104x64xf32, #tpu.memory_space<vmem>>, vector<4x64xf32>,
    %cst_8 = arith.constant 0.000000e+00 : f32
    %7 = vector.broadcast %cst_8 : f32 to vector<96x384xf32>
    %c1 = arith.constant 1 : index
    %c0_9 = arith.constant 0 : index
    %8 = vector.load %arg17[%c1, %c0_9] : memref<104x64xf32, #tpu.memory_space<vmem>>, vector<96x64xf32>
    %c0_10 = arith.constant 0 : index
    %c0_11 = arith.constant 0 : index
    %c0_12 = arith.constant 0 : index
    %9 = vector.load %arg3[%c0_10, %c0_11, %c0_12] : memref<7x64x384xf32, #tpu.memory_space<vmem>>, vector<1x64x384xf32>
    %10 = vector.shape_cast %9 : vector<1x64x384xf32> to vector<64x384xf32>
    %cst_13 = arith.constant dense<0.000000e+00> : vector<96x384xf32>
    %11 = tpu.matmul %8, %10, %cst_13 {dimension_numbers = #tpu.dot_dimension_numbers<[1], [0], [0], [1], [0, 0, 1, 1], [], []>} : vector<96x64xf32>, vector<64x384xf32>, vector<96x384xf32> -> vector<96x384xf32>
    %12 = arith.addf %7, %11 : vector<96x384xf32>
    %c2 = arith.constant 2 : index
    %c0_14 = arith.constant 0 : index
    %13 = vector.load %arg17[%c2, %c0_14] : memref<104x64xf32, #tpu.memory_space<vmem>>, vector<96x64xf32>
    %c1_15 = arith.constant 1 : index
    %c0_16 = arith.constant 0 : index
    %c0_17 = arith.constant 0 : index
    %14 = vector.load %arg3[%c1_15, %c0_16, %c0_17] : memref<7x64x384xf32, #tpu.memory_space<vmem>>, vector<1x64x384xf32>
    %15 = vector.shape_cast %14 : vector<1x64x384xf32> to vector<64x384xf32>
    %cst_18 = arith.constant dense<0.000000e+00> : vector<96x384xf32>
    %16 = tpu.matmul %13, %15, %cst_18 {dimension_numbers = #tpu.dot_dimension_numbers<[1], [0], [0], [1], [0, 0, 1, 1], [], []>} : vector<96x64xf32>, vector<64x384xf32>, vector<96x384xf32> -> vector<96x384xf32>
    %17 = arith.addf %12, %16 : vector<96x384xf32>
    %c3 = arith.constant 3 : index
    %c0_19 = arith.constant 0 : index
    %18 = vector.load %arg17[%c3, %c0_19] : memref<104x64xf32, #tpu.memory_space<vmem>>, vector<96x64xf32>
    %c2_20 = arith.constant 2 : index
    %c0_21 = arith.constant 0 : index
    %c0_22 = arith.constant 0 : index
    %19 = vector.load %arg3[%c2_20, %c0_21, %c0_22] : memref<7x64x384xf32, #tpu.memory_space<vmem>>, vector<1x64x384xf32>
    %20 = vector.shape_cast %19 : vector<1x64x384xf32> to vector<64x384xf32>
    %cst_23 = arith.constant dense<0.000000e+00> : vector<96x384xf32>
    %21 = tpu.matmul %18, %20, %cst_23 {dimension_numbers = #tpu.dot_dimension_numbers<[1], [0], [0], [1], [0, 0, 1, 1], [], []>} : vector<96x64xf32>, vector<64x384xf32>, vector<96x384xf32> -> vector<96x384xf32>
    %22 = arith.addf %17, %21 : vector<96x384xf32>
    %c4_24 = arith.constant 4 : index
    %c0_25 = arith.constant 0 : index
    %23 = vector.load %arg17[%c4_24, %c0_25] : memref<104x64xf32, #tpu.memory_space<vmem>>, vector<96x64xf32>
    %c3_26 = arith.constant 3 : index
    %c0_27 = arith.constant 0 : index
    %c0_28 = arith.constant 0 : index
    %24 = vector.load %arg3[%c3_26, %c0_27, %c0_28] : memref<7x64x384xf32, #tpu.memory_space<vmem>>, vector<1x64x384xf32>
    %25 = vector.shape_cast %24 : vector<1x64x384xf32> to vector<64x384xf32>
    %cst_29 = arith.constant dense<0.000000e+00> : vector<96x384xf32>
    %26 = tpu.matmul %23, %25, %cst_29 {dimension_numbers = #tpu.dot_dimension_numbers<[1], [0], [0], [1], [0, 0, 1, 1], [], []>} : vector<96x64xf32>, vector<64x384xf32>, vector<96x384xf32> -> vector<96x384xf32>
    %27 = arith.addf %22, %26 : vector<96x384xf32>
    %c5 = arith.constant 5 : index
    %c0_30 = arith.constant 0 : index
    %28 = vector.load %arg17[%c5, %c0_30] : memref<104x64xf32, #tpu.memory_space<vmem>>, vector<96x64xf32>
    %c4_31 = arith.constant 4 : index
    %c0_32 = arith.constant 0 : index
    %c0_33 = arith.constant 0 : index
    %29 = vector.load %arg3[%c4_31, %c0_32, %c0_33] : memref<7x64x384xf32, #tpu.memory_space<vmem>>, vector<1x64x384xf32>
    %30 = vector.shape_cast %29 : vector<1x64x384xf32> to vector<64x384xf32>
    %cst_34 = arith.constant dense<0.000000e+00> : vector<96x384xf32>
    %31 = tpu.matmul %28, %30, %cst_34 {dimension_numbers = #tpu.dot_dimension_numbers<[1], [0], [0], [1], [0, 0, 1, 1], [], []>} : vector<96x64xf32>, vector<64x384xf32>, vector<96x384xf32> -> vector<96x384xf32>
    %32 = arith.addf %27, %31 : vector<96x384xf32>
    %c6 = arith.constant 6 : index
    %c0_35 = arith.constant 0 : index
    %33 = vector.load %arg17[%c6, %c0_35] : memref<104x64xf32, #tpu.memory_space<vmem>>, vector<96x64xf32>
    %c5_36 = arith.constant 5 : index
    %c0_37 = arith.constant 0 : index
    %c0_38 = arith.constant 0 : index
    %34 = vector.load %arg3[%c5_36, %c0_37, %c0_38] : memref<7x64x384xf32, #tpu.memory_space<vmem>>, vector<1x64x384xf32>
    %35 = vector.shape_cast %34 : vector<1x64x384xf32> to vector<64x384xf32>
    %cst_39 = arith.constant dense<0.000000e+00> : vector<96x384xf32>
    %36 = tpu.matmul %33, %35, %cst_39 {dimension_numbers = #tpu.dot_dimension_numbers<[1], [0], [0], [1], [0, 0, 1, 1], [], []>} : vector<96x64xf32>, vector<64x384xf32>, vector<96x384xf32> -> vector<96x384xf32>
    %37 = arith.addf %32, %36 : vector<96x384xf32>
    %c7 = arith.constant 7 : index
    %c0_40 = arith.constant 0 : index
    %38 = vector.load %arg17[%c7, %c0_40] : memref<104x64xf32, #tpu.memory_space<vmem>>, vector<96x64xf32>
    %c6_41 = arith.constant 6 : index
    %c0_42 = arith.constant 0 : index
    %c0_43 = arith.constant 0 : index
    %39 = vector.load %arg3[%c6_41, %c0_42, %c0_43] : memref<7x64x384xf32, #tpu.memory_space<vmem>>, vector<1x64x384xf32>
    %40 = vector.shape_cast %39 : vector<1x64x384xf32> to vector<64x384xf32>
    %cst_44 = arith.constant dense<0.000000e+00> : vector<96x384xf32>
    %41 = tpu.matmul %38, %40, %cst_44 {dimension_numbers = #tpu.dot_dimension_numbers<[1], [0], [0], [1], [0, 0, 1, 1], [], []>} : vector<96x64xf32>, vector<64x384xf32>, vector<96x384xf32> -> vector<96x384xf32>
    %42 = arith.addf %37, %41 : vector<96x384xf32>
    %c0_45 = arith.constant 0 : index
    %c0_46 = arith.constant 0 : index
    %43 = vector.load %arg4[%c0_45, %c0_46] : memref<1x384xf32, #tpu.memory_space<vmem>>, vector<1x384xf32>
    %44 = vector.broadcast %43 : vector<1x384xf32> to vector<96x384xf32>
    %45 = arith.addf %42, %44 : vector<96x384xf32>
    %cst_47 = arith.constant 0.000000e+00 : f32
    %46 = vector.broadcast %cst_47 : f32 to vector<96x384xf32>
    %47 = arith.maximumf %45, %46 : vector<96x384xf32>
    %48 = vector.extract_strided_slice %47 {offsets = [0, 0], sizes = [96, 128], strides = [1, 1]} : vector<96x384xf32> to vector<96x128xf32>
    %49 = vector.extract_strided_slice %47 {offsets = [0, 128], sizes = [96, 128], strides = [1, 1]} : vector<96x384xf32> to vector<96x128xf32>
    %50 = vector.extract_strided_slice %47 {offsets = [0, 256], sizes = [96, 128], strides = [1, 1]} : vector<96x384xf32> to vector<96x128xf32>
    %cst_48 = arith.constant 0.000000e+00 : f32
    %51 = vector.broadcast %cst_48 : f32 to vector<4x128xf32>
    %c0_49 = arith.constant 0 : index
    %c0_50 = arith.constant 0 : index
    %52 = vector.load %arg18[%c0_49, %c0_50] : memref<104x128xf32, #tpu.memory_space<vmem>>, vector<4x128xf32>
    tpu.vector_store %arg18[%c0_49, %c0_50], %51 {strides = array<i32>} : memref<104x128xf32, #tpu.memory_space<vmem>>, vector<4x128xf32>,
    %53 = vector.broadcast %1 : vector<96x1xf32> to vector<96x128xf32>
    %54 = arith.mulf %48, %53 : vector<96x128xf32>
    %c4_51 = arith.constant 4 : index
    %c0_52 = arith.constant 0 : index
    %55 = vector.load %arg18[%c4_51, %c0_52] : memref<104x128xf32, #tpu.memory_space<vmem>>, vector<96x128xf32>
    tpu.vector_store %arg18[%c4_51, %c0_52], %54 {strides = array<i32>} : memref<104x128xf32, #tpu.memory_space<vmem>>, vector<96x128xf32>,
    %cst_53 = arith.constant 0.000000e+00 : f32
    %56 = vector.broadcast %cst_53 : f32 to vector<4x128xf32>
    %c100_54 = arith.constant 100 : index
    %c0_55 = arith.constant 0 : index
    %57 = vector.load %arg18[%c100_54, %c0_55] : memref<104x128xf32, #tpu.memory_space<vmem>>, vector<4x128xf32>
    tpu.vector_store %arg18[%c100_54, %c0_55], %56 {strides = array<i32>} : memref<104x128xf32, #tpu.memory_space<vmem>>, vector<4x128xf32>,
    %cst_56 = arith.constant 0.000000e+00 : f32
    %58 = vector.broadcast %cst_56 : f32 to vector<96x128xf32>
    %c3_57 = arith.constant 3 : index
    %c0_58 = arith.constant 0 : index
    %59 = vector.load %arg18[%c3_57, %c0_58] : memref<104x128xf32, #tpu.memory_space<vmem>>, vector<96x128xf32>
    %c0_59 = arith.constant 0 : index
    %c0_60 = arith.constant 0 : index
    %c0_61 = arith.constant 0 : index
    %60 = vector.load %arg5[%c0_59, %c0_60, %c0_61] : memref<3x128x128xf32, #tpu.memory_space<vmem>>, vector<1x128x128xf32>
    %61 = vector.shape_cast %60 : vector<1x128x128xf32> to vector<128x128xf32>
    %cst_62 = arith.constant dense<0.000000e+00> : vector<96x128xf32>
    %62 = tpu.matmul %59, %61, %cst_62 {dimension_numbers = #tpu.dot_dimension_numbers<[1], [0], [0], [1], [0, 0, 1, 1], [], []>} : vector<96x128xf32>, vector<128x128xf32>, vector<96x128xf32> -> vector<96x128xf32>
    %63 = arith.addf %58, %62 : vector<96x128xf32>
    %c4_63 = arith.constant 4 : index
    %c0_64 = arith.constant 0 : index
    %64 = vector.load %arg18[%c4_63, %c0_64] : memref<104x128xf32, #tpu.memory_space<vmem>>, vector<96x128xf32>
    %c1_65 = arith.constant 1 : index
    %c0_66 = arith.constant 0 : index
    %c0_67 = arith.constant 0 : index
    %65 = vector.load %arg5[%c1_65, %c0_66, %c0_67] : memref<3x128x128xf32, #tpu.memory_space<vmem>>, vector<1x128x128xf32>
    %66 = vector.shape_cast %65 : vector<1x128x128xf32> to vector<128x128xf32>
    %cst_68 = arith.constant dense<0.000000e+00> : vector<96x128xf32>
    %67 = tpu.matmul %64, %66, %cst_68 {dimension_numbers = #tpu.dot_dimension_numbers<[1], [0], [0], [1], [0, 0, 1, 1], [], []>} : vector<96x128xf32>, vector<128x128xf32>, vector<96x128xf32> -> vector<96x128xf32>
    %68 = arith.addf %63, %67 : vector<96x128xf32>
    %c5_69 = arith.constant 5 : index
    %c0_70 = arith.constant 0 : index
    %69 = vector.load %arg18[%c5_69, %c0_70] : memref<104x128xf32, #tpu.memory_space<vmem>>, vector<96x128xf32>
    %c2_71 = arith.constant 2 : index
    %c0_72 = arith.constant 0 : index
    %c0_73 = arith.constant 0 : index
    %70 = vector.load %arg5[%c2_71, %c0_72, %c0_73] : memref<3x128x128xf32, #tpu.memory_space<vmem>>, vector<1x128x128xf32>
    %71 = vector.shape_cast %70 : vector<1x128x128xf32> to vector<128x128xf32>
    %cst_74 = arith.constant dense<0.000000e+00> : vector<96x128xf32>
    %72 = tpu.matmul %69, %71, %cst_74 {dimension_numbers = #tpu.dot_dimension_numbers<[1], [0], [0], [1], [0, 0, 1, 1], [], []>} : vector<96x128xf32>, vector<128x128xf32>, vector<96x128xf32> -> vector<96x128xf32>
    %73 = arith.addf %68, %72 : vector<96x128xf32>
    %c0_75 = arith.constant 0 : index
    %c0_76 = arith.constant 0 : index
    %74 = vector.load %arg6[%c0_75, %c0_76] : memref<1x128xf32, #tpu.memory_space<vmem>>, vector<1x128xf32>
    %75 = vector.broadcast %74 : vector<1x128xf32> to vector<96x128xf32>
    %76 = arith.addf %73, %75 : vector<96x128xf32>
    %cst_77 = arith.constant 0.000000e+00 : f32
    %77 = vector.broadcast %cst_77 : f32 to vector<96x128xf32>
    %78 = arith.maximumf %76, %77 : vector<96x128xf32>
    %79 = tpu.concatenate %78, %50 in 0 : vector<96x128xf32>, vector<96x128xf32> -> vector<192x128xf32>
    %c0_78 = arith.constant 0 : index
    %c0_79 = arith.constant 0 : index
    %80 = vector.load %arg7[%c0_78, %c0_79] : memref<128x64xf32, #tpu.memory_space<vmem>>, vector<128x64xf32>
    %cst_80 = arith.constant dense<0.000000e+00> : vector<192x64xf32>
    %81 = tpu.matmul %79, %80, %cst_80 {dimension_numbers = #tpu.dot_dimension_numbers<[1], [0], [0], [1], [0, 0, 1, 1], [], []>} : vector<192x128xf32>, vector<128x64xf32>, vector<192x64xf32> -> vector<192x64xf32>
    %c0_81 = arith.constant 0 : index
    %c0_82 = arith.constant 0 : index
    %82 = vector.load %arg8[%c0_81, %c0_82] : memref<1x64xf32, #tpu.memory_space<vmem>>, vector<1x64xf32>
    %83 = vector.broadcast %82 : vector<1x64xf32> to vector<192x64xf32>
    %84 = arith.addf %81, %83 : vector<192x64xf32>
    %85 = vector.extract_strided_slice %84 {offsets = [0, 0], sizes = [96, 64], strides = [1, 1]} : vector<192x64xf32> to vector<96x64xf32>
    %86 = arith.addf %0, %85 : vector<96x64xf32>
    %cst_83 = arith.constant 0.000000e+00 : f32
    %87 = vector.broadcast %cst_83 : f32 to vector<96x64xf32>
    %88 = arith.maximumf %86, %87 : vector<96x64xf32>
    %89 = vector.extract_strided_slice %84 {offsets = [96, 0], sizes = [96, 64], strides = [1, 1]} : vector<192x64xf32> to vector<96x64xf32>
    %90 = arith.addf %0, %89 : vector<96x64xf32>
    %cst_84 = arith.constant 0.000000e+00 : f32
    %91 = vector.broadcast %cst_84 : f32 to vector<96x64xf32>
    %92 = arith.maximumf %90, %91 : vector<96x64xf32>
    %c0_85 = arith.constant 0 : index
    %c0_86 = arith.constant 0 : index
    %93 = vector.load %arg9[%c0_85, %c0_86] : memref<128x64xf32, #tpu.memory_space<vmem>>, vector<128x64xf32>
    %cst_87 = arith.constant dense<0.000000e+00> : vector<96x64xf32>
    %94 = tpu.matmul %49, %93, %cst_87 {dimension_numbers = #tpu.dot_dimension_numbers<[1], [0], [0], [1], [0, 0, 1, 1], [], []>} : vector<96x128xf32>, vector<128x64xf32>, vector<96x64xf32> -> vector<96x64xf32>
    %95 = arith.addf %0, %94 : vector<96x64xf32>
    %c0_88 = arith.constant 0 : index
    %c0_89 = arith.constant 0 : index
    %96 = vector.load %arg11[%c0_88, %c0_89] : memref<1x64xf32, #tpu.memory_space<vmem>>, vector<1x64xf32>
    %97 = vector.broadcast %96 : vector<1x64xf32> to vector<96x64xf32>
    %98 = arith.addf %95, %97 : vector<96x64xf32>
    %cst_90 = arith.constant 0.000000e+00 : f32
    %99 = vector.broadcast %cst_90 : f32 to vector<96x64xf32>
    %100 = arith.maximumf %98, %99 : vector<96x64xf32>
    %c0_91 = arith.constant 0 : index
    %c0_92 = arith.constant 0 : index
    %101 = vector.load %arg12[%c0_91, %c0_92] : memref<64x64xf32, #tpu.memory_space<vmem>>, vector<64x64xf32>
    %cst_93 = arith.constant dense<0.000000e+00> : vector<96x64xf32>
    %102 = tpu.matmul %0, %101, %cst_93 {dimension_numbers = #tpu.dot_dimension_numbers<[1], [0], [0], [1], [0, 0, 1, 1], [], []>} : vector<96x64xf32>, vector<64x64xf32>, vector<96x64xf32> -> vector<96x64xf32>
    %c0_94 = arith.constant 0 : index
    %c0_95 = arith.constant 0 : index
    %103 = vector.load %arg13[%c0_94, %c0_95] : memref<1x64xf32, #tpu.memory_space<vmem>>, vector<1x64xf32>
    %104 = vector.broadcast %103 : vector<1x64xf32> to vector<96x64xf32>
    %105 = arith.addf %102, %104 : vector<96x64xf32>
    %106 = tpu.concatenate %88, %100, %92, %105 in 1 : vector<96x64xf32>, vector<96x64xf32>, vector<96x64xf32>, vector<96x64xf32> -> vector<96x256xf32>
    %c0_96 = arith.constant 0 : index
    %c0_97 = arith.constant 0 : index
    %107 = vector.load %arg10[%c0_96, %c0_97] : memref<256x64xf32, #tpu.memory_space<vmem>>, vector<256x64xf32>
    %cst_98 = arith.constant dense<0.000000e+00> : vector<96x64xf32>
    %108 = tpu.matmul %106, %107, %cst_98 {dimension_numbers = #tpu.dot_dimension_numbers<[1], [0], [0], [1], [0, 0, 1, 1], [], []>} : vector<96x256xf32>, vector<256x64xf32>, vector<96x64xf32> -> vector<96x64xf32>
    %c0_99 = arith.constant 0 : index
    %c0_100 = arith.constant 0 : index
    %109 = vector.load %arg11[%c0_99, %c0_100] : memref<1x64xf32, #tpu.memory_space<vmem>>, vector<1x64xf32>
    %110 = vector.broadcast %109 : vector<1x64xf32> to vector<96x64xf32>
    %111 = arith.addf %108, %110 : vector<96x64xf32>
    %112 = arith.addf %0, %111 : vector<96x64xf32>
    %cst_101 = arith.constant 0.000000e+00 : f32
    %113 = vector.broadcast %cst_101 : f32 to vector<96x64xf32>
    %114 = arith.maximumf %112, %113 : vector<96x64xf32>
    %c0_102 = arith.constant 0 : index
    %c0_103 = arith.constant 0 : index
    %115 = vector.load %arg14[%c0_102, %c0_103] : memref<64x128xf32, #tpu.memory_space<vmem>>, vector<64x128xf32>
    %cst_104 = arith.constant dense<0.000000e+00> : vector<96x128xf32>
    %116 = tpu.matmul %114, %115, %cst_104 {dimension_numbers = #tpu.dot_dimension_numbers<[1], [0], [0], [1], [0, 0, 1, 1], [], []>} : vector<96x64xf32>, vector<64x128xf32>, vector<96x128xf32> -> vector<96x128xf32>
    %c0_105 = arith.constant 0 : index
    %c0_106 = arith.constant 0 : index
    %117 = vector.load %arg15[%c0_105, %c0_106] : memref<1x128xf32, #tpu.memory_space<vmem>>, vector<1x128xf32>
    %118 = vector.broadcast %117 : vector<1x128xf32> to vector<96x128xf32>
    %119 = arith.addf %116, %118 : vector<96x128xf32>
    %c0_107 = arith.constant 0 : index
    %c0_108 = arith.constant 0 : index
    %120 = vector.load %arg16[%c0_107, %c0_108] : memref<96x128xf32, #tpu.memory_space<vmem>>, vector<96x128xf32>
    tpu.vector_store %arg16[%c0_107, %c0_108], %119 {strides = array<i32>} : memref<96x128xf32, #tpu.memory_space<vmem>>, vector<96x128xf32>,
    return
  }
  func.func @transform_0(%arg0: i32) -> (i32, i32) {
    %c0_i32 = arith.constant 0 : i32
    %c0_i32_0 = arith.constant 0 : i32
    return %arg0, %c0_i32 : i32, i32
  }
  func.func @transform_1(%arg0: i32) -> (i32, i32) {
    %c0_i32 = arith.constant 0 : i32
    %c0_i32_0 = arith.constant 0 : i32
    %c0_i32_1 = arith.constant 0 : i32
    return %c0_i32, %c0_i32_0 : i32, i32
  }
  func.func @transform_2(%arg0: i32) -> (i32, i32, i32) {
    %c0_i32 = arith.constant 0 : i32
    %c0_i32_0 = arith.constant 0 : i32
    %c0_i32_1 = arith.constant 0 : i32
    %c0_i32_2 = arith.constant 0 : i32
    return %c0_i32, %c0_i32_0, %c0_i32_1 : i32, i32, i32
  }
  func.func @transform_3(%arg0: i32) -> (i32, i32) {
    %c0_i32 = arith.constant 0 : i32
    %c0_i32_0 = arith.constant 0 : i32
    %c0_i32_1 = arith.constant 0 : i32
    return %c0_i32, %c0_i32_0 : i32, i32
  }
  func.func @transform_4(%arg0: i32) -> (i32, i32, i32) {
    %c0_i32 = arith.constant 0 : i32
    %c0_i32_0 = arith.constant 0 : i32
    %c0_i32_1 = arith.constant 0 : i32
    %c0_i32_2 = arith.constant 0 : i32
    return %c0_i32, %c0_i32_0, %c0_i32_1 : i32, i32, i32
  }
  func.func @transform_5(%arg0: i32) -> (i32, i32) {
    %c0_i32 = arith.constant 0 : i32
    %c0_i32_0 = arith.constant 0 : i32
    %c0_i32_1 = arith.constant 0 : i32
    return %c0_i32, %c0_i32_0 : i32, i32
  }
  func.func @transform_6(%arg0: i32) -> (i32, i32) {
    %c0_i32 = arith.constant 0 : i32
    %c0_i32_0 = arith.constant 0 : i32
    %c0_i32_1 = arith.constant 0 : i32
    return %c0_i32, %c0_i32_0 : i32, i32
  }
  func.func @transform_7(%arg0: i32) -> (i32, i32) {
    %c0_i32 = arith.constant 0 : i32
    %c0_i32_0 = arith.constant 0 : i32
    %c0_i32_1 = arith.constant 0 : i32
    return %c0_i32, %c0_i32_0 : i32, i32
  }
  func.func @transform_8(%arg0: i32) -> (i32, i32) {
    %c0_i32 = arith.constant 0 : i32
    %c0_i32_0 = arith.constant 0 : i32
    %c0_i32_1 = arith.constant 0 : i32
    return %c0_i32, %c0_i32_0 : i32, i32
  }
  func.func @transform_9(%arg0: i32) -> (i32, i32) {
    %c0_i32 = arith.constant 0 : i32
    %c0_i32_0 = arith.constant 0 : i32
    %c0_i32_1 = arith.constant 0 : i32
    return %c0_i32, %c0_i32_0 : i32, i32
  }
  func.func @transform_10(%arg0: i32) -> (i32, i32) {
    %c0_i32 = arith.constant 0 : i32
    %c0_i32_0 = arith.constant 0 : i32
    %c0_i32_1 = arith.constant 0 : i32
    return %c0_i32, %c0_i32_0 : i32, i32
  }
  func.func @transform_11(%arg0: i32) -> (i32, i32) {
    %c0_i32 = arith.constant 0 : i32
    %c0_i32_0 = arith.constant 0 : i32
    %c0_i32_1 = arith.constant 0 : i32
    return %c0_i32, %c0_i32_0 : i32, i32
  }
  func.func @transform_12(%arg0: i32) -> (i32, i32) {
    %c0_i32 = arith.constant 0 : i32
    %c0_i32_0 = arith.constant 0 : i32
    %c0_i32_1 = arith.constant 0 : i32
    return %c0_i32, %c0_i32_0 : i32, i32
  }
  func.func @transform_13(%arg0: i32) -> (i32, i32) {
    %c0_i32 = arith.constant 0 : i32
    %c0_i32_0 = arith.constant 0 : i32
    %c0_i32_1 = arith.constant 0 : i32
    return %c0_i32, %c0_i32_0 : i32, i32
  }
  func.func @transform_14(%arg0: i32) -> (i32, i32) {
    %c0_i32 = arith.constant 0 : i32
    %c0_i32_0 = arith.constant 0 : i32
    %c0_i32_1 = arith.constant 0 : i32
    return %c0_i32, %c0_i32_0 : i32, i32
  }
  func.func @transform_15(%arg0: i32) -> (i32, i32) {
    %c0_i32 = arith.constant 0 : i32
    %c0_i32_0 = arith.constant 0 : i32
    return %arg0, %c0_i32 : i32, i32
  }
}

</mosaic_0001>

<llo_original>
// kernel: mdfc4_forward.1
$region0: #{mdfc4_forward.1}
  #allocation0 [shape = 'u32[]', space=smem, size = 0x4, offset = 0x4, fixed_abs, tag = 'smem constant byte address 0x4 - core index']
  #allocation1 [shape = 'u32[144,128]{1,0:T(1,128)}', space=vmem, size = 0x12000, scoped, tag = 'internal scratch']
  #allocation2 [shape = 'f32[104,64]{1,0:T(8,128)}', space=vmem, size = 0xd000, scoped, tag = 'scratch operand']
  #allocation3 [shape = 'f32[104,128]{1,0:T(8,128)}', space=vmem, size = 0xd000, scoped, tag = 'scratch operand']
  %s0 = inlined_call_operand.vmem [shape: f32[192,64], index: 0, kind: input, shape index: {}]
  %s1 = inlined_call_operand.vmem [shape: f32[96,1], index: 1, kind: input, shape index: {}]
  %s2 = inlined_call_operand.vmem [shape: f32[7,64,384], index: 2, kind: input, shape index: {}]
  %s3 = inlined_call_operand.vmem [shape: f32[1,384], index: 3, kind: input, shape index: {}]
  %s4 = inlined_call_operand.vmem [shape: f32[3,128,128], index: 4, kind: input, shape index: {}]
  %s5 = inlined_call_operand.vmem [shape: f32[1,128], index: 5, kind: input, shape index: {}]
  %s6 = inlined_call_operand.vmem [shape: f32[128,64], index: 6, kind: input, shape index: {}]
  %s7 = inlined_call_operand.vmem [shape: f32[1,64], index: 7, kind: input, shape index: {}]
  %s8 = inlined_call_operand.vmem [shape: f32[128,64], index: 8, kind: input, shape index: {}]
  %s9 = inlined_call_operand.vmem [shape: f32[256,64], index: 9, kind: input, shape index: {}]
  %s10 = inlined_call_operand.vmem [shape: f32[1,64], index: 10, kind: input, shape index: {}]
  %s11 = inlined_call_operand.vmem [shape: f32[64,64], index: 11, kind: input, shape index: {}]
  %s12 = inlined_call_operand.vmem [shape: f32[1,64], index: 12, kind: input, shape index: {}]
  %s13 = inlined_call_operand.vmem [shape: f32[64,128], index: 13, kind: input, shape index: {}]
  %s14 = inlined_call_operand.vmem [shape: f32[1,128], index: 14, kind: input, shape index: {}]
  %s15 = inlined_call_operand.vmem [shape: f32[192,128], index: 15, kind: output, shape index: {}]
  %s16 = sld [smem:[#allocation0]]
  $region93: #{mdfc4_forward.1} parent=0
    _
  %s18 = ssub.s32 1, %s16
  %s19 = scalar_select 0, %s18, %s16
  loop: start=0, step=1, limit=4
  $region2: #{mdfc4_forward.1} parent=0 // loop_pre_header
    _
  $region3: #{mdfc4_forward.1} parent=0 // loop_header
    %s21 = sphi 0, %s25
    %p22 = scmp.ge.s32.totalorder %s21, 4
    %s31 = sphi 0, %s33
    %s34 = sphi 0, %s31
    %s35 = sphi 0, %s34
    %s51 = sphi 0, %s35
    %s55 = sphi 0, %s55
    %s57 = sphi 0, %s55
    %s58 = sphi 0, %s57
    %s72 = sphi 0, %s58
    %s76 = sphi 0, %s76
    %s78 = sphi 0, %s76
    %s79 = sphi 0, %s78
    %s93 = sphi 0, %s79
    %s97 = sphi 0, %s97
    %s99 = sphi 0, %s97
    %s100 = sphi 0, %s99
    %s114 = sphi 0, %s100
    %s118 = sphi 0, %s118
    %s120 = sphi 0, %s118
    %s121 = sphi 0, %s120
    %s135 = sphi 0, %s121
    %s139 = sphi 0, %s139
    %s141 = sphi 0, %s139
    %s142 = sphi 0, %s141
    %s156 = sphi 0, %s142
    %s160 = sphi 0, %s160
    %s162 = sphi 0, %s160
    %s163 = sphi 0, %s162
    %s177 = sphi 0, %s163
    %s181 = sphi 0, %s181
    %s183 = sphi 0, %s181
    %s184 = sphi 0, %s183
    %s198 = sphi 0, %s184
    %s202 = sphi 0, %s202
    %s204 = sphi 0, %s202
    %s205 = sphi 0, %s204
    %s219 = sphi 0, %s205
    %s223 = sphi 0, %s223
    %s225 = sphi 0, %s223
    %s226 = sphi 0, %s225
    %s240 = sphi 0, %s226
    %s244 = sphi 0, %s244
    %s246 = sphi 0, %s244
    %s247 = sphi 0, %s246
    %s261 = sphi 0, %s247
    %s265 = sphi 0, %s265
    %s267 = sphi 0, %s265
    %s268 = sphi 0, %s267
    %s282 = sphi 0, %s268
    %s286 = sphi 0, %s286
    %s288 = sphi 0, %s286
    %s289 = sphi 0, %s288
    %s303 = sphi 0, %s289
    %s307 = sphi 0, %s307
    %s309 = sphi 0, %s307
    %s310 = sphi 0, %s309
    %s324 = sphi 0, %s310
    %s328 = sphi 0, %s328
    %s330 = sphi 0, %s328
    %s331 = sphi 0, %s330
    %s345 = sphi 0, %s331
    %s351 = sphi 0, %s353
    %s354 = sphi 0, %s351
    %s355 = sphi 0, %s354
    %s371 = sphi 0, %s355
  $region4: #{mdfc4_forward.1} parent=0 // loop_header_branch
    %24 = sbr.rel (%p22) target = $region8
  $region5: #{mdfc4_forward.1} parent=0 // loop_body
    %s26 = ssub.s32 %s21, 1
    %s27 = ssub.s32 %s21, 2
    %s28 = sadd.s32 %s21, 1
    %s29 = ssub.s32 %s21, %s28
    %p30 = scmp.eq.s32.totalorder %s29, 0
    %s32 = sadd.s32 %s31, 1
    %s33 = scalar_select %p30, %s31, %s32
    %p36 = pneg %p30
    %p37 = scmp.eq.s32.totalorder %s21, 1
    %p38 = por %p36, %p37
    %p39 = scmp.ne.s32.totalorder %s31, %s34
    %p40 = scmp.eq.s32.totalorder %s21, 0
    %p41 = por %p39, %p40
    %p42 = scmp.ne.s32.totalorder %s31, %s34
    %p43 = scmp.eq.s32.totalorder %s26, 1
    %p44 = por %p42, %p43
    %p45 = scmp.ne.s32.totalorder %s34, %s35
    %p46 = scmp.eq.s32.totalorder %s26, 0
    %p47 = por %p45, %p46
    %p48 = scmp.ne.s32.totalorder %s34, %s35
    %p49 = scmp.eq.s32.totalorder %s27, 1
    %p50 = por %p48, %p49
    %p52 = scmp.ne.s32.totalorder %s35, %s51
    %p53 = scmp.eq.s32.totalorder %s27, 0
    %p54 = por %p52, %p53
    %s56 = sadd.s32 %s55, 1
    %p59 = scmp.eq.s32.totalorder %s21, 1
    %p60 = scmp.ne.s32.totalorder %s55, %s57
    %p61 = scmp.eq.s32.totalorder %s21, 0
    %p62 = por %p60, %p61
    %p63 = scmp.ne.s32.totalorder %s55, %s57
    %p64 = scmp.eq.s32.totalorder %s26, 1
    %p65 = por %p63, %p64
    %p66 = scmp.ne.s32.totalorder %s57, %s58
    %p67 = scmp.eq.s32.totalorder %s26, 0
    %p68 = por %p66, %p67
    %p69 = scmp.ne.s32.totalorder %s57, %s58
    %p70 = scmp.eq.s32.totalorder %s27, 1
    %p71 = por %p69, %p70
    %p73 = scmp.ne.s32.totalorder %s58, %s72
    %p74 = scmp.eq.s32.totalorder %s27, 0
    %p75 = por %p73, %p74
    %s77 = sadd.s32 %s76, 1
    %p80 = scmp.eq.s32.totalorder %s21, 1
    %p81 = scmp.ne.s32.totalorder %s76, %s78
    %p82 = scmp.eq.s32.totalorder %s21, 0
    %p83 = por %p81, %p82
    %p84 = scmp.ne.s32.totalorder %s76, %s78
    %p85 = scmp.eq.s32.totalorder %s26, 1
    %p86 = por %p84, %p85
    %p87 = scmp.ne.s32.totalorder %s78, %s79
    %p88 = scmp.eq.s32.totalorder %s26, 0
    %p89 = por %p87, %p88
    %p90 = scmp.ne.s32.totalorder %s78, %s79
    %p91 = scmp.eq.s32.totalorder %s27, 1
    %p92 = por %p90, %p91
    %p94 = scmp.ne.s32.totalorder %s79, %s93
    %p95 = scmp.eq.s32.totalorder %s27, 0
    %p96 = por %p94, %p95
    %s98 = sadd.s32 %s97, 1
    %p101 = scmp.eq.s32.totalorder %s21, 1
    %p102 = scmp.ne.s32.totalorder %s97, %s99
    %p103 = scmp.eq.s32.totalorder %s21, 0
    %p104 = por %p102, %p103
    %p105 = scmp.ne.s32.totalorder %s97, %s99
    %p106 = scmp.eq.s32.totalorder %s26, 1
    %p107 = por %p105, %p106
    %p108 = scmp.ne.s32.totalorder %s99, %s100
    %p109 = scmp.eq.s32.totalorder %s26, 0
    %p110 = por %p108, %p109
    %p111 = scmp.ne.s32.totalorder %s99, %s100
    %p112 = scmp.eq.s32.totalorder %s27, 1
    %p113 = por %p111, %p112
    %p115 = scmp.ne.s32.totalorder %s100, %s114
    %p116 = scmp.eq.s32.totalorder %s27, 0
    %p117 = por %p115, %p116
    %s119 = sadd.s32 %s118, 1
    %p122 = scmp.eq.s32.totalorder %s21, 1
    %p123 = scmp.ne.s32.totalorder %s118, %s120
    %p124 = scmp.eq.s32.totalorder %s21, 0
    %p125 = por %p123, %p124
    %p126 = scmp.ne.s32.totalorder %s118, %s120
    %p127 = scmp.eq.s32.totalorder %s26, 1
    %p128 = por %p126, %p127
    %p129 = scmp.ne.s32.totalorder %s120, %s121
    %p130 = scmp.eq.s32.totalorder %s26, 0
    %p131 = por %p129, %p130
    %p132 = scmp.ne.s32.totalorder %s120, %s121
    %p133 = scmp.eq.s32.totalorder %s27, 1
    %p134 = por %p132, %p133
    %p136 = scmp.ne.s32.totalorder %s121, %s135
    %p137 = scmp.eq.s32.totalorder %s27, 0
    %p138 = por %p136, %p137
    %s140 = sadd.s32 %s139, 1
    %p143 = scmp.eq.s32.totalorder %s21, 1
    %p144 = scmp.ne.s32.totalorder %s139, %s141
    %p145 = scmp.eq.s32.totalorder %s21, 0
    %p146 = por %p144, %p145
    %p147 = scmp.ne.s32.totalorder %s139, %s141
    %p148 = scmp.eq.s32.totalorder %s26, 1
    %p149 = por %p147, %p148
    %p150 = scmp.ne.s32.totalorder %s141, %s142
    %p151 = scmp.eq.s32.totalorder %s26, 0
    %p152 = por %p150, %p151
    %p153 = scmp.ne.s32.totalorder %s141, %s142
    %p154 = scmp.eq.s32.totalorder %s27, 1
    %p155 = por %p153, %p154
    %p157 = scmp.ne.s32.totalorder %s142, %s156
    %p158 = scmp.eq.s32.totalorder %s27, 0
    %p159 = por %p157, %p158
    %s161 = sadd.s32 %s160, 1
    %p164 = scmp.eq.s32.totalorder %s21, 1
    %p165 = scmp.ne.s32.totalorder %s160, %s162
    %p166 = scmp.eq.s32.totalorder %s21, 0
    %p167 = por %p165, %p166
    %p168 = scmp.ne.s32.totalorder %s160, %s162
    %p169 = scmp.eq.s32.totalorder %s26, 1
    %p170 = por %p168, %p169
    %p171 = scmp.ne.s32.totalorder %s162, %s163
    %p172 = scmp.eq.s32.totalorder %s26, 0
    %p173 = por %p171, %p172
    %p174 = scmp.ne.s32.totalorder %s162, %s163
    %p175 = scmp.eq.s32.totalorder %s27, 1
    %p176 = por %p174, %p175
    %p178 = scmp.ne.s32.totalorder %s163, %s177
    %p179 = scmp.eq.s32.totalorder %s27, 0
    %p180 = por %p178, %p179
    %s182 = sadd.s32 %s181, 1
    %p185 = scmp.eq.s32.totalorder %s21, 1
    %p186 = scmp.ne.s32.totalorder %s181, %s183
    %p187 = scmp.eq.s32.totalorder %s21, 0
    %p188 = por %p186, %p187
    %p189 = scmp.ne.s32.totalorder %s181, %s183
    %p190 = scmp.eq.s32.totalorder %s26, 1
    %p191 = por %p189, %p190
    %p192 = scmp.ne.s32.totalorder %s183, %s184
    %p193 = scmp.eq.s32.totalorder %s26, 0
    %p194 = por %p192, %p193
    %p195 = scmp.ne.s32.totalorder %s183, %s184
    %p196 = scmp.eq.s32.totalorder %s27, 1
    %p197 = por %p195, %p196
    %p199 = scmp.ne.s32.totalorder %s184, %s198
    %p200 = scmp.eq.s32.totalorder %s27, 0
    %p201 = por %p199, %p200
    %s203 = sadd.s32 %s202, 1
    %p206 = scmp.eq.s32.totalorder %s21, 1
    %p207 = scmp.ne.s32.totalorder %s202, %s204
    %p208 = scmp.eq.s32.totalorder %s21, 0
    %p209 = por %p207, %p208
    %p210 = scmp.ne.s32.totalorder %s202, %s204
    %p211 = scmp.eq.s32.totalorder %s26, 1
    %p212 = por %p210, %p211
    %p213 = scmp.ne.s32.totalorder %s204, %s205
    %p214 = scmp.eq.s32.totalorder %s26, 0
    %p215 = por %p213, %p214
    %p216 = scmp.ne.s32.totalorder %s204, %s205
    %p217 = scmp.eq.s32.totalorder %s27, 1
    %p218 = por %p216, %p217
    %p220 = scmp.ne.s32.totalorder %s205, %s219
    %p221 = scmp.eq.s32.totalorder %s27, 0
    %p222 = por %p220, %p221
    %s224 = sadd.s32 %s223, 1
    %p227 = scmp.eq.s32.totalorder %s21, 1
    %p228 = scmp.ne.s32.totalorder %s223, %s225
    %p229 = scmp.eq.s32.totalorder %s21, 0
    %p230 = por %p228, %p229
    %p231 = scmp.ne.s32.totalorder %s223, %s225
    %p232 = scmp.eq.s32.totalorder %s26, 1
    %p233 = por %p231, %p232
    %p234 = scmp.ne.s32.totalorder %s225, %s226
    %p235 = scmp.eq.s32.totalorder %s26, 0
    %p236 = por %p234, %p235
    %p237 = scmp.ne.s32.totalorder %s225, %s226
    %p238 = scmp.eq.s32.totalorder %s27, 1
    %p239 = por %p237, %p238
    %p241 = scmp.ne.s32.totalorder %s226, %s240
    %p242 = scmp.eq.s32.totalorder %s27, 0
    %p243 = por %p241, %p242
    %s245 = sadd.s32 %s244, 1
    %p248 = scmp.eq.s32.totalorder %s21, 1
    %p249 = scmp.ne.s32.totalorder %s244, %s246
    %p250 = scmp.eq.s32.totalorder %s21, 0
    %p251 = por %p249, %p250
    %p252 = scmp.ne.s32.totalorder %s244, %s246
    %p253 = scmp.eq.s32.totalorder %s26, 1
    %p254 = por %p252, %p253
    %p255 = scmp.ne.s32.totalorder %s246, %s247
    %p256 = scmp.eq.s32.totalorder %s26, 0
    %p257 = por %p255, %p256
    %p258 = scmp.ne.s32.totalorder %s246, %s247
    %p259 = scmp.eq.s32.totalorder %s27, 1
    %p260 = por %p258, %p259
    %p262 = scmp.ne.s32.totalorder %s247, %s261
    %p263 = scmp.eq.s32.totalorder %s27, 0
    %p264 = por %p262, %p263
    %s266 = sadd.s32 %s265, 1
    %p269 = scmp.eq.s32.totalorder %s21, 1
    %p270 = scmp.ne.s32.totalorder %s265, %s267
    %p271 = scmp.eq.s32.totalorder %s21, 0
    %p272 = por %p270, %p271
    %p273 = scmp.ne.s32.totalorder %s265, %s267
    %p274 = scmp.eq.s32.totalorder %s26, 1
    %p275 = por %p273, %p274
    %p276 = scmp.ne.s32.totalorder %s267, %s268
    %p277 = scmp.eq.s32.totalorder %s26, 0
    %p278 = por %p276, %p277
    %p279 = scmp.ne.s32.totalorder %s267, %s268
    %p280 = scmp.eq.s32.totalorder %s27, 1
    %p281 = por %p279, %p280
    %p283 = scmp.ne.s32.totalorder %s268, %s282
    %p284 = scmp.eq.s32.totalorder %s27, 0
    %p285 = por %p283, %p284
    %s287 = sadd.s32 %s286, 1
    %p290 = scmp.eq.s32.totalorder %s21, 1
    %p291 = scmp.ne.s32.totalorder %s286, %s288
    %p292 = scmp.eq.s32.totalorder %s21, 0
    %p293 = por %p291, %p292
    %p294 = scmp.ne.s32.totalorder %s286, %s288
    %p295 = scmp.eq.s32.totalorder %s26, 1
    %p296 = por %p294, %p295
    %p297 = scmp.ne.s32.totalorder %s288, %s289
    %p298 = scmp.eq.s32.totalorder %s26, 0
    %p299 = por %p297, %p298
    %p300 = scmp.ne.s32.totalorder %s288, %s289
    %p301 = scmp.eq.s32.totalorder %s27, 1
    %p302 = por %p300, %p301
    %p304 = scmp.ne.s32.totalorder %s289, %s303
    %p305 = scmp.eq.s32.totalorder %s27, 0
    %p306 = por %p304, %p305
    %s308 = sadd.s32 %s307, 1
    %p311 = scmp.eq.s32.totalorder %s21, 1
    %p312 = scmp.ne.s32.totalorder %s307, %s309
    %p313 = scmp.eq.s32.totalorder %s21, 0
    %p314 = por %p312, %p313
    %p315 = scmp.ne.s32.totalorder %s307, %s309
    %p316 = scmp.eq.s32.totalorder %s26, 1
    %p317 = por %p315, %p316
    %p318 = scmp.ne.s32.totalorder %s309, %s310
    %p319 = scmp.eq.s32.totalorder %s26, 0
    %p320 = por %p318, %p319
    %p321 = scmp.ne.s32.totalorder %s309, %s310
    %p322 = scmp.eq.s32.totalorder %s27, 1
    %p323 = por %p321, %p322
    %p325 = scmp.ne.s32.totalorder %s310, %s324
    %p326 = scmp.eq.s32.totalorder %s27, 0
    %p327 = por %p325, %p326
    %s329 = sadd.s32 %s328, 1
    %p332 = scmp.eq.s32.totalorder %s21, 1
    %p333 = scmp.ne.s32.totalorder %s328, %s330
    %p334 = scmp.eq.s32.totalorder %s21, 0
    %p335 = por %p333, %p334
    %p336 = scmp.ne.s32.totalorder %s328, %s330
    %p337 = scmp.eq.s32.totalorder %s26, 1
    %p338 = por %p336, %p337
    %p339 = scmp.ne.s32.totalorder %s330, %s331
    %p340 = scmp.eq.s32.totalorder %s26, 0
    %p341 = por %p339, %p340
    %p342 = scmp.ne.s32.totalorder %s330, %s331
    %p343 = scmp.eq.s32.totalorder %s27, 1
    %p344 = por %p342, %p343
    %p346 = scmp.ne.s32.totalorder %s331, %s345
    %p347 = scmp.eq.s32.totalorder %s27, 0
    %p348 = por %p346, %p347
    %s349 = ssub.s32 %s21, %s28
    %p350 = scmp.eq.s32.totalorder %s349, 0
    %s352 = sadd.s32 %s351, 1
    %s353 = scalar_select %p350, %s351, %s352
    %p356 = pneg %p350
    %p357 = scmp.eq.s32.totalorder %s21, 1
    %p358 = por %p356, %p357
    %p359 = scmp.ne.s32.totalorder %s351, %s354
    %p360 = scmp.eq.s32.totalorder %s21, 0
    %p361 = por %p359, %p360
    %p362 = scmp.ne.s32.totalorder %s351, %s354
    %p363 = scmp.eq.s32.totalorder %s26, 1
    %p364 = por %p362, %p363
    %p365 = scmp.ne.s32.totalorder %s354, %s355
    %p366 = scmp.eq.s32.totalorder %s26, 0
    %p367 = por %p365, %p366
    %p368 = scmp.ne.s32.totalorder %s354, %s355
    %p369 = scmp.eq.s32.totalorder %s27, 1
    %p370 = por %p368, %p369
    %p372 = scmp.ne.s32.totalorder %s355, %s371
    %p373 = scmp.eq.s32.totalorder %s27, 0
    %p374 = por %p372, %p373
    %p375 = scmp.le.s32.totalorder 1, %s21
    %p376 = scmp.lt.s32.totalorder %s21, 3
    %p377 = pnand %p375, %p376
    %p378 = pneg %p377
    // Predicated region
    $region9: #{mdfc4_forward.1} parent=5 // pred_check
      _
    $region10: #{mdfc4_forward.1} parent=5 // pred_check_branch
      %380 = sbr.rel (%p377) target = $region12
    $region11: #{mdfc4_forward.1} parent=5 // pred_region
      %s381 = ssub.s32 %s21, 1
      // Predicated region
      $region13: #{mdfc4_forward.1} parent=11 // pred_check
        %p382 = pneg %p68
      $region14: #{mdfc4_forward.1} parent=11 // pred_check_branch
        %384 = sbr.rel (%p382) target = $region16
      $region15: #{mdfc4_forward.1} parent=11 // pred_region
        _
      $region16: #{mdfc4_forward.1} parent=11 // pred_fallthru
        _
      // Predicated region
      $region17: #{mdfc4_forward.1} parent=11 // pred_check
        %p385 = pneg %p89
      $region18: #{mdfc4_forward.1} parent=11 // pred_check_branch
        %387 = sbr.rel (%p385) target = $region20
      $region19: #{mdfc4_forward.1} parent=11 // pred_region
        _
      $region20: #{mdfc4_forward.1} parent=11 // pred_fallthru
        _
      // Predicated region
      $region21: #{mdfc4_forward.1} parent=11 // pred_check
        %p388 = pneg %p110
      $region22: #{mdfc4_forward.1} parent=11 // pred_check_branch
        %390 = sbr.rel (%p388) target = $region24
      $region23: #{mdfc4_forward.1} parent=11 // pred_region
        _
      $region24: #{mdfc4_forward.1} parent=11 // pred_fallthru
        _
      // Predicated region
      $region25: #{mdfc4_forward.1} parent=11 // pred_check
        %p391 = pneg %p131
      $region26: #{mdfc4_forward.1} parent=11 // pred_check_branch
        %393 = sbr.rel (%p391) target = $region28
      $region27: #{mdfc4_forward.1} parent=11 // pred_region
        _
      $region28: #{mdfc4_forward.1} parent=11 // pred_fallthru
        _
      // Predicated region
      $region29: #{mdfc4_forward.1} parent=11 // pred_check
        %p394 = pneg %p152
      $region30: #{mdfc4_forward.1} parent=11 // pred_check_branch
        %396 = sbr.rel (%p394) target = $region32
      $region31: #{mdfc4_forward.1} parent=11 // pred_region
        _
      $region32: #{mdfc4_forward.1} parent=11 // pred_fallthru
        _
      // Predicated region
      $region33: #{mdfc4_forward.1} parent=11 // pred_check
        %p397 = pneg %p173
      $region34: #{mdfc4_forward.1} parent=11 // pred_check_branch
        %399 = sbr.rel (%p397) target = $region36
      $region35: #{mdfc4_forward.1} parent=11 // pred_region
        _
      $region36: #{mdfc4_forward.1} parent=11 // pred_fallthru
        _
      // Predicated region
      $region37: #{mdfc4_forward.1} parent=11 // pred_check
        %p400 = pneg %p194
      $region38: #{mdfc4_forward.1} parent=11 // pred_check_branch
        %402 = sbr.rel (%p400) target = $region40
      $region39: #{mdfc4_forward.1} parent=11 // pred_region
        _
      $region40: #{mdfc4_forward.1} parent=11 // pred_fallthru
        _
      // Predicated region
      $region41: #{mdfc4_forward.1} parent=11 // pred_check
        %p403 = pneg %p215
      $region42: #{mdfc4_forward.1} parent=11 // pred_check_branch
        %405 = sbr.rel (%p403) target = $region44
      $region43: #{mdfc4_forward.1} parent=11 // pred_region
        _
      $region44: #{mdfc4_forward.1} parent=11 // pred_fallthru
        _
      // Predicated region
      $region45: #{mdfc4_forward.1} parent=11 // pred_check
        %p406 = pneg %p236
      $region46: #{mdfc4_forward.1} parent=11 // pred_check_branch
        %408 = sbr.rel (%p406) target = $region48
      $region47: #{mdfc4_forward.1} parent=11 // pred_region
        _
      $region48: #{mdfc4_forward.1} parent=11 // pred_fallthru
        _
      // Predicated region
      $region49: #{mdfc4_forward.1} parent=11 // pred_check
        %p409 = pneg %p257
      $region50: #{mdfc4_forward.1} parent=11 // pred_check_branch
        %411 = sbr.rel (%p409) target = $region52
      $region51: #{mdfc4_forward.1} parent=11 // pred_region
        _
      $region52: #{mdfc4_forward.1} parent=11 // pred_fallthru
        _
      // Predicated region
      $region53: #{mdfc4_forward.1} parent=11 // pred_check
        %p412 = pneg %p278
      $region54: #{mdfc4_forward.1} parent=11 // pred_check_branch
        %414 = sbr.rel (%p412) target = $region56
      $region55: #{mdfc4_forward.1} parent=11 // pred_region
        _
      $region56: #{mdfc4_forward.1} parent=11 // pred_fallthru
        _
      // Predicated region
      $region57: #{mdfc4_forward.1} parent=11 // pred_check
        %p415 = pneg %p299
      $region58: #{mdfc4_forward.1} parent=11 // pred_check_branch
        %417 = sbr.rel (%p415) target = $region60
      $region59: #{mdfc4_forward.1} parent=11 // pred_region
        _
      $region60: #{mdfc4_forward.1} parent=11 // pred_fallthru
        _
      // Predicated region
      $region61: #{mdfc4_forward.1} parent=11 // pred_check
        %p418 = pneg %p320
      $region62: #{mdfc4_forward.1} parent=11 // pred_check_branch
        %420 = sbr.rel (%p418) target = $region64
      $region63: #{mdfc4_forward.1} parent=11 // pred_region
        _
      $region64: #{mdfc4_forward.1} parent=11 // pred_fallthru
        _
      // Predicated region
      $region65: #{mdfc4_forward.1} parent=11 // pred_check
        %p421 = pneg %p341
      $region66: #{mdfc4_forward.1} parent=11 // pred_check_branch
        %423 = sbr.rel (%p421) target = $region68
      $region67: #{mdfc4_forward.1} parent=11 // pred_region
        _
      $region68: #{mdfc4_forward.1} parent=11 // pred_fallthru
        _
    $region12: #{mdfc4_forward.1} parent=5 // pred_fallthru
      _
    %p424 = scmp.lt.s32.totalorder %s21, 2
    // Predicated region
    $region69: #{mdfc4_forward.1} parent=5 // pred_check
      %p425 = pneg %p424
    $region70: #{mdfc4_forward.1} parent=5 // pred_check_branch
      %427 = sbr.rel (%p425) target = $region72
    $region71: #{mdfc4_forward.1} parent=5 // pred_region
      // Predicated region
      $region73: #{mdfc4_forward.1} parent=71 // pred_check
        %p428 = pneg %p41
      $region74: #{mdfc4_forward.1} parent=71 // pred_check_branch
        %430 = sbr.rel (%p428) target = $region76
      $region75: #{mdfc4_forward.1} parent=71 // pred_region
        %s431 = smul.u32 12, %s21
        %p432 = scmp.lt.s32.totalorder %s431, 23
        %s433 = scalar_select %p432, %s431, 23
        %s434 = smul.addr %s433, 8
        %s435 = scalar_lea.vmem %s0, %s434
        %s436 = smul.u32 12, %s21
      $region76: #{mdfc4_forward.1} parent=71 // pred_fallthru
        _
    $region72: #{mdfc4_forward.1} parent=5 // pred_fallthru
      _
    %p437 = scmp.le.s32.totalorder 1, %s21
    %p438 = scmp.lt.s32.totalorder %s21, 3
    %p439 = pnand %p437, %p438
    %p440 = pneg %p439
    // Predicated region
    $region77: #{mdfc4_forward.1} parent=5 // pred_check
      _
    $region78: #{mdfc4_forward.1} parent=5 // pred_check_branch
      %442 = sbr.rel (%p439) target = $region80
    $region79: #{mdfc4_forward.1} parent=5 // pred_region
      %s443 = ssub.s32 %s21, 1
      %s444 = smul.u32 12, %s26
      %p445 = scmp.lt.s32.totalorder %s444, 23
      %s446 = scalar_select %p445, %s444, 23
      %s447 = smul.addr %s446, 8
      %s448 = scalar_lea.vmem %s0, %s447
      %p449 = pneg %p47
      %p450 = pneg %p44
      %p451 = pneg %p68
      %p452 = pneg %p65
      %p453 = pneg %p89
      %p454 = pneg %p86
      %p455 = pneg %p110
      %p456 = pneg %p107
      %p457 = pneg %p131
      %p458 = pneg %p128
      %p459 = pneg %p152
      %p460 = pneg %p149
      %p461 = pneg %p173
      %p462 = pneg %p170
      %p463 = pneg %p194
      %p464 = pneg %p191
      %p465 = pneg %p215
      %p466 = pneg %p212
      %p467 = pneg %p236
      %p468 = pneg %p233
      %p469 = pneg %p257
      %p470 = pneg %p254
      %p471 = pneg %p278
      %p472 = pneg %p275
      %p473 = pneg %p299
      %p474 = pneg %p296
      %p475 = pneg %p320
      %p476 = pneg %p317
      %p477 = pneg %p341
      %p478 = pneg %p338
      %p479 = pneg %p367
      %p480 = pneg %p364
      %s481 = smul.u32 12, %s26
      %p482 = scmp.lt.s32.totalorder %s481, 23
      %s483 = scalar_select %p482, %s481, 23
      %s484 = smul.addr %s483, 8
      %s485 = scalar_lea.vmem %s15, %s484
      %s486 = smul.u32 12, %s26
      %p487 = scmp.lt.s32.totalorder %s486, 23
      %s488 = scalar_select %p487, %s486, 23
      %s489 = smul.addr %s488, 8
      %s490 = scalar_lea.vmem %s0, %s489
      %s491 = smul.u32 12, %s26
      %s492 = smul.u32 12, %s26
      %p493 = scmp.lt.s32.totalorder %s492, 23
      %s494 = scalar_select %p493, %s492, 23
      %s495 = smul.addr %s494, 8
      %s496 = scalar_lea.vmem %s15, %s495
      %s497 = smul.u32 12, %s26
      %v498 = vld [vmem:[%s490] sm:$0xff]
      %v499 = vld [vmem:[%s490 + $0x8] sm:$0xff]
      %v500 = vld [vmem:[%s490 + $0x10] sm:$0xff]
      %v501 = vld [vmem:[%s490 + $0x18] sm:$0xff]
      %v502 = vld [vmem:[%s490 + $0x20] sm:$0xff]
      %v503 = vld [vmem:[%s490 + $0x28] sm:$0xff]
      %v504 = vld [vmem:[%s490 + $0x30] sm:$0xff]
      %v505 = vld [vmem:[%s490 + $0x38] sm:$0xff]
      %v506 = vld [vmem:[%s490 + $0x40] sm:$0xff]
      %v507 = vld [vmem:[%s490 + $0x48] sm:$0xff]
      %v508 = vld [vmem:[%s490 + $0x50] sm:$0xff]
      %v509 = vld [vmem:[%s490 + $0x58] sm:$0xff]
      %v510 = vld [vmem:[%s1] sm:$0xff]
      %v511 = vld [vmem:[%s1 + $0x8] sm:$0xff]
      %v512 = vld [vmem:[%s1 + $0x10] sm:$0xff]
      %v513 = vld [vmem:[%s1 + $0x18] sm:$0xff]
      %v514 = vld [vmem:[%s1 + $0x20] sm:$0xff]
      %v515 = vld [vmem:[%s1 + $0x28] sm:$0xff]
      %v516 = vld [vmem:[%s1 + $0x30] sm:$0xff]
      %v517 = vld [vmem:[%s1 + $0x38] sm:$0xff]
      %v518 = vld [vmem:[%s1 + $0x40] sm:$0xff]
      %v519 = vld [vmem:[%s1 + $0x48] sm:$0xff]
      %v520 = vld [vmem:[%s1 + $0x50] sm:$0xff]
      %v521 = vld [vmem:[%s1 + $0x58] sm:$0xff]
      %vm522 = vcmask 519168
      %523 = vst.msk [vmem:[#allocation2] sm:$0xf] %vm522, 0.0
      %vm524 = vcmask 523264
      %525 = vst.msk [vmem:[#allocation2 + $0x4] sm:$0xff] %vm524, %v498
      %526 = vst.msk [vmem:[#allocation2 + $0xc] sm:$0xff] %vm524, %v499
      %527 = vst.msk [vmem:[#allocation2 + $0x14] sm:$0xff] %vm524, %v500
      %528 = vst.msk [vmem:[#allocation2 + $0x1c] sm:$0xff] %vm524, %v501
      %529 = vst.msk [vmem:[#allocation2 + $0x24] sm:$0xff] %vm524, %v502
      %530 = vst.msk [vmem:[#allocation2 + $0x2c] sm:$0xff] %vm524, %v503
      %531 = vst.msk [vmem:[#allocation2 + $0x34] sm:$0xff] %vm524, %v504
      %532 = vst.msk [vmem:[#allocation2 + $0x3c] sm:$0xff] %vm524, %v505
      %533 = vst.msk [vmem:[#allocation2 + $0x44] sm:$0xff] %vm524, %v506
      %534 = vst.msk [vmem:[#allocation2 + $0x4c] sm:$0xff] %vm524, %v507
      %535 = vst.msk [vmem:[#allocation2 + $0x54] sm:$0xff] %vm524, %v508
      %536 = vst.msk [vmem:[#allocation2 + $0x5c] sm:$0xff] %vm524, %v509
      %537 = vst.msk [vmem:[#allocation2 + $0x64] sm:$0xf] %vm522, 0.0
      %v538 = vld [vmem:[#allocation2 + $0x1] sm:$0xff]
      %v539 = vld [vmem:[#allocation2 + $0x9] sm:$0xff]
      %v540 = vld [vmem:[#allocation2 + $0x11] sm:$0xff]
      %v541 = vld [vmem:[#allocation2 + $0x19] sm:$0xff]
      %v542 = vld [vmem:[#allocation2 + $0x21] sm:$0xff]
      %v543 = vld [vmem:[#allocation2 + $0x29] sm:$0xff]
      %v544 = vld [vmem:[#allocation2 + $0x31] sm:$0xff]
      %v545 = vld [vmem:[#allocation2 + $0x39] sm:$0xff]
      %v546 = vld [vmem:[#allocation2 + $0x41] sm:$0xff]
      %v547 = vld [vmem:[#allocation2 + $0x49] sm:$0xff]
      %v548 = vld [vmem:[#allocation2 + $0x51] sm:$0xff]
      %v549 = vld [vmem:[#allocation2 + $0x59] sm:$0xff]
      %v550 = vld [vmem:[%s2] sm:$0xff]
      %v551 = vld [vmem:[%s2 + $0x8] sm:$0xff]
      %v552 = vld [vmem:[%s2 + $0x10] sm:$0xff]
      %v553 = vld [vmem:[%s2 + $0x18] sm:$0xff]
      %v554 = vld [vmem:[%s2 + $0x20] sm:$0xff]
      %v555 = vld [vmem:[%s2 + $0x28] sm:$0xff]
      %v556 = vld [vmem:[%s2 + $0x30] sm:$0xff]
      %v557 = vld [vmem:[%s2 + $0x38] sm:$0xff]
      %v558 = vld [vmem:[%s2 + $0x40] sm:$0xff]
      %v559 = vld [vmem:[%s2 + $0x48] sm:$0xff]
      %v560 = vld [vmem:[%s2 + $0x50] sm:$0xff]
      %v561 = vld [vmem:[%s2 + $0x58] sm:$0xff]
      %v562 = vld [vmem:[%s2 + $0x60] sm:$0xff]
      %v563 = vld [vmem:[%s2 + $0x68] sm:$0xff]
      %v564 = vld [vmem:[%s2 + $0x70] sm:$0xff]
      %v565 = vld [vmem:[%s2 + $0x78] sm:$0xff]
      %v566 = vld [vmem:[%s2 + $0x80] sm:$0xff]
      %v567 = vld [vmem:[%s2 + $0x88] sm:$0xff]
      %v568 = vld [vmem:[%s2 + $0x90] sm:$0xff]
      %v569 = vld [vmem:[%s2 + $0x98] sm:$0xff]
      %v570 = vld [vmem:[%s2 + $0xa0] sm:$0xff]
      %v571 = vld [vmem:[%s2 + $0xa8] sm:$0xff]
      %v572 = vld [vmem:[%s2 + $0xb0] sm:$0xff]
      %v573 = vld [vmem:[%s2 + $0xb8] sm:$0xff]
      %v574 = vld [vmem:[#allocation2 + $0x2] sm:$0xff]
      %v575 = vld [vmem:[#allocation2 + $0xa] sm:$0xff]
      %v576 = vld [vmem:[#allocation2 + $0x12] sm:$0xff]
      %v577 = vld [vmem:[#allocation2 + $0x1a] sm:$0xff]
      %v578 = vld [vmem:[#allocation2 + $0x22] sm:$0xff]
      %v579 = vld [vmem:[#allocation2 + $0x2a] sm:$0xff]
      %v580 = vld [vmem:[#allocation2 + $0x32] sm:$0xff]
      %v581 = vld [vmem:[#allocation2 + $0x3a] sm:$0xff]
      %v582 = vld [vmem:[#allocation2 + $0x42] sm:$0xff]
      %v583 = vld [vmem:[#allocation2 + $0x4a] sm:$0xff]
      %v584 = vld [vmem:[#allocation2 + $0x52] sm:$0xff]
      %v585 = vld [vmem:[#allocation2 + $0x5a] sm:$0xff]
      %s586 = scalar_lea.vmem %s2, 192
      %v587 = vld [vmem:[%s586] sm:$0xff]
      %v588 = vld [vmem:[%s586 + $0x8] sm:$0xff]
      %v589 = vld [vmem:[%s586 + $0x10] sm:$0xff]
      %v590 = vld [vmem:[%s586 + $0x18] sm:$0xff]
      %v591 = vld [vmem:[%s586 + $0x20] sm:$0xff]
      %v592 = vld [vmem:[%s586 + $0x28] sm:$0xff]
      %v593 = vld [vmem:[%s586 + $0x30] sm:$0xff]
      %v594 = vld [vmem:[%s586 + $0x38] sm:$0xff]
      %v595 = vld [vmem:[%s586 + $0x40] sm:$0xff]
      %v596 = vld [vmem:[%s586 + $0x48] sm:$0xff]
      %v597 = vld [vmem:[%s586 + $0x50] sm:$0xff]
      %v598 = vld [vmem:[%s586 + $0x58] sm:$0xff]
      %v599 = vld [vmem:[%s586 + $0x60] sm:$0xff]
      %v600 = vld [vmem:[%s586 + $0x68] sm:$0xff]
      %v601 = vld [vmem:[%s586 + $0x70] sm:$0xff]
      %v602 = vld [vmem:[%s586 + $0x78] sm:$0xff]
      %v603 = vld [vmem:[%s586 + $0x80] sm:$0xff]
      %v604 = vld [vmem:[%s586 + $0x88] sm:$0xff]
      %v605 = vld [vmem:[%s586 + $0x90] sm:$0xff]
      %v606 = vld [vmem:[%s586 + $0x98] sm:$0xff]
      %v607 = vld [vmem:[%s586 + $0xa0] sm:$0xff]
      %v608 = vld [vmem:[%s586 + $0xa8] sm:$0xff]
      %v609 = vld [vmem:[%s586 + $0xb0] sm:$0xff]
      %v610 = vld [vmem:[%s586 + $0xb8] sm:$0xff]
      %v612 = vsel %vm524, %v574, 0
      %v615 = vsel %vm524, %v575, 0
      %v618 = vsel %vm524, %v576, 0
      %v621 = vsel %vm524, %v577, 0
      %v624 = vsel %vm524, %v578, 0
      %v627 = vsel %vm524, %v579, 0
      %v630 = vsel %vm524, %v580, 0
      %v633 = vsel %vm524, %v581, 0
      %v636 = vsel %vm524, %v582, 0
      %v639 = vsel %vm524, %v583, 0
      %v642 = vsel %vm524, %v584, 0
      %v645 = vsel %vm524, %v585, 0
      %647 = vmatprep.subr.mxu0 0.0
      %648 = vmatpush1.msra.mxu0 0.0
      %649 = vmatprep.subr.mxu0 0.0
      %650 = vmatpush1.msra.mxu0 0.0
      %651 = vmatprep.subr.mxu0 0.0
      %652 = vmatpush1.msra.mxu0 0.0
      %653 = vmatprep.subr.mxu0 0.0
      %654 = vmatpush1.msra.mxu0 0.0
      %655 = vmatprep.subr.mxu0 0.0
      %656 = vmatpush1.msra.mxu0 0.0
      %657 = vmatprep.subr.mxu0 0.0
      %658 = vmatpush1.msra.mxu0 0.0
      %659 = vmatprep.subr.mxu0 0.0
      %660 = vmatpush1.msra.mxu0 0.0
      %661 = vmatprep.subr.mxu0 0.0
      %662 = vmatpush1.msra.mxu0 0.0
      %663 = vmatprep.subr.mxu0 %v609
      %664 = vmatpush1.msra.mxu0 %v608
      %665 = vmatprep.subr.mxu0 %v606
      %666 = vmatpush1.msra.mxu0 %v605
      %667 = vmatprep.subr.mxu0 %v603
      %668 = vmatpush1.msra.mxu0 %v602
      %669 = vmatprep.subr.mxu0 %v600
      %670 = vmatpush1.msra.mxu0 %v599
      %671 = vmatprep.subr.mxu0 %v597
      %672 = vmatpush1.msra.mxu0 %v596
      %673 = vmatprep.subr.mxu0 %v594
      %674 = vmatpush1.msra.mxu0 %v593
      %675 = vmatprep.subr.mxu0 %v591
      %676 = vmatpush1.msra.mxu0 %v590
      %677 = vmatprep.subr.mxu0 %v588
      %678 = vmatpush1.msra.mxu0 %v587
      %679 = vmatprep.subr.mxu0 0.0
      %680 = vmatpush2.msra.mxu0 0.0
      %681 = vmatprep.subr.mxu0 0.0
      %682 = vmatpush2.msra.mxu0 0.0
      %683 = vmatprep.subr.mxu0 0.0
      %684 = vmatpush2.msra.mxu0 0.0
      %685 = vmatprep.subr.mxu0 0.0
      %686 = vmatpush2.msra.mxu0 0.0
      %687 = vmatprep.subr.mxu0 0.0
      %688 = vmatpush2.msra.mxu0 0.0
      %689 = vmatprep.subr.mxu0 0.0
      %690 = vmatpush2.msra.mxu0 0.0
      %691 = vmatprep.subr.mxu0 0.0
      %692 = vmatpush2.msra.mxu0 0.0
      %693 = vmatprep.subr.mxu0 0.0
      %694 = vmatpush2.msra.mxu0 0.0
      %695 = vmatprep.subr.mxu0 0.0
      %696 = vmatpush2.msra.mxu0 0.0
      %697 = vmatprep.subr.mxu0 0.0
      %698 = vmatpush2.msra.mxu0 0.0
      %699 = vmatprep.subr.mxu0 0.0
      %700 = vmatpush2.msra.mxu0 0.0
      %701 = vmatprep.subr.mxu0 0.0
      %702 = vmatpush2.msra.mxu0 0.0
      %703 = vmatprep.subr.mxu0 0.0
      %704 = vmatpush2.msra.mxu0 0.0
      %705 = vmatprep.subr.mxu0 0.0
      %706 = vmatpush2.msra.mxu0 0.0
      %707 = vmatprep.subr.mxu0 0.0
      %708 = vmatpush2.msra.mxu0 0.0
      %709 = vmatprep.subr.mxu0 0.0
      %710 = vmatpush2.msra.mxu0 0.0
      %711 = vmatprep.mubr.f32.mxu0 0.0
      %712 = vmatmul.mubr.f32.gmra.mxu0 %v612
      %v713 = vpop.f32.mrf.mxu0
      %v714 = vadd.f32 0.0, %v713
      %v715 = vpop.f32.mrf.mxu0
      %v716 = vadd.f32 0.0, %v715
      %717 = vmatprep.mubr.f32.mxu0 0.0
      %718 = vmatmul.mubr.f32.gmra.mxu0 %v615
      %v719 = vpop.f32.mrf.mxu0
      %v720 = vadd.f32 0.0, %v719
      %v721 = vpop.f32.mrf.mxu0
      %v722 = vadd.f32 0.0, %v721
      %723 = vmatprep.mubr.f32.mxu0 0.0
      %724 = vmatmul.mubr.f32.gmra.mxu0 %v618
      %v725 = vpop.f32.mrf.mxu0
      %v726 = vadd.f32 0.0, %v725
      %v727 = vpop.f32.mrf.mxu0
      %v728 = vadd.f32 0.0, %v727
      %729 = vmatprep.mubr.f32.mxu0 0.0
      %730 = vmatmul.mubr.f32.gmra.mxu0 %v621
      %v731 = vpop.f32.mrf.mxu0
      %v732 = vadd.f32 0.0, %v731
      %v733 = vpop.f32.mrf.mxu0
      %v734 = vadd.f32 0.0, %v733
      %735 = vmatprep.mubr.f32.mxu0 0.0
      %736 = vmatmul.mubr.f32.gmra.mxu0 %v624
      %v737 = vpop.f32.mrf.mxu0
      %v738 = vadd.f32 0.0, %v737
      %v739 = vpop.f32.mrf.mxu0
      %v740 = vadd.f32 0.0, %v739
      %741 = vmatprep.mubr.f32.mxu0 0.0
      %742 = vmatmul.mubr.f32.gmra.mxu0 %v627
      %v743 = vpop.f32.mrf.mxu0
      %v744 = vadd.f32 0.0, %v743
      %v745 = vpop.f32.mrf.mxu0
      %v746 = vadd.f32 0.0, %v745
      %747 = vmatprep.mubr.f32.mxu0 0.0
      %748 = vmatmul.mubr.f32.gmra.mxu0 %v630
      %v749 = vpop.f32.mrf.mxu0
      %v750 = vadd.f32 0.0, %v749
      %v751 = vpop.f32.mrf.mxu0
      %v752 = vadd.f32 0.0, %v751
      %753 = vmatprep.mubr.f32.mxu0 0.0
      %754 = vmatmul.mubr.f32.gmra.mxu0 %v633
      %v755 = vpop.f32.mrf.mxu0
      %v756 = vadd.f32 0.0, %v755
      %v757 = vpop.f32.mrf.mxu0
      %v758 = vadd.f32 0.0, %v757
      %759 = vmatprep.mubr.f32.mxu0 0.0
      %760 = vmatmul.mubr.f32.gmra.mxu0 %v636
      %v761 = vpop.f32.mrf.mxu0
      %v762 = vadd.f32 0.0, %v761
      %v763 = vpop.f32.mrf.mxu0
      %v764 = vadd.f32 0.0, %v763
      %765 = vmatprep.mubr.f32.mxu0 0.0
      %766 = vmatmul.mubr.f32.gmra.mxu0 %v639
      %v767 = vpop.f32.mrf.mxu0
      %v768 = vadd.f32 0.0, %v767
      %v769 = vpop.f32.mrf.mxu0
      %v770 = vadd.f32 0.0, %v769
      %771 = vmatprep.mubr.f32.mxu0 0.0
      %772 = vmatmul.mubr.f32.gmra.mxu0 %v642
      %v773 = vpop.f32.mrf.mxu0
      %v774 = vadd.f32 0.0, %v773
      %v775 = vpop.f32.mrf.mxu0
      %v776 = vadd.f32 0.0, %v775
      %777 = vmatprep.mubr.f32.mxu0 0.0
      %778 = vmatmul.mubr.f32.gmra.mxu0 %v645
      %v779 = vpop.f32.mrf.mxu0
      %v780 = vadd.f32 0.0, %v779
      %v781 = vpop.f32.mrf.mxu0
      %v782 = vadd.f32 0.0, %v781
      %783 = vdwg.mxu0
      %784 = vmatprep.subr.mxu0 0.0
      %785 = vmatpush1.msra.mxu0 0.0
      %786 = vmatprep.subr.mxu0 0.0
      %787 = vmatpush1.msra.mxu0 0.0
      %788 = vmatprep.subr.mxu0 0.0
      %789 = vmatpush1.msra.mxu0 0.0
      %790 = vmatprep.subr.mxu0 0.0
      %791 = vmatpush1.msra.mxu0 0.0
      %792 = vmatprep.subr.mxu0 0.0
      %793 = vmatpush1.msra.mxu0 0.0
      %794 = vmatprep.subr.mxu0 0.0
      %795 = vmatpush1.msra.mxu0 0.0
      %796 = vmatprep.subr.mxu0 0.0
      %797 = vmatpush1.msra.mxu0 0.0
      %798 = vmatprep.subr.mxu0 0.0
      %799 = vmatpush1.msra.mxu0 0.0
      %800 = vmatprep.subr.mxu0 0.0
      %801 = vmatpush1.msra.mxu0 %v610
      %802 = vmatprep.subr.mxu0 0.0
      %803 = vmatpush1.msra.mxu0 %v607
      %804 = vmatprep.subr.mxu0 0.0
      %805 = vmatpush1.msra.mxu0 %v604
      %806 = vmatprep.subr.mxu0 0.0
      %807 = vmatpush1.msra.mxu0 %v601
      %808 = vmatprep.subr.mxu0 0.0
      %809 = vmatpush1.msra.mxu0 %v598
      %810 = vmatprep.subr.mxu0 0.0
      %811 = vmatpush1.msra.mxu0 %v595
      %812 = vmatprep.subr.mxu0 0.0
      %813 = vmatpush1.msra.mxu0 %v592
      %814 = vmatprep.subr.mxu0 0.0
      %815 = vmatpush1.msra.mxu0 %v589
      %816 = vmatprep.subr.mxu0 0.0
      %817 = vmatpush2.msra.mxu0 0.0
      %818 = vmatprep.subr.mxu0 0.0
      %819 = vmatpush2.msra.mxu0 0.0
      %820 = vmatprep.subr.mxu0 0.0
      %821 = vmatpush2.msra.mxu0 0.0
      %822 = vmatprep.subr.mxu0 0.0
      %823 = vmatpush2.msra.mxu0 0.0
      %824 = vmatprep.subr.mxu0 0.0
      %825 = vmatpush2.msra.mxu0 0.0
      %826 = vmatprep.subr.mxu0 0.0
      %827 = vmatpush2.msra.mxu0 0.0
      %828 = vmatprep.subr.mxu0 0.0
      %829 = vmatpush2.msra.mxu0 0.0
      %830 = vmatprep.subr.mxu0 0.0
      %831 = vmatpush2.msra.mxu0 0.0
      %832 = vmatprep.subr.mxu0 0.0
      %833 = vmatpush2.msra.mxu0 0.0
      %834 = vmatprep.subr.mxu0 0.0
      %835 = vmatpush2.msra.mxu0 0.0
      %836 = vmatprep.subr.mxu0 0.0
      %837 = vmatpush2.msra.mxu0 0.0
      %838 = vmatprep.subr.mxu0 0.0
      %839 = vmatpush2.msra.mxu0 0.0
      %840 = vmatprep.subr.mxu0 0.0
      %841 = vmatpush2.msra.mxu0 0.0
      %842 = vmatprep.subr.mxu0 0.0
      %843 = vmatpush2.msra.mxu0 0.0
      %844 = vmatprep.subr.mxu0 0.0
      %845 = vmatpush2.msra.mxu0 0.0
      %846 = vmatprep.subr.mxu0 0.0
      %847 = vmatpush2.msra.mxu0 0.0
      %848 = vmatprep.mubr.f32.mxu0 0.0
      %849 = vmatmul.mubr.f32.gmra.mxu0 %v612
      %v850 = vpop.f32.mrf.mxu0
      %v851 = vadd.f32 0.0, %v850
      %v852 = vpop.f32.mrf.mxu0
      %853 = vmatprep.mubr.f32.mxu0 0.0
      %854 = vmatmul.mubr.f32.gmra.mxu0 %v615
      %v855 = vpop.f32.mrf.mxu0
      %v856 = vadd.f32 0.0, %v855
      %v857 = vpop.f32.mrf.mxu0
      %858 = vmatprep.mubr.f32.mxu0 0.0
      %859 = vmatmul.mubr.f32.gmra.mxu0 %v618
      %v860 = vpop.f32.mrf.mxu0
      %v861 = vadd.f32 0.0, %v860
      %v862 = vpop.f32.mrf.mxu0
      %863 = vmatprep.mubr.f32.mxu0 0.0
      %864 = vmatmul.mubr.f32.gmra.mxu0 %v621
      %v865 = vpop.f32.mrf.mxu0
      %v866 = vadd.f32 0.0, %v865
      %v867 = vpop.f32.mrf.mxu0
      %868 = vmatprep.mubr.f32.mxu0 0.0
      %869 = vmatmul.mubr.f32.gmra.mxu0 %v624
      %v870 = vpop.f32.mrf.mxu0
      %v871 = vadd.f32 0.0, %v870
      %v872 = vpop.f32.mrf.mxu0
      %873 = vmatprep.mubr.f32.mxu0 0.0
      %874 = vmatmul.mubr.f32.gmra.mxu0 %v627
      %v875 = vpop.f32.mrf.mxu0
      %v876 = vadd.f32 0.0, %v875
      %v877 = vpop.f32.mrf.mxu0
      %878 = vmatprep.mubr.f32.mxu0 0.0
      %879 = vmatmul.mubr.f32.gmra.mxu0 %v630
      %v880 = vpop.f32.mrf.mxu0
      %v881 = vadd.f32 0.0, %v880
      %v882 = vpop.f32.mrf.mxu0
      %883 = vmatprep.mubr.f32.mxu0 0.0
      %884 = vmatmul.mubr.f32.gmra.mxu0 %v633
      %v885 = vpop.f32.mrf.mxu0
      %v886 = vadd.f32 0.0, %v885
      %v887 = vpop.f32.mrf.mxu0
      %888 = vmatprep.mubr.f32.mxu0 0.0
      %889 = vmatmul.mubr.f32.gmra.mxu0 %v636
      %v890 = vpop.f32.mrf.mxu0
      %v891 = vadd.f32 0.0, %v890
      %v892 = vpop.f32.mrf.mxu0
      %893 = vmatprep.mubr.f32.mxu0 0.0
      %894 = vmatmul.mubr.f32.gmra.mxu0 %v639
      %v895 = vpop.f32.mrf.mxu0
      %v896 = vadd.f32 0.0, %v895
      %v897 = vpop.f32.mrf.mxu0
      %898 = vmatprep.mubr.f32.mxu0 0.0
      %899 = vmatmul.mubr.f32.gmra.mxu0 %v642
      %v900 = vpop.f32.mrf.mxu0
      %v901 = vadd.f32 0.0, %v900
      %v902 = vpop.f32.mrf.mxu0
      %903 = vmatprep.mubr.f32.mxu0 0.0
      %904 = vmatmul.mubr.f32.gmra.mxu0 %v645
      %v905 = vpop.f32.mrf.mxu0
      %v906 = vadd.f32 0.0, %v905
      %v907 = vpop.f32.mrf.mxu0
      %908 = vdwg.mxu0
      %v910 = vsel %vm524, %v538, 0
      %v913 = vsel %vm524, %v539, 0
      %v916 = vsel %vm524, %v540, 0
      %v919 = vsel %vm524, %v541, 0
      %v922 = vsel %vm524, %v542, 0
      %v925 = vsel %vm524, %v543, 0
      %v928 = vsel %vm524, %v544, 0
      %v931 = vsel %vm524, %v545, 0
      %v934 = vsel %vm524, %v546, 0
      %v937 = vsel %vm524, %v547, 0
      %v940 = vsel %vm524, %v548, 0
      %v943 = vsel %vm524, %v549, 0
      %945 = vmatprep.subr.mxu0 0.0
      %946 = vmatpush1.msra.mxu0 0.0
      %947 = vmatprep.subr.mxu0 0.0
      %948 = vmatpush1.msra.mxu0 0.0
      %949 = vmatprep.subr.mxu0 0.0
      %950 = vmatpush1.msra.mxu0 0.0
      %951 = vmatprep.subr.mxu0 0.0
      %952 = vmatpush1.msra.mxu0 0.0
      %953 = vmatprep.subr.mxu0 0.0
      %954 = vmatpush1.msra.mxu0 0.0
      %955 = vmatprep.subr.mxu0 0.0
      %956 = vmatpush1.msra.mxu0 0.0
      %957 = vmatprep.subr.mxu0 0.0
      %958 = vmatpush1.msra.mxu0 0.0
      %959 = vmatprep.subr.mxu0 0.0
      %960 = vmatpush1.msra.mxu0 0.0
      %961 = vmatprep.subr.mxu0 %v572
      %962 = vmatpush1.msra.mxu0 %v571
      %963 = vmatprep.subr.mxu0 %v569
      %964 = vmatpush1.msra.mxu0 %v568
      %965 = vmatprep.subr.mxu0 %v566
      %966 = vmatpush1.msra.mxu0 %v565
      %967 = vmatprep.subr.mxu0 %v563
      %968 = vmatpush1.msra.mxu0 %v562
      %969 = vmatprep.subr.mxu0 %v560
      %970 = vmatpush1.msra.mxu0 %v559
      %971 = vmatprep.subr.mxu0 %v557
      %972 = vmatpush1.msra.mxu0 %v556
      %973 = vmatprep.subr.mxu0 %v554
      %974 = vmatpush1.msra.mxu0 %v553
      %975 = vmatprep.subr.mxu0 %v551
      %976 = vmatpush1.msra.mxu0 %v550
      %977 = vmatprep.subr.mxu0 0.0
      %978 = vmatpush2.msra.mxu0 0.0
      %979 = vmatprep.subr.mxu0 0.0
      %980 = vmatpush2.msra.mxu0 0.0
      %981 = vmatprep.subr.mxu0 0.0
      %982 = vmatpush2.msra.mxu0 0.0
      %983 = vmatprep.subr.mxu0 0.0
      %984 = vmatpush2.msra.mxu0 0.0
      %985 = vmatprep.subr.mxu0 0.0
      %986 = vmatpush2.msra.mxu0 0.0
      %987 = vmatprep.subr.mxu0 0.0
      %988 = vmatpush2.msra.mxu0 0.0
      %989 = vmatprep.subr.mxu0 0.0
      %990 = vmatpush2.msra.mxu0 0.0
      %991 = vmatprep.subr.mxu0 0.0
      %992 = vmatpush2.msra.mxu0 0.0
      %993 = vmatprep.subr.mxu0 0.0
      %994 = vmatpush2.msra.mxu0 0.0
      %995 = vmatprep.subr.mxu0 0.0
      %996 = vmatpush2.msra.mxu0 0.0
      %997 = vmatprep.subr.mxu0 0.0
      %998 = vmatpush2.msra.mxu0 0.0
      %999 = vmatprep.subr.mxu0 0.0
      %1000 = vmatpush2.msra.mxu0 0.0
      %1001 = vmatprep.subr.mxu0 0.0
      %1002 = vmatpush2.msra.mxu0 0.0
      %1003 = vmatprep.subr.mxu0 0.0
      %1004 = vmatpush2.msra.mxu0 0.0
      %1005 = vmatprep.subr.mxu0 0.0
      %1006 = vmatpush2.msra.mxu0 0.0
      %1007 = vmatprep.subr.mxu0 0.0
      %1008 = vmatpush2.msra.mxu0 0.0
      %1009 = vmatprep.mubr.f32.mxu0 0.0
      %1010 = vmatmul.mubr.f32.gmra.mxu0 %v910
      %v1011 = vpop.f32.mrf.mxu0
      %v1012 = vadd.f32 %v714, %v1011
      %v1013 = vpop.f32.mrf.mxu0
      %v1014 = vadd.f32 %v716, %v1013
      %1015 = vmatprep.mubr.f32.mxu0 0.0
      %1016 = vmatmul.mubr.f32.gmra.mxu0 %v913
      %v1017 = vpop.f32.mrf.mxu0
      %v1018 = vadd.f32 %v720, %v1017
      %v1019 = vpop.f32.mrf.mxu0
      %v1020 = vadd.f32 %v722, %v1019
      %1021 = vmatprep.mubr.f32.mxu0 0.0
      %1022 = vmatmul.mubr.f32.gmra.mxu0 %v916
      %v1023 = vpop.f32.mrf.mxu0
      %v1024 = vadd.f32 %v726, %v1023
      %v1025 = vpop.f32.mrf.mxu0
      %v1026 = vadd.f32 %v728, %v1025
      %1027 = vmatprep.mubr.f32.mxu0 0.0
      %1028 = vmatmul.mubr.f32.gmra.mxu0 %v919
      %v1029 = vpop.f32.mrf.mxu0
      %v1030 = vadd.f32 %v732, %v1029
      %v1031 = vpop.f32.mrf.mxu0
      %v1032 = vadd.f32 %v734, %v1031
      %1033 = vmatprep.mubr.f32.mxu0 0.0
      %1034 = vmatmul.mubr.f32.gmra.mxu0 %v922
      %v1035 = vpop.f32.mrf.mxu0
      %v1036 = vadd.f32 %v738, %v1035
      %v1037 = vpop.f32.mrf.mxu0
      %v1038 = vadd.f32 %v740, %v1037
      %1039 = vmatprep.mubr.f32.mxu0 0.0
      %1040 = vmatmul.mubr.f32.gmra.mxu0 %v925
      %v1041 = vpop.f32.mrf.mxu0
      %v1042 = vadd.f32 %v744, %v1041
      %v1043 = vpop.f32.mrf.mxu0
      %v1044 = vadd.f32 %v746, %v1043
      %1045 = vmatprep.mubr.f32.mxu0 0.0
      %1046 = vmatmul.mubr.f32.gmra.mxu0 %v928
      %v1047 = vpop.f32.mrf.mxu0
      %v1048 = vadd.f32 %v750, %v1047
      %v1049 = vpop.f32.mrf.mxu0
      %v1050 = vadd.f32 %v752, %v1049
      %1051 = vmatprep.mubr.f32.mxu0 0.0
      %1052 = vmatmul.mubr.f32.gmra.mxu0 %v931
      %v1053 = vpop.f32.mrf.mxu0
      %v1054 = vadd.f32 %v756, %v1053
      %v1055 = vpop.f32.mrf.mxu0
      %v1056 = vadd.f32 %v758, %v1055
      %1057 = vmatprep.mubr.f32.mxu0 0.0
      %1058 = vmatmul.mubr.f32.gmra.mxu0 %v934
      %v1059 = vpop.f32.mrf.mxu0
      %v1060 = vadd.f32 %v762, %v1059
      %v1061 = vpop.f32.mrf.mxu0
      %v1062 = vadd.f32 %v764, %v1061
      %1063 = vmatprep.mubr.f32.mxu0 0.0
      %1064 = vmatmul.mubr.f32.gmra.mxu0 %v937
      %v1065 = vpop.f32.mrf.mxu0
      %v1066 = vadd.f32 %v768, %v1065
      %v1067 = vpop.f32.mrf.mxu0
      %v1068 = vadd.f32 %v770, %v1067
      %1069 = vmatprep.mubr.f32.mxu0 0.0
      %1070 = vmatmul.mubr.f32.gmra.mxu0 %v940
      %v1071 = vpop.f32.mrf.mxu0
      %v1072 = vadd.f32 %v774, %v1071
      %v1073 = vpop.f32.mrf.mxu0
      %v1074 = vadd.f32 %v776, %v1073
      %1075 = vmatprep.mubr.f32.mxu0 0.0
      %1076 = vmatmul.mubr.f32.gmra.mxu0 %v943
      %v1077 = vpop.f32.mrf.mxu0
      %v1078 = vadd.f32 %v780, %v1077
      %v1079 = vpop.f32.mrf.mxu0
      %v1080 = vadd.f32 %v782, %v1079
      %1081 = vdwg.mxu0
      %1082 = vmatprep.subr.mxu0 0.0
      %1083 = vmatpush1.msra.mxu0 0.0
      %1084 = vmatprep.subr.mxu0 0.0
      %1085 = vmatpush1.msra.mxu0 0.0
      %1086 = vmatprep.subr.mxu0 0.0
      %1087 = vmatpush1.msra.mxu0 0.0
      %1088 = vmatprep.subr.mxu0 0.0
      %1089 = vmatpush1.msra.mxu0 0.0
      %1090 = vmatprep.subr.mxu0 0.0
      %1091 = vmatpush1.msra.mxu0 0.0
      %1092 = vmatprep.subr.mxu0 0.0
      %1093 = vmatpush1.msra.mxu0 0.0
      %1094 = vmatprep.subr.mxu0 0.0
      %1095 = vmatpush1.msra.mxu0 0.0
      %1096 = vmatprep.subr.mxu0 0.0
      %1097 = vmatpush1.msra.mxu0 0.0
      %1098 = vmatprep.subr.mxu0 0.0
      %1099 = vmatpush1.msra.mxu0 %v573
      %1100 = vmatprep.subr.mxu0 0.0
      %1101 = vmatpush1.msra.mxu0 %v570
      %1102 = vmatprep.subr.mxu0 0.0
      %1103 = vmatpush1.msra.mxu0 %v567
      %1104 = vmatprep.subr.mxu0 0.0
      %1105 = vmatpush1.msra.mxu0 %v564
      %1106 = vmatprep.subr.mxu0 0.0
      %1107 = vmatpush1.msra.mxu0 %v561
      %1108 = vmatprep.subr.mxu0 0.0
      %1109 = vmatpush1.msra.mxu0 %v558
      %1110 = vmatprep.subr.mxu0 0.0
      %1111 = vmatpush1.msra.mxu0 %v555
      %1112 = vmatprep.subr.mxu0 0.0
      %1113 = vmatpush1.msra.mxu0 %v552
      %1114 = vmatprep.subr.mxu0 0.0
      %1115 = vmatpush2.msra.mxu0 0.0
      %1116 = vmatprep.subr.mxu0 0.0
      %1117 = vmatpush2.msra.mxu0 0.0
      %1118 = vmatprep.subr.mxu0 0.0
      %1119 = vmatpush2.msra.mxu0 0.0
      %1120 = vmatprep.subr.mxu0 0.0
      %1121 = vmatpush2.msra.mxu0 0.0
      %1122 = vmatprep.subr.mxu0 0.0
      %1123 = vmatpush2.msra.mxu0 0.0
      %1124 = vmatprep.subr.mxu0 0.0
      %1125 = vmatpush2.msra.mxu0 0.0
      %1126 = vmatprep.subr.mxu0 0.0
      %1127 = vmatpush2.msra.mxu0 0.0
      %1128 = vmatprep.subr.mxu0 0.0
      %1129 = vmatpush2.msra.mxu0 0.0
      %1130 = vmatprep.subr.mxu0 0.0
      %1131 = vmatpush2.msra.mxu0 0.0
      %1132 = vmatprep.subr.mxu0 0.0
      %1133 = vmatpush2.msra.mxu0 0.0
      %1134 = vmatprep.subr.mxu0 0.0
      %1135 = vmatpush2.msra.mxu0 0.0
      %1136 = vmatprep.subr.mxu0 0.0
      %1137 = vmatpush2.msra.mxu0 0.0
      %1138 = vmatprep.subr.mxu0 0.0
      %1139 = vmatpush2.msra.mxu0 0.0
      %1140 = vmatprep.subr.mxu0 0.0
      %1141 = vmatpush2.msra.mxu0 0.0
      %1142 = vmatprep.subr.mxu0 0.0
      %1143 = vmatpush2.msra.mxu0 0.0
      %1144 = vmatprep.subr.mxu0 0.0
      %1145 = vmatpush2.msra.mxu0 0.0
      %1146 = vmatprep.mubr.f32.mxu0 0.0
      %1147 = vmatmul.mubr.f32.gmra.mxu0 %v910
      %v1148 = vpop.f32.mrf.mxu0
      %v1149 = vadd.f32 %v851, %v1148
      %v1150 = vpop.f32.mrf.mxu0
      %1151 = vmatprep.mubr.f32.mxu0 0.0
      %1152 = vmatmul.mubr.f32.gmra.mxu0 %v913
      %v1153 = vpop.f32.mrf.mxu0
      %v1154 = vadd.f32 %v856, %v1153
      %v1155 = vpop.f32.mrf.mxu0
      %1156 = vmatprep.mubr.f32.mxu0 0.0
      %1157 = vmatmul.mubr.f32.gmra.mxu0 %v916
      %v1158 = vpop.f32.mrf.mxu0
      %v1159 = vadd.f32 %v861, %v1158
      %v1160 = vpop.f32.mrf.mxu0
      %1161 = vmatprep.mubr.f32.mxu0 0.0
      %1162 = vmatmul.mubr.f32.gmra.mxu0 %v919
      %v1163 = vpop.f32.mrf.mxu0
      %v1164 = vadd.f32 %v866, %v1163
      %v1165 = vpop.f32.mrf.mxu0
      %1166 = vmatprep.mubr.f32.mxu0 0.0
      %1167 = vmatmul.mubr.f32.gmra.mxu0 %v922
      %v1168 = vpop.f32.mrf.mxu0
      %v1169 = vadd.f32 %v871, %v1168
      %v1170 = vpop.f32.mrf.mxu0
      %1171 = vmatprep.mubr.f32.mxu0 0.0
      %1172 = vmatmul.mubr.f32.gmra.mxu0 %v925
      %v1173 = vpop.f32.mrf.mxu0
      %v1174 = vadd.f32 %v876, %v1173
      %v1175 = vpop.f32.mrf.mxu0
      %1176 = vmatprep.mubr.f32.mxu0 0.0
      %1177 = vmatmul.mubr.f32.gmra.mxu0 %v928
      %v1178 = vpop.f32.mrf.mxu0
      %v1179 = vadd.f32 %v881, %v1178
      %v1180 = vpop.f32.mrf.mxu0
      %1181 = vmatprep.mubr.f32.mxu0 0.0
      %1182 = vmatmul.mubr.f32.gmra.mxu0 %v931
      %v1183 = vpop.f32.mrf.mxu0
      %v1184 = vadd.f32 %v886, %v1183
      %v1185 = vpop.f32.mrf.mxu0
      %1186 = vmatprep.mubr.f32.mxu0 0.0
      %1187 = vmatmul.mubr.f32.gmra.mxu0 %v934
      %v1188 = vpop.f32.mrf.mxu0
      %v1189 = vadd.f32 %v891, %v1188
      %v1190 = vpop.f32.mrf.mxu0
      %1191 = vmatprep.mubr.f32.mxu0 0.0
      %1192 = vmatmul.mubr.f32.gmra.mxu0 %v937
      %v1193 = vpop.f32.mrf.mxu0
      %v1194 = vadd.f32 %v896, %v1193
      %v1195 = vpop.f32.mrf.mxu0
      %1196 = vmatprep.mubr.f32.mxu0 0.0
      %1197 = vmatmul.mubr.f32.gmra.mxu0 %v940
      %v1198 = vpop.f32.mrf.mxu0
      %v1199 = vadd.f32 %v901, %v1198
      %v1200 = vpop.f32.mrf.mxu0
      %1201 = vmatprep.mubr.f32.mxu0 0.0
      %1202 = vmatmul.mubr.f32.gmra.mxu0 %v943
      %v1203 = vpop.f32.mrf.mxu0
      %v1204 = vadd.f32 %v906, %v1203
      %v1205 = vpop.f32.mrf.mxu0
      %1206 = vdwg.mxu0
      %v1207 = vld [vmem:[#allocation2 + $0x3] sm:$0xff]
      %v1208 = vld [vmem:[#allocation2 + $0xb] sm:$0xff]
      %v1209 = vld [vmem:[#allocation2 + $0x13] sm:$0xff]
      %v1210 = vld [vmem:[#allocation2 + $0x1b] sm:$0xff]
      %v1211 = vld [vmem:[#allocation2 + $0x23] sm:$0xff]
      %v1212 = vld [vmem:[#allocation2 + $0x2b] sm:$0xff]
      %v1213 = vld [vmem:[#allocation2 + $0x33] sm:$0xff]
      %v1214 = vld [vmem:[#allocation2 + $0x3b] sm:$0xff]
      %v1215 = vld [vmem:[#allocation2 + $0x43] sm:$0xff]
      %v1216 = vld [vmem:[#allocation2 + $0x4b] sm:$0xff]
      %v1217 = vld [vmem:[#allocation2 + $0x53] sm:$0xff]
      %v1218 = vld [vmem:[#allocation2 + $0x5b] sm:$0xff]
      %s1219 = scalar_lea.vmem %s2, 384
      %v1220 = vld [vmem:[%s1219] sm:$0xff]
      %v1221 = vld [vmem:[%s1219 + $0x8] sm:$0xff]
      %v1222 = vld [vmem:[%s1219 + $0x10] sm:$0xff]
      %v1223 = vld [vmem:[%s1219 + $0x18] sm:$0xff]
      %v1224 = vld [vmem:[%s1219 + $0x20] sm:$0xff]
      %v1225 = vld [vmem:[%s1219 + $0x28] sm:$0xff]
      %v1226 = vld [vmem:[%s1219 + $0x30] sm:$0xff]
      %v1227 = vld [vmem:[%s1219 + $0x38] sm:$0xff]
      %v1228 = vld [vmem:[%s1219 + $0x40] sm:$0xff]
      %v1229 = vld [vmem:[%s1219 + $0x48] sm:$0xff]
      %v1230 = vld [vmem:[%s1219 + $0x50] sm:$0xff]
      %v1231 = vld [vmem:[%s1219 + $0x58] sm:$0xff]
      %v1232 = vld [vmem:[%s1219 + $0x60] sm:$0xff]
      %v1233 = vld [vmem:[%s1219 + $0x68] sm:$0xff]
      %v1234 = vld [vmem:[%s1219 + $0x70] sm:$0xff]
      %v1235 = vld [vmem:[%s1219 + $0x78] sm:$0xff]
      %v1236 = vld [vmem:[%s1219 + $0x80] sm:$0xff]
      %v1237 = vld [vmem:[%s1219 + $0x88] sm:$0xff]
      %v1238 = vld [vmem:[%s1219 + $0x90] sm:$0xff]
      %v1239 = vld [vmem:[%s1219 + $0x98] sm:$0xff]
      %v1240 = vld [vmem:[%s1219 + $0xa0] sm:$0xff]
      %v1241 = vld [vmem:[%s1219 + $0xa8] sm:$0xff]
      %v1242 = vld [vmem:[%s1219 + $0xb0] sm:$0xff]
      %v1243 = vld [vmem:[%s1219 + $0xb8] sm:$0xff]
      %v1245 = vsel %vm524, %v1207, 0
      %v1248 = vsel %vm524, %v1208, 0
      %v1251 = vsel %vm524, %v1209, 0
      %v1254 = vsel %vm524, %v1210, 0
      %v1257 = vsel %vm524, %v1211, 0
      %v1260 = vsel %vm524, %v1212, 0
      %v1263 = vsel %vm524, %v1213, 0
      %v1266 = vsel %vm524, %v1214, 0
      %v1269 = vsel %vm524, %v1215, 0
      %v1272 = vsel %vm524, %v1216, 0
      %v1275 = vsel %vm524, %v1217, 0
      %v1278 = vsel %vm524, %v1218, 0
      %1280 = vmatprep.subr.mxu0 0.0
      %1281 = vmatpush1.msra.mxu0 0.0
      %1282 = vmatprep.subr.mxu0 0.0
      %1283 = vmatpush1.msra.mxu0 0.0
      %1284 = vmatprep.subr.mxu0 0.0
      %1285 = vmatpush1.msra.mxu0 0.0
      %1286 = vmatprep.subr.mxu0 0.0
      %1287 = vmatpush1.msra.mxu0 0.0
      %1288 = vmatprep.subr.mxu0 0.0
      %1289 = vmatpush1.msra.mxu0 0.0
      %1290 = vmatprep.subr.mxu0 0.0
      %1291 = vmatpush1.msra.mxu0 0.0
      %1292 = vmatprep.subr.mxu0 0.0
      %1293 = vmatpush1.msra.mxu0 0.0
      %1294 = vmatprep.subr.mxu0 0.0
      %1295 = vmatpush1.msra.mxu0 0.0
      %1296 = vmatprep.subr.mxu0 %v1242
      %1297 = vmatpush1.msra.mxu0 %v1241
      %1298 = vmatprep.subr.mxu0 %v1239
      %1299 = vmatpush1.msra.mxu0 %v1238
      %1300 = vmatprep.subr.mxu0 %v1236
      %1301 = vmatpush1.msra.mxu0 %v1235
      %1302 = vmatprep.subr.mxu0 %v1233
      %1303 = vmatpush1.msra.mxu0 %v1232
      %1304 = vmatprep.subr.mxu0 %v1230
      %1305 = vmatpush1.msra.mxu0 %v1229
      %1306 = vmatprep.subr.mxu0 %v1227
      %1307 = vmatpush1.msra.mxu0 %v1226
      %1308 = vmatprep.subr.mxu0 %v1224
      %1309 = vmatpush1.msra.mxu0 %v1223
      %1310 = vmatprep.subr.mxu0 %v1221
      %1311 = vmatpush1.msra.mxu0 %v1220
      %1312 = vmatprep.subr.mxu0 0.0
      %1313 = vmatpush2.msra.mxu0 0.0
      %1314 = vmatprep.subr.mxu0 0.0
      %1315 = vmatpush2.msra.mxu0 0.0
      %1316 = vmatprep.subr.mxu0 0.0
      %1317 = vmatpush2.msra.mxu0 0.0
      %1318 = vmatprep.subr.mxu0 0.0
      %1319 = vmatpush2.msra.mxu0 0.0
      %1320 = vmatprep.subr.mxu0 0.0
      %1321 = vmatpush2.msra.mxu0 0.0
      %1322 = vmatprep.subr.mxu0 0.0
      %1323 = vmatpush2.msra.mxu0 0.0
      %1324 = vmatprep.subr.mxu0 0.0
      %1325 = vmatpush2.msra.mxu0 0.0
      %1326 = vmatprep.subr.mxu0 0.0
      %1327 = vmatpush2.msra.mxu0 0.0
      %1328 = vmatprep.subr.mxu0 0.0
      %1329 = vmatpush2.msra.mxu0 0.0
      %1330 = vmatprep.subr.mxu0 0.0
      %1331 = vmatpush2.msra.mxu0 0.0
      %1332 = vmatprep.subr.mxu0 0.0
      %1333 = vmatpush2.msra.mxu0 0.0
      %1334 = vmatprep.subr.mxu0 0.0
      %1335 = vmatpush2.msra.mxu0 0.0
      %1336 = vmatprep.subr.mxu0 0.0
      %1337 = vmatpush2.msra.mxu0 0.0
      %1338 = vmatprep.subr.mxu0 0.0
      %1339 = vmatpush2.msra.mxu0 0.0
      %1340 = vmatprep.subr.mxu0 0.0
      %1341 = vmatpush2.msra.mxu0 0.0
      %1342 = vmatprep.subr.mxu0 0.0
      %1343 = vmatpush2.msra.mxu0 0.0
      %1344 = vmatprep.mubr.f32.mxu0 0.0
      %1345 = vmatmul.mubr.f32.gmra.mxu0 %v1245
      %v1346 = vpop.f32.mrf.mxu0
      %v1347 = vadd.f32 0.0, %v1346
      %v1348 = vpop.f32.mrf.mxu0
      %v1349 = vadd.f32 0.0, %v1348
      %1350 = vmatprep.mubr.f32.mxu0 0.0
      %1351 = vmatmul.mubr.f32.gmra.mxu0 %v1248
      %v1352 = vpop.f32.mrf.mxu0
      %v1353 = vadd.f32 0.0, %v1352
      %v1354 = vpop.f32.mrf.mxu0
      %v1355 = vadd.f32 0.0, %v1354
      %1356 = vmatprep.mubr.f32.mxu0 0.0
      %1357 = vmatmul.mubr.f32.gmra.mxu0 %v1251
      %v1358 = vpop.f32.mrf.mxu0
      %v1359 = vadd.f32 0.0, %v1358
      %v1360 = vpop.f32.mrf.mxu0
      %v1361 = vadd.f32 0.0, %v1360
      %1362 = vmatprep.mubr.f32.mxu0 0.0
      %1363 = vmatmul.mubr.f32.gmra.mxu0 %v1254
      %v1364 = vpop.f32.mrf.mxu0
      %v1365 = vadd.f32 0.0, %v1364
      %v1366 = vpop.f32.mrf.mxu0
      %v1367 = vadd.f32 0.0, %v1366
      %1368 = vmatprep.mubr.f32.mxu0 0.0
      %1369 = vmatmul.mubr.f32.gmra.mxu0 %v1257
      %v1370 = vpop.f32.mrf.mxu0
      %v1371 = vadd.f32 0.0, %v1370
      %v1372 = vpop.f32.mrf.mxu0
      %v1373 = vadd.f32 0.0, %v1372
      %1374 = vmatprep.mubr.f32.mxu0 0.0
      %1375 = vmatmul.mubr.f32.gmra.mxu0 %v1260
      %v1376 = vpop.f32.mrf.mxu0
      %v1377 = vadd.f32 0.0, %v1376
      %v1378 = vpop.f32.mrf.mxu0
      %v1379 = vadd.f32 0.0, %v1378
      %1380 = vmatprep.mubr.f32.mxu0 0.0
      %1381 = vmatmul.mubr.f32.gmra.mxu0 %v1263
      %v1382 = vpop.f32.mrf.mxu0
      %v1383 = vadd.f32 0.0, %v1382
      %v1384 = vpop.f32.mrf.mxu0
      %v1385 = vadd.f32 0.0, %v1384
      %1386 = vmatprep.mubr.f32.mxu0 0.0
      %1387 = vmatmul.mubr.f32.gmra.mxu0 %v1266
      %v1388 = vpop.f32.mrf.mxu0
      %v1389 = vadd.f32 0.0, %v1388
      %v1390 = vpop.f32.mrf.mxu0
      %v1391 = vadd.f32 0.0, %v1390
      %1392 = vmatprep.mubr.f32.mxu0 0.0
      %1393 = vmatmul.mubr.f32.gmra.mxu0 %v1269
      %v1394 = vpop.f32.mrf.mxu0
      %v1395 = vadd.f32 0.0, %v1394
      %v1396 = vpop.f32.mrf.mxu0
      %v1397 = vadd.f32 0.0, %v1396
      %1398 = vmatprep.mubr.f32.mxu0 0.0
      %1399 = vmatmul.mubr.f32.gmra.mxu0 %v1272
      %v1400 = vpop.f32.mrf.mxu0
      %v1401 = vadd.f32 0.0, %v1400
      %v1402 = vpop.f32.mrf.mxu0
      %v1403 = vadd.f32 0.0, %v1402
      %1404 = vmatprep.mubr.f32.mxu0 0.0
      %1405 = vmatmul.mubr.f32.gmra.mxu0 %v1275
      %v1406 = vpop.f32.mrf.mxu0
      %v1407 = vadd.f32 0.0, %v1406
      %v1408 = vpop.f32.mrf.mxu0
      %v1409 = vadd.f32 0.0, %v1408
      %1410 = vmatprep.mubr.f32.mxu0 0.0
      %1411 = vmatmul.mubr.f32.gmra.mxu0 %v1278
      %v1412 = vpop.f32.mrf.mxu0
      %v1413 = vadd.f32 0.0, %v1412
      %v1414 = vpop.f32.mrf.mxu0
      %v1415 = vadd.f32 0.0, %v1414
      %1416 = vdwg.mxu0
      %1417 = vmatprep.subr.mxu0 0.0
      %1418 = vmatpush1.msra.mxu0 0.0
      %1419 = vmatprep.subr.mxu0 0.0
      %1420 = vmatpush1.msra.mxu0 0.0
      %1421 = vmatprep.subr.mxu0 0.0
      %1422 = vmatpush1.msra.mxu0 0.0
      %1423 = vmatprep.subr.mxu0 0.0
      %1424 = vmatpush1.msra.mxu0 0.0
      %1425 = vmatprep.subr.mxu0 0.0
      %1426 = vmatpush1.msra.mxu0 0.0
      %1427 = vmatprep.subr.mxu0 0.0
      %1428 = vmatpush1.msra.mxu0 0.0
      %1429 = vmatprep.subr.mxu0 0.0
      %1430 = vmatpush1.msra.mxu0 0.0
      %1431 = vmatprep.subr.mxu0 0.0
      %1432 = vmatpush1.msra.mxu0 0.0
      %1433 = vmatprep.subr.mxu0 0.0
      %1434 = vmatpush1.msra.mxu0 %v1243
      %1435 = vmatprep.subr.mxu0 0.0
      %1436 = vmatpush1.msra.mxu0 %v1240
      %1437 = vmatprep.subr.mxu0 0.0
      %1438 = vmatpush1.msra.mxu0 %v1237
      %1439 = vmatprep.subr.mxu0 0.0
      %1440 = vmatpush1.msra.mxu0 %v1234
      %1441 = vmatprep.subr.mxu0 0.0
      %1442 = vmatpush1.msra.mxu0 %v1231
      %1443 = vmatprep.subr.mxu0 0.0
      %1444 = vmatpush1.msra.mxu0 %v1228
      %1445 = vmatprep.subr.mxu0 0.0
      %1446 = vmatpush1.msra.mxu0 %v1225
      %1447 = vmatprep.subr.mxu0 0.0
      %1448 = vmatpush1.msra.mxu0 %v1222
      %1449 = vmatprep.subr.mxu0 0.0
      %1450 = vmatpush2.msra.mxu0 0.0
      %1451 = vmatprep.subr.mxu0 0.0
      %1452 = vmatpush2.msra.mxu0 0.0
      %1453 = vmatprep.subr.mxu0 0.0
      %1454 = vmatpush2.msra.mxu0 0.0
      %1455 = vmatprep.subr.mxu0 0.0
      %1456 = vmatpush2.msra.mxu0 0.0
      %1457 = vmatprep.subr.mxu0 0.0
      %1458 = vmatpush2.msra.mxu0 0.0
      %1459 = vmatprep.subr.mxu0 0.0
      %1460 = vmatpush2.msra.mxu0 0.0
      %1461 = vmatprep.subr.mxu0 0.0
      %1462 = vmatpush2.msra.mxu0 0.0
      %1463 = vmatprep.subr.mxu0 0.0
      %1464 = vmatpush2.msra.mxu0 0.0
      %1465 = vmatprep.subr.mxu0 0.0
      %1466 = vmatpush2.msra.mxu0 0.0
      %1467 = vmatprep.subr.mxu0 0.0
      %1468 = vmatpush2.msra.mxu0 0.0
      %1469 = vmatprep.subr.mxu0 0.0
      %1470 = vmatpush2.msra.mxu0 0.0
      %1471 = vmatprep.subr.mxu0 0.0
      %1472 = vmatpush2.msra.mxu0 0.0
      %1473 = vmatprep.subr.mxu0 0.0
      %1474 = vmatpush2.msra.mxu0 0.0
      %1475 = vmatprep.subr.mxu0 0.0
      %1476 = vmatpush2.msra.mxu0 0.0
      %1477 = vmatprep.subr.mxu0 0.0
      %1478 = vmatpush2.msra.mxu0 0.0
      %1479 = vmatprep.subr.mxu0 0.0
      %1480 = vmatpush2.msra.mxu0 0.0
      %1481 = vmatprep.mubr.f32.mxu0 0.0
      %1482 = vmatmul.mubr.f32.gmra.mxu0 %v1245
      %v1483 = vpop.f32.mrf.mxu0
      %v1484 = vadd.f32 0.0, %v1483
      %v1485 = vpop.f32.mrf.mxu0
      %1486 = vmatprep.mubr.f32.mxu0 0.0
      %1487 = vmatmul.mubr.f32.gmra.mxu0 %v1248
      %v1488 = vpop.f32.mrf.mxu0
      %v1489 = vadd.f32 0.0, %v1488
      %v1490 = vpop.f32.mrf.mxu0
      %1491 = vmatprep.mubr.f32.mxu0 0.0
      %1492 = vmatmul.mubr.f32.gmra.mxu0 %v1251
      %v1493 = vpop.f32.mrf.mxu0
      %v1494 = vadd.f32 0.0, %v1493
      %v1495 = vpop.f32.mrf.mxu0
      %1496 = vmatprep.mubr.f32.mxu0 0.0
      %1497 = vmatmul.mubr.f32.gmra.mxu0 %v1254
      %v1498 = vpop.f32.mrf.mxu0
      %v1499 = vadd.f32 0.0, %v1498
      %v1500 = vpop.f32.mrf.mxu0
      %1501 = vmatprep.mubr.f32.mxu0 0.0
      %1502 = vmatmul.mubr.f32.gmra.mxu0 %v1257
      %v1503 = vpop.f32.mrf.mxu0
      %v1504 = vadd.f32 0.0, %v1503
      %v1505 = vpop.f32.mrf.mxu0
      %1506 = vmatprep.mubr.f32.mxu0 0.0
      %1507 = vmatmul.mubr.f32.gmra.mxu0 %v1260
      %v1508 = vpop.f32.mrf.mxu0
      %v1509 = vadd.f32 0.0, %v1508
      %v1510 = vpop.f32.mrf.mxu0
      %1511 = vmatprep.mubr.f32.mxu0 0.0
      %1512 = vmatmul.mubr.f32.gmra.mxu0 %v1263
      %v1513 = vpop.f32.mrf.mxu0
      %v1514 = vadd.f32 0.0, %v1513
      %v1515 = vpop.f32.mrf.mxu0
      %1516 = vmatprep.mubr.f32.mxu0 0.0
      %1517 = vmatmul.mubr.f32.gmra.mxu0 %v1266
      %v1518 = vpop.f32.mrf.mxu0
      %v1519 = vadd.f32 0.0, %v1518
      %v1520 = vpop.f32.mrf.mxu0
      %1521 = vmatprep.mubr.f32.mxu0 0.0
      %1522 = vmatmul.mubr.f32.gmra.mxu0 %v1269
      %v1523 = vpop.f32.mrf.mxu0
      %v1524 = vadd.f32 0.0, %v1523
      %v1525 = vpop.f32.mrf.mxu0
      %1526 = vmatprep.mubr.f32.mxu0 0.0
      %1527 = vmatmul.mubr.f32.gmra.mxu0 %v1272
      %v1528 = vpop.f32.mrf.mxu0
      %v1529 = vadd.f32 0.0, %v1528
      %v1530 = vpop.f32.mrf.mxu0
      %1531 = vmatprep.mubr.f32.mxu0 0.0
      %1532 = vmatmul.mubr.f32.gmra.mxu0 %v1275
      %v1533 = vpop.f32.mrf.mxu0
      %v1534 = vadd.f32 0.0, %v1533
      %v1535 = vpop.f32.mrf.mxu0
      %1536 = vmatprep.mubr.f32.mxu0 0.0
      %1537 = vmatmul.mubr.f32.gmra.mxu0 %v1278
      %v1538 = vpop.f32.mrf.mxu0
      %v1539 = vadd.f32 0.0, %v1538
      %v1540 = vpop.f32.mrf.mxu0
      %1541 = vdwg.mxu0
      %v1542 = vadd.f32 %v1012, %v1347
      %v1543 = vadd.f32 %v1014, %v1349
      %v1544 = vadd.f32 %v1149, %v1484
      %v1545 = vadd.f32 %v1018, %v1353
      %v1546 = vadd.f32 %v1020, %v1355
      %v1547 = vadd.f32 %v1154, %v1489
      %v1548 = vadd.f32 %v1024, %v1359
      %v1549 = vadd.f32 %v1026, %v1361
      %v1550 = vadd.f32 %v1159, %v1494
      %v1551 = vadd.f32 %v1030, %v1365
      %v1552 = vadd.f32 %v1032, %v1367
      %v1553 = vadd.f32 %v1164, %v1499
      %v1554 = vadd.f32 %v1036, %v1371
      %v1555 = vadd.f32 %v1038, %v1373
      %v1556 = vadd.f32 %v1169, %v1504
      %v1557 = vadd.f32 %v1042, %v1377
      %v1558 = vadd.f32 %v1044, %v1379
      %v1559 = vadd.f32 %v1174, %v1509
      %v1560 = vadd.f32 %v1048, %v1383
      %v1561 = vadd.f32 %v1050, %v1385
      %v1562 = vadd.f32 %v1179, %v1514
      %v1563 = vadd.f32 %v1054, %v1389
      %v1564 = vadd.f32 %v1056, %v1391
      %v1565 = vadd.f32 %v1184, %v1519
      %v1566 = vadd.f32 %v1060, %v1395
      %v1567 = vadd.f32 %v1062, %v1397
      %v1568 = vadd.f32 %v1189, %v1524
      %v1569 = vadd.f32 %v1066, %v1401
      %v1570 = vadd.f32 %v1068, %v1403
      %v1571 = vadd.f32 %v1194, %v1529
      %v1572 = vadd.f32 %v1072, %v1407
      %v1573 = vadd.f32 %v1074, %v1409
      %v1574 = vadd.f32 %v1199, %v1534
      %v1575 = vadd.f32 %v1078, %v1413
      %v1576 = vadd.f32 %v1080, %v1415
      %v1577 = vadd.f32 %v1204, %v1539
      %v1578 = vld [vmem:[#allocation2 + $0x4] sm:$0xff]
      %v1579 = vld [vmem:[#allocation2 + $0xc] sm:$0xff]
      %v1580 = vld [vmem:[#allocation2 + $0x14] sm:$0xff]
      %v1581 = vld [vmem:[#allocation2 + $0x1c] sm:$0xff]
      %v1582 = vld [vmem:[#allocation2 + $0x24] sm:$0xff]
      %v1583 = vld [vmem:[#allocation2 + $0x2c] sm:$0xff]
      %v1584 = vld [vmem:[#allocation2 + $0x34] sm:$0xff]
      %v1585 = vld [vmem:[#allocation2 + $0x3c] sm:$0xff]
      %v1586 = vld [vmem:[#allocation2 + $0x44] sm:$0xff]
      %v1587 = vld [vmem:[#allocation2 + $0x4c] sm:$0xff]
      %v1588 = vld [vmem:[#allocation2 + $0x54] sm:$0xff]
      %v1589 = vld [vmem:[#allocation2 + $0x5c] sm:$0xff]
      %s1590 = scalar_lea.vmem %s2, 576
      %v1591 = vld [vmem:[%s1590] sm:$0xff]
      %v1592 = vld [vmem:[%s1590 + $0x8] sm:$0xff]
      %v1593 = vld [vmem:[%s1590 + $0x10] sm:$0xff]
      %v1594 = vld [vmem:[%s1590 + $0x18] sm:$0xff]
      %v1595 = vld [vmem:[%s1590 + $0x20] sm:$0xff]
      %v1596 = vld [vmem:[%s1590 + $0x28] sm:$0xff]
      %v1597 = vld [vmem:[%s1590 + $0x30] sm:$0xff]
      %v1598 = vld [vmem:[%s1590 + $0x38] sm:$0xff]
      %v1599 = vld [vmem:[%s1590 + $0x40] sm:$0xff]
      %v1600 = vld [vmem:[%s1590 + $0x48] sm:$0xff]
      %v1601 = vld [vmem:[%s1590 + $0x50] sm:$0xff]
      %v1602 = vld [vmem:[%s1590 + $0x58] sm:$0xff]
      %v1603 = vld [vmem:[%s1590 + $0x60] sm:$0xff]
      %v1604 = vld [vmem:[%s1590 + $0x68] sm:$0xff]
      %v1605 = vld [vmem:[%s1590 + $0x70] sm:$0xff]
      %v1606 = vld [vmem:[%s1590 + $0x78] sm:$0xff]
      %v1607 = vld [vmem:[%s1590 + $0x80] sm:$0xff]
      %v1608 = vld [vmem:[%s1590 + $0x88] sm:$0xff]
      %v1609 = vld [vmem:[%s1590 + $0x90] sm:$0xff]
      %v1610 = vld [vmem:[%s1590 + $0x98] sm:$0xff]
      %v1611 = vld [vmem:[%s1590 + $0xa0] sm:$0xff]
      %v1612 = vld [vmem:[%s1590 + $0xa8] sm:$0xff]
      %v1613 = vld [vmem:[%s1590 + $0xb0] sm:$0xff]
      %v1614 = vld [vmem:[%s1590 + $0xb8] sm:$0xff]
      %v1616 = vsel %vm524, %v1578, 0
      %v1619 = vsel %vm524, %v1579, 0
      %v1622 = vsel %vm524, %v1580, 0
      %v1625 = vsel %vm524, %v1581, 0
      %v1628 = vsel %vm524, %v1582, 0
      %v1631 = vsel %vm524, %v1583, 0
      %v1634 = vsel %vm524, %v1584, 0
      %v1637 = vsel %vm524, %v1585, 0
      %v1640 = vsel %vm524, %v1586, 0
      %v1643 = vsel %vm524, %v1587, 0
      %v1646 = vsel %vm524, %v1588, 0
      %v1649 = vsel %vm524, %v1589, 0
      %1651 = vmatprep.subr.mxu0 0.0
      %1652 = vmatpush1.msra.mxu0 0.0
      %1653 = vmatprep.subr.mxu0 0.0
      %1654 = vmatpush1.msra.mxu0 0.0
      %1655 = vmatprep.subr.mxu0 0.0
      %1656 = vmatpush1.msra.mxu0 0.0
      %1657 = vmatprep.subr.mxu0 0.0
      %1658 = vmatpush1.msra.mxu0 0.0
      %1659 = vmatprep.subr.mxu0 0.0
      %1660 = vmatpush1.msra.mxu0 0.0
      %1661 = vmatprep.subr.mxu0 0.0
      %1662 = vmatpush1.msra.mxu0 0.0
      %1663 = vmatprep.subr.mxu0 0.0
      %1664 = vmatpush1.msra.mxu0 0.0
      %1665 = vmatprep.subr.mxu0 0.0
      %1666 = vmatpush1.msra.mxu0 0.0
      %1667 = vmatprep.subr.mxu0 %v1613
      %1668 = vmatpush1.msra.mxu0 %v1612
      %1669 = vmatprep.subr.mxu0 %v1610
      %1670 = vmatpush1.msra.mxu0 %v1609
      %1671 = vmatprep.subr.mxu0 %v1607
      %1672 = vmatpush1.msra.mxu0 %v1606
      %1673 = vmatprep.subr.mxu0 %v1604
      %1674 = vmatpush1.msra.mxu0 %v1603
      %1675 = vmatprep.subr.mxu0 %v1601
      %1676 = vmatpush1.msra.mxu0 %v1600
      %1677 = vmatprep.subr.mxu0 %v1598
      %1678 = vmatpush1.msra.mxu0 %v1597
      %1679 = vmatprep.subr.mxu0 %v1595
      %1680 = vmatpush1.msra.mxu0 %v1594
      %1681 = vmatprep.subr.mxu0 %v1592
      %1682 = vmatpush1.msra.mxu0 %v1591
      %1683 = vmatprep.subr.mxu0 0.0
      %1684 = vmatpush2.msra.mxu0 0.0
      %1685 = vmatprep.subr.mxu0 0.0
      %1686 = vmatpush2.msra.mxu0 0.0
      %1687 = vmatprep.subr.mxu0 0.0
      %1688 = vmatpush2.msra.mxu0 0.0
      %1689 = vmatprep.subr.mxu0 0.0
      %1690 = vmatpush2.msra.mxu0 0.0
      %1691 = vmatprep.subr.mxu0 0.0
      %1692 = vmatpush2.msra.mxu0 0.0
      %1693 = vmatprep.subr.mxu0 0.0
      %1694 = vmatpush2.msra.mxu0 0.0
      %1695 = vmatprep.subr.mxu0 0.0
      %1696 = vmatpush2.msra.mxu0 0.0
      %1697 = vmatprep.subr.mxu0 0.0
      %1698 = vmatpush2.msra.mxu0 0.0
      %1699 = vmatprep.subr.mxu0 0.0
      %1700 = vmatpush2.msra.mxu0 0.0
      %1701 = vmatprep.subr.mxu0 0.0
      %1702 = vmatpush2.msra.mxu0 0.0
      %1703 = vmatprep.subr.mxu0 0.0
      %1704 = vmatpush2.msra.mxu0 0.0
      %1705 = vmatprep.subr.mxu0 0.0
      %1706 = vmatpush2.msra.mxu0 0.0
      %1707 = vmatprep.subr.mxu0 0.0
      %1708 = vmatpush2.msra.mxu0 0.0
      %1709 = vmatprep.subr.mxu0 0.0
      %1710 = vmatpush2.msra.mxu0 0.0
      %1711 = vmatprep.subr.mxu0 0.0
      %1712 = vmatpush2.msra.mxu0 0.0
      %1713 = vmatprep.subr.mxu0 0.0
      %1714 = vmatpush2.msra.mxu0 0.0
      %1715 = vmatprep.mubr.f32.mxu0 0.0
      %1716 = vmatmul.mubr.f32.gmra.mxu0 %v1616
      %v1717 = vpop.f32.mrf.mxu0
      %v1718 = vadd.f32 0.0, %v1717
      %v1719 = vpop.f32.mrf.mxu0
      %v1720 = vadd.f32 0.0, %v1719
      %1721 = vmatprep.mubr.f32.mxu0 0.0
      %1722 = vmatmul.mubr.f32.gmra.mxu0 %v1619
      %v1723 = vpop.f32.mrf.mxu0
      %v1724 = vadd.f32 0.0, %v1723
      %v1725 = vpop.f32.mrf.mxu0
      %v1726 = vadd.f32 0.0, %v1725
      %1727 = vmatprep.mubr.f32.mxu0 0.0
      %1728 = vmatmul.mubr.f32.gmra.mxu0 %v1622
      %v1729 = vpop.f32.mrf.mxu0
      %v1730 = vadd.f32 0.0, %v1729
      %v1731 = vpop.f32.mrf.mxu0
      %v1732 = vadd.f32 0.0, %v1731
      %1733 = vmatprep.mubr.f32.mxu0 0.0
      %1734 = vmatmul.mubr.f32.gmra.mxu0 %v1625
      %v1735 = vpop.f32.mrf.mxu0
      %v1736 = vadd.f32 0.0, %v1735
      %v1737 = vpop.f32.mrf.mxu0
      %v1738 = vadd.f32 0.0, %v1737
      %1739 = vmatprep.mubr.f32.mxu0 0.0
      %1740 = vmatmul.mubr.f32.gmra.mxu0 %v1628
      %v1741 = vpop.f32.mrf.mxu0
      %v1742 = vadd.f32 0.0, %v1741
      %v1743 = vpop.f32.mrf.mxu0
      %v1744 = vadd.f32 0.0, %v1743
      %1745 = vmatprep.mubr.f32.mxu0 0.0
      %1746 = vmatmul.mubr.f32.gmra.mxu0 %v1631
      %v1747 = vpop.f32.mrf.mxu0
      %v1748 = vadd.f32 0.0, %v1747
      %v1749 = vpop.f32.mrf.mxu0
      %v1750 = vadd.f32 0.0, %v1749
      %1751 = vmatprep.mubr.f32.mxu0 0.0
      %1752 = vmatmul.mubr.f32.gmra.mxu0 %v1634
      %v1753 = vpop.f32.mrf.mxu0
      %v1754 = vadd.f32 0.0, %v1753
      %v1755 = vpop.f32.mrf.mxu0
      %v1756 = vadd.f32 0.0, %v1755
      %1757 = vmatprep.mubr.f32.mxu0 0.0
      %1758 = vmatmul.mubr.f32.gmra.mxu0 %v1637
      %v1759 = vpop.f32.mrf.mxu0
      %v1760 = vadd.f32 0.0, %v1759
      %v1761 = vpop.f32.mrf.mxu0
      %v1762 = vadd.f32 0.0, %v1761
      %1763 = vmatprep.mubr.f32.mxu0 0.0
      %1764 = vmatmul.mubr.f32.gmra.mxu0 %v1640
      %v1765 = vpop.f32.mrf.mxu0
      %v1766 = vadd.f32 0.0, %v1765
      %v1767 = vpop.f32.mrf.mxu0
      %v1768 = vadd.f32 0.0, %v1767
      %1769 = vmatprep.mubr.f32.mxu0 0.0
      %1770 = vmatmul.mubr.f32.gmra.mxu0 %v1643
      %v1771 = vpop.f32.mrf.mxu0
      %v1772 = vadd.f32 0.0, %v1771
      %v1773 = vpop.f32.mrf.mxu0
      %v1774 = vadd.f32 0.0, %v1773
      %1775 = vmatprep.mubr.f32.mxu0 0.0
      %1776 = vmatmul.mubr.f32.gmra.mxu0 %v1646
      %v1777 = vpop.f32.mrf.mxu0
      %v1778 = vadd.f32 0.0, %v1777
      %v1779 = vpop.f32.mrf.mxu0
      %v1780 = vadd.f32 0.0, %v1779
      %1781 = vmatprep.mubr.f32.mxu0 0.0
      %1782 = vmatmul.mubr.f32.gmra.mxu0 %v1649
      %v1783 = vpop.f32.mrf.mxu0
      %v1784 = vadd.f32 0.0, %v1783
      %v1785 = vpop.f32.mrf.mxu0
      %v1786 = vadd.f32 0.0, %v1785
      %1787 = vdwg.mxu0
      %1788 = vmatprep.subr.mxu0 0.0
      %1789 = vmatpush1.msra.mxu0 0.0
      %1790 = vmatprep.subr.mxu0 0.0
      %1791 = vmatpush1.msra.mxu0 0.0
      %1792 = vmatprep.subr.mxu0 0.0
      %1793 = vmatpush1.msra.mxu0 0.0
      %1794 = vmatprep.subr.mxu0 0.0
      %1795 = vmatpush1.msra.mxu0 0.0
      %1796 = vmatprep.subr.mxu0 0.0
      %1797 = vmatpush1.msra.mxu0 0.0
      %1798 = vmatprep.subr.mxu0 0.0
      %1799 = vmatpush1.msra.mxu0 0.0
      %1800 = vmatprep.subr.mxu0 0.0
      %1801 = vmatpush1.msra.mxu0 0.0
      %1802 = vmatprep.subr.mxu0 0.0
      %1803 = vmatpush1.msra.mxu0 0.0
      %1804 = vmatprep.subr.mxu0 0.0
      %1805 = vmatpush1.msra.mxu0 %v1614
      %1806 = vmatprep.subr.mxu0 0.0
      %1807 = vmatpush1.msra.mxu0 %v1611
      %1808 = vmatprep.subr.mxu0 0.0
      %1809 = vmatpush1.msra.mxu0 %v1608
      %1810 = vmatprep.subr.mxu0 0.0
      %1811 = vmatpush1.msra.mxu0 %v1605
      %1812 = vmatprep.subr.mxu0 0.0
      %1813 = vmatpush1.msra.mxu0 %v1602
      %1814 = vmatprep.subr.mxu0 0.0
      %1815 = vmatpush1.msra.mxu0 %v1599
      %1816 = vmatprep.subr.mxu0 0.0
      %1817 = vmatpush1.msra.mxu0 %v1596
      %1818 = vmatprep.subr.mxu0 0.0
      %1819 = vmatpush1.msra.mxu0 %v1593
      %1820 = vmatprep.subr.mxu0 0.0
      %1821 = vmatpush2.msra.mxu0 0.0
      %1822 = vmatprep.subr.mxu0 0.0
      %1823 = vmatpush2.msra.mxu0 0.0
      %1824 = vmatprep.subr.mxu0 0.0
      %1825 = vmatpush2.msra.mxu0 0.0
      %1826 = vmatprep.subr.mxu0 0.0
      %1827 = vmatpush2.msra.mxu0 0.0
      %1828 = vmatprep.subr.mxu0 0.0
      %1829 = vmatpush2.msra.mxu0 0.0
      %1830 = vmatprep.subr.mxu0 0.0
      %1831 = vmatpush2.msra.mxu0 0.0
      %1832 = vmatprep.subr.mxu0 0.0
      %1833 = vmatpush2.msra.mxu0 0.0
      %1834 = vmatprep.subr.mxu0 0.0
      %1835 = vmatpush2.msra.mxu0 0.0
      %1836 = vmatprep.subr.mxu0 0.0
      %1837 = vmatpush2.msra.mxu0 0.0
      %1838 = vmatprep.subr.mxu0 0.0
      %1839 = vmatpush2.msra.mxu0 0.0
      %1840 = vmatprep.subr.mxu0 0.0
      %1841 = vmatpush2.msra.mxu0 0.0
      %1842 = vmatprep.subr.mxu0 0.0
      %1843 = vmatpush2.msra.mxu0 0.0
      %1844 = vmatprep.subr.mxu0 0.0
      %1845 = vmatpush2.msra.mxu0 0.0
      %1846 = vmatprep.subr.mxu0 0.0
      %1847 = vmatpush2.msra.mxu0 0.0
      %1848 = vmatprep.subr.mxu0 0.0
      %1849 = vmatpush2.msra.mxu0 0.0
      %1850 = vmatprep.subr.mxu0 0.0
      %1851 = vmatpush2.msra.mxu0 0.0
      %1852 = vmatprep.mubr.f32.mxu0 0.0
      %1853 = vmatmul.mubr.f32.gmra.mxu0 %v1616
      %v1854 = vpop.f32.mrf.mxu0
      %v1855 = vadd.f32 0.0, %v1854
      %v1856 = vpop.f32.mrf.mxu0
      %1857 = vmatprep.mubr.f32.mxu0 0.0
      %1858 = vmatmul.mubr.f32.gmra.mxu0 %v1619
      %v1859 = vpop.f32.mrf.mxu0
      %v1860 = vadd.f32 0.0, %v1859
      %v1861 = vpop.f32.mrf.mxu0
      %1862 = vmatprep.mubr.f32.mxu0 0.0
      %1863 = vmatmul.mubr.f32.gmra.mxu0 %v1622
      %v1864 = vpop.f32.mrf.mxu0
      %v1865 = vadd.f32 0.0, %v1864
      %v1866 = vpop.f32.mrf.mxu0
      %1867 = vmatprep.mubr.f32.mxu0 0.0
      %1868 = vmatmul.mubr.f32.gmra.mxu0 %v1625
      %v1869 = vpop.f32.mrf.mxu0
      %v1870 = vadd.f32 0.0, %v1869
      %v1871 = vpop.f32.mrf.mxu0
      %1872 = vmatprep.mubr.f32.mxu0 0.0
      %1873 = vmatmul.mubr.f32.gmra.mxu0 %v1628
      %v1874 = vpop.f32.mrf.mxu0
      %v1875 = vadd.f32 0.0, %v1874
      %v1876 = vpop.f32.mrf.mxu0
      %1877 = vmatprep.mubr.f32.mxu0 0.0
      %1878 = vmatmul.mubr.f32.gmra.mxu0 %v1631
      %v1879 = vpop.f32.mrf.mxu0
      %v1880 = vadd.f32 0.0, %v1879
      %v1881 = vpop.f32.mrf.mxu0
      %1882 = vmatprep.mubr.f32.mxu0 0.0
      %1883 = vmatmul.mubr.f32.gmra.mxu0 %v1634
      %v1884 = vpop.f32.mrf.mxu0
      %v1885 = vadd.f32 0.0, %v1884
      %v1886 = vpop.f32.mrf.mxu0
      %1887 = vmatprep.mubr.f32.mxu0 0.0
      %1888 = vmatmul.mubr.f32.gmra.mxu0 %v1637
      %v1889 = vpop.f32.mrf.mxu0
      %v1890 = vadd.f32 0.0, %v1889
      %v1891 = vpop.f32.mrf.mxu0
      %1892 = vmatprep.mubr.f32.mxu0 0.0
      %1893 = vmatmul.mubr.f32.gmra.mxu0 %v1640
      %v1894 = vpop.f32.mrf.mxu0
      %v1895 = vadd.f32 0.0, %v1894
      %v1896 = vpop.f32.mrf.mxu0
      %1897 = vmatprep.mubr.f32.mxu0 0.0
      %1898 = vmatmul.mubr.f32.gmra.mxu0 %v1643
      %v1899 = vpop.f32.mrf.mxu0
      %v1900 = vadd.f32 0.0, %v1899
      %v1901 = vpop.f32.mrf.mxu0
      %1902 = vmatprep.mubr.f32.mxu0 0.0
      %1903 = vmatmul.mubr.f32.gmra.mxu0 %v1646
      %v1904 = vpop.f32.mrf.mxu0
      %v1905 = vadd.f32 0.0, %v1904
      %v1906 = vpop.f32.mrf.mxu0
      %1907 = vmatprep.mubr.f32.mxu0 0.0
      %1908 = vmatmul.mubr.f32.gmra.mxu0 %v1649
      %v1909 = vpop.f32.mrf.mxu0
      %v1910 = vadd.f32 0.0, %v1909
      %v1911 = vpop.f32.mrf.mxu0
      %1912 = vdwg.mxu0
      %v1913 = vadd.f32 %v1542, %v1718
      %v1914 = vadd.f32 %v1543, %v1720
      %v1915 = vadd.f32 %v1544, %v1855
      %v1916 = vadd.f32 %v1545, %v1724
      %v1917 = vadd.f32 %v1546, %v1726
      %v1918 = vadd.f32 %v1547, %v1860
      %v1919 = vadd.f32 %v1548, %v1730
      %v1920 = vadd.f32 %v1549, %v1732
      %v1921 = vadd.f32 %v1550, %v1865
      %v1922 = vadd.f32 %v1551, %v1736
      %v1923 = vadd.f32 %v1552, %v1738
      %v1924 = vadd.f32 %v1553, %v1870
      %v1925 = vadd.f32 %v1554, %v1742
      %v1926 = vadd.f32 %v1555, %v1744
      %v1927 = vadd.f32 %v1556, %v1875
      %v1928 = vadd.f32 %v1557, %v1748
      %v1929 = vadd.f32 %v1558, %v1750
      %v1930 = vadd.f32 %v1559, %v1880
      %v1931 = vadd.f32 %v1560, %v1754
      %v1932 = vadd.f32 %v1561, %v1756
      %v1933 = vadd.f32 %v1562, %v1885
      %v1934 = vadd.f32 %v1563, %v1760
      %v1935 = vadd.f32 %v1564, %v1762
      %v1936 = vadd.f32 %v1565, %v1890
      %v1937 = vadd.f32 %v1566, %v1766
      %v1938 = vadd.f32 %v1567, %v1768
      %v1939 = vadd.f32 %v1568, %v1895
      %v1940 = vadd.f32 %v1569, %v1772
      %v1941 = vadd.f32 %v1570, %v1774
      %v1942 = vadd.f32 %v1571, %v1900
      %v1943 = vadd.f32 %v1572, %v1778
      %v1944 = vadd.f32 %v1573, %v1780
      %v1945 = vadd.f32 %v1574, %v1905
      %v1946 = vadd.f32 %v1575, %v1784
      %v1947 = vadd.f32 %v1576, %v1786
      %v1948 = vadd.f32 %v1577, %v1910
      %v1949 = vld [vmem:[#allocation2 + $0x5] sm:$0xff]
      %v1950 = vld [vmem:[#allocation2 + $0xd] sm:$0xff]
      %v1951 = vld [vmem:[#allocation2 + $0x15] sm:$0xff]
      %v1952 = vld [vmem:[#allocation2 + $0x1d] sm:$0xff]
      %v1953 = vld [vmem:[#allocation2 + $0x25] sm:$0xff]
      %v1954 = vld [vmem:[#allocation2 + $0x2d] sm:$0xff]
      %v1955 = vld [vmem:[#allocation2 + $0x35] sm:$0xff]
      %v1956 = vld [vmem:[#allocation2 + $0x3d] sm:$0xff]
      %v1957 = vld [vmem:[#allocation2 + $0x45] sm:$0xff]
      %v1958 = vld [vmem:[#allocation2 + $0x4d] sm:$0xff]
      %v1959 = vld [vmem:[#allocation2 + $0x55] sm:$0xff]
      %v1960 = vld [vmem:[#allocation2 + $0x5d] sm:$0xff]
      %s1961 = scalar_lea.vmem %s2, 768
      %v1962 = vld [vmem:[%s1961] sm:$0xff]
      %v1963 = vld [vmem:[%s1961 + $0x8] sm:$0xff]
      %v1964 = vld [vmem:[%s1961 + $0x10] sm:$0xff]
      %v1965 = vld [vmem:[%s1961 + $0x18] sm:$0xff]
      %v1966 = vld [vmem:[%s1961 + $0x20] sm:$0xff]
      %v1967 = vld [vmem:[%s1961 + $0x28] sm:$0xff]
      %v1968 = vld [vmem:[%s1961 + $0x30] sm:$0xff]
      %v1969 = vld [vmem:[%s1961 + $0x38] sm:$0xff]
      %v1970 = vld [vmem:[%s1961 + $0x40] sm:$0xff]
      %v1971 = vld [vmem:[%s1961 + $0x48] sm:$0xff]
      %v1972 = vld [vmem:[%s1961 + $0x50] sm:$0xff]
      %v1973 = vld [vmem:[%s1961 + $0x58] sm:$0xff]
      %v1974 = vld [vmem:[%s1961 + $0x60] sm:$0xff]
      %v1975 = vld [vmem:[%s1961 + $0x68] sm:$0xff]
      %v1976 = vld [vmem:[%s1961 + $0x70] sm:$0xff]
      %v1977 = vld [vmem:[%s1961 + $0x78] sm:$0xff]
      %v1978 = vld [vmem:[%s1961 + $0x80] sm:$0xff]
      %v1979 = vld [vmem:[%s1961 + $0x88] sm:$0xff]
      %v1980 = vld [vmem:[%s1961 + $0x90] sm:$0xff]
      %v1981 = vld [vmem:[%s1961 + $0x98] sm:$0xff]
      %v1982 = vld [vmem:[%s1961 + $0xa0] sm:$0xff]
      %v1983 = vld [vmem:[%s1961 + $0xa8] sm:$0xff]
      %v1984 = vld [vmem:[%s1961 + $0xb0] sm:$0xff]
      %v1985 = vld [vmem:[%s1961 + $0xb8] sm:$0xff]
      %v1987 = vsel %vm524, %v1949, 0
      %v1990 = vsel %vm524, %v1950, 0
      %v1993 = vsel %vm524, %v1951, 0
      %v1996 = vsel %vm524, %v1952, 0
      %v1999 = vsel %vm524, %v1953, 0
      %v2002 = vsel %vm524, %v1954, 0
      %v2005 = vsel %vm524, %v1955, 0
      %v2008 = vsel %vm524, %v1956, 0
      %v2011 = vsel %vm524, %v1957, 0
      %v2014 = vsel %vm524, %v1958, 0
      %v2017 = vsel %vm524, %v1959, 0
      %v2020 = vsel %vm524, %v1960, 0
      %2022 = vmatprep.subr.mxu0 0.0
      %2023 = vmatpush1.msra.mxu0 0.0
      %2024 = vmatprep.subr.mxu0 0.0
      %2025 = vmatpush1.msra.mxu0 0.0
      %2026 = vmatprep.subr.mxu0 0.0
      %2027 = vmatpush1.msra.mxu0 0.0
      %2028 = vmatprep.subr.mxu0 0.0
      %2029 = vmatpush1.msra.mxu0 0.0
      %2030 = vmatprep.subr.mxu0 0.0
      %2031 = vmatpush1.msra.mxu0 0.0
      %2032 = vmatprep.subr.mxu0 0.0
      %2033 = vmatpush1.msra.mxu0 0.0
      %2034 = vmatprep.subr.mxu0 0.0
      %2035 = vmatpush1.msra.mxu0 0.0
      %2036 = vmatprep.subr.mxu0 0.0
      %2037 = vmatpush1.msra.mxu0 0.0
      %2038 = vmatprep.subr.mxu0 %v1984
      %2039 = vmatpush1.msra.mxu0 %v1983
      %2040 = vmatprep.subr.mxu0 %v1981
      %2041 = vmatpush1.msra.mxu0 %v1980
      %2042 = vmatprep.subr.mxu0 %v1978
      %2043 = vmatpush1.msra.mxu0 %v1977
      %2044 = vmatprep.subr.mxu0 %v1975
      %2045 = vmatpush1.msra.mxu0 %v1974
      %2046 = vmatprep.subr.mxu0 %v1972
      %2047 = vmatpush1.msra.mxu0 %v1971
      %2048 = vmatprep.subr.mxu0 %v1969
      %2049 = vmatpush1.msra.mxu0 %v1968
      %2050 = vmatprep.subr.mxu0 %v1966
      %2051 = vmatpush1.msra.mxu0 %v1965
      %2052 = vmatprep.subr.mxu0 %v1963
      %2053 = vmatpush1.msra.mxu0 %v1962
      %2054 = vmatprep.subr.mxu0 0.0
      %2055 = vmatpush2.msra.mxu0 0.0
      %2056 = vmatprep.subr.mxu0 0.0
      %2057 = vmatpush2.msra.mxu0 0.0
      %2058 = vmatprep.subr.mxu0 0.0
      %2059 = vmatpush2.msra.mxu0 0.0
      %2060 = vmatprep.subr.mxu0 0.0
      %2061 = vmatpush2.msra.mxu0 0.0
      %2062 = vmatprep.subr.mxu0 0.0
      %2063 = vmatpush2.msra.mxu0 0.0
      %2064 = vmatprep.subr.mxu0 0.0
      %2065 = vmatpush2.msra.mxu0 0.0
      %2066 = vmatprep.subr.mxu0 0.0
      %2067 = vmatpush2.msra.mxu0 0.0
      %2068 = vmatprep.subr.mxu0 0.0
      %2069 = vmatpush2.msra.mxu0 0.0
      %2070 = vmatprep.subr.mxu0 0.0
      %2071 = vmatpush2.msra.mxu0 0.0
      %2072 = vmatprep.subr.mxu0 0.0
      %2073 = vmatpush2.msra.mxu0 0.0
      %2074 = vmatprep.subr.mxu0 0.0
      %2075 = vmatpush2.msra.mxu0 0.0
      %2076 = vmatprep.subr.mxu0 0.0
      %2077 = vmatpush2.msra.mxu0 0.0
      %2078 = vmatprep.subr.mxu0 0.0
      %2079 = vmatpush2.msra.mxu0 0.0
      %2080 = vmatprep.subr.mxu0 0.0
      %2081 = vmatpush2.msra.mxu0 0.0
      %2082 = vmatprep.subr.mxu0 0.0
      %2083 = vmatpush2.msra.mxu0 0.0
      %2084 = vmatprep.subr.mxu0 0.0
      %2085 = vmatpush2.msra.mxu0 0.0
      %2086 = vmatprep.mubr.f32.mxu0 0.0
      %2087 = vmatmul.mubr.f32.gmra.mxu0 %v1987
      %v2088 = vpop.f32.mrf.mxu0
      %v2089 = vadd.f32 0.0, %v2088
      %v2090 = vpop.f32.mrf.mxu0
      %v2091 = vadd.f32 0.0, %v2090
      %2092 = vmatprep.mubr.f32.mxu0 0.0
      %2093 = vmatmul.mubr.f32.gmra.mxu0 %v1990
      %v2094 = vpop.f32.mrf.mxu0
      %v2095 = vadd.f32 0.0, %v2094
      %v2096 = vpop.f32.mrf.mxu0
      %v2097 = vadd.f32 0.0, %v2096
      %2098 = vmatprep.mubr.f32.mxu0 0.0
      %2099 = vmatmul.mubr.f32.gmra.mxu0 %v1993
      %v2100 = vpop.f32.mrf.mxu0
      %v2101 = vadd.f32 0.0, %v2100
      %v2102 = vpop.f32.mrf.mxu0
      %v2103 = vadd.f32 0.0, %v2102
      %2104 = vmatprep.mubr.f32.mxu0 0.0
      %2105 = vmatmul.mubr.f32.gmra.mxu0 %v1996
      %v2106 = vpop.f32.mrf.mxu0
      %v2107 = vadd.f32 0.0, %v2106
      %v2108 = vpop.f32.mrf.mxu0
      %v2109 = vadd.f32 0.0, %v2108
      %2110 = vmatprep.mubr.f32.mxu0 0.0
      %2111 = vmatmul.mubr.f32.gmra.mxu0 %v1999
      %v2112 = vpop.f32.mrf.mxu0
      %v2113 = vadd.f32 0.0, %v2112
      %v2114 = vpop.f32.mrf.mxu0
      %v2115 = vadd.f32 0.0, %v2114
      %2116 = vmatprep.mubr.f32.mxu0 0.0
      %2117 = vmatmul.mubr.f32.gmra.mxu0 %v2002
      %v2118 = vpop.f32.mrf.mxu0
      %v2119 = vadd.f32 0.0, %v2118
      %v2120 = vpop.f32.mrf.mxu0
      %v2121 = vadd.f32 0.0, %v2120
      %2122 = vmatprep.mubr.f32.mxu0 0.0
      %2123 = vmatmul.mubr.f32.gmra.mxu0 %v2005
      %v2124 = vpop.f32.mrf.mxu0
      %v2125 = vadd.f32 0.0, %v2124
      %v2126 = vpop.f32.mrf.mxu0
      %v2127 = vadd.f32 0.0, %v2126
      %2128 = vmatprep.mubr.f32.mxu0 0.0
      %2129 = vmatmul.mubr.f32.gmra.mxu0 %v2008
      %v2130 = vpop.f32.mrf.mxu0
      %v2131 = vadd.f32 0.0, %v2130
      %v2132 = vpop.f32.mrf.mxu0
      %v2133 = vadd.f32 0.0, %v2132
      %2134 = vmatprep.mubr.f32.mxu0 0.0
      %2135 = vmatmul.mubr.f32.gmra.mxu0 %v2011
      %v2136 = vpop.f32.mrf.mxu0
      %v2137 = vadd.f32 0.0, %v2136
      %v2138 = vpop.f32.mrf.mxu0
      %v2139 = vadd.f32 0.0, %v2138
      %2140 = vmatprep.mubr.f32.mxu0 0.0
      %2141 = vmatmul.mubr.f32.gmra.mxu0 %v2014
      %v2142 = vpop.f32.mrf.mxu0
      %v2143 = vadd.f32 0.0, %v2142
      %v2144 = vpop.f32.mrf.mxu0
      %v2145 = vadd.f32 0.0, %v2144
      %2146 = vmatprep.mubr.f32.mxu0 0.0
      %2147 = vmatmul.mubr.f32.gmra.mxu0 %v2017
      %v2148 = vpop.f32.mrf.mxu0
      %v2149 = vadd.f32 0.0, %v2148
      %v2150 = vpop.f32.mrf.mxu0
      %v2151 = vadd.f32 0.0, %v2150
      %2152 = vmatprep.mubr.f32.mxu0 0.0
      %2153 = vmatmul.mubr.f32.gmra.mxu0 %v2020
      %v2154 = vpop.f32.mrf.mxu0
      %v2155 = vadd.f32 0.0, %v2154
      %v2156 = vpop.f32.mrf.mxu0
      %v2157 = vadd.f32 0.0, %v2156
      %2158 = vdwg.mxu0
      %2159 = vmatprep.subr.mxu0 0.0
      %2160 = vmatpush1.msra.mxu0 0.0
      %2161 = vmatprep.subr.mxu0 0.0
      %2162 = vmatpush1.msra.mxu0 0.0
      %2163 = vmatprep.subr.mxu0 0.0
      %2164 = vmatpush1.msra.mxu0 0.0
      %2165 = vmatprep.subr.mxu0 0.0
      %2166 = vmatpush1.msra.mxu0 0.0
      %2167 = vmatprep.subr.mxu0 0.0
      %2168 = vmatpush1.msra.mxu0 0.0
      %2169 = vmatprep.subr.mxu0 0.0
      %2170 = vmatpush1.msra.mxu0 0.0
      %2171 = vmatprep.subr.mxu0 0.0
      %2172 = vmatpush1.msra.mxu0 0.0
      %2173 = vmatprep.subr.mxu0 0.0
      %2174 = vmatpush1.msra.mxu0 0.0
      %2175 = vmatprep.subr.mxu0 0.0
      %2176 = vmatpush1.msra.mxu0 %v1985
      %2177 = vmatprep.subr.mxu0 0.0
      %2178 = vmatpush1.msra.mxu0 %v1982
      %2179 = vmatprep.subr.mxu0 0.0
      %2180 = vmatpush1.msra.mxu0 %v1979
      %2181 = vmatprep.subr.mxu0 0.0
      %2182 = vmatpush1.msra.mxu0 %v1976
      %2183 = vmatprep.subr.mxu0 0.0
      %2184 = vmatpush1.msra.mxu0 %v1973
      %2185 = vmatprep.subr.mxu0 0.0
      %2186 = vmatpush1.msra.mxu0 %v1970
      %2187 = vmatprep.subr.mxu0 0.0
      %2188 = vmatpush1.msra.mxu0 %v1967
      %2189 = vmatprep.subr.mxu0 0.0
      %2190 = vmatpush1.msra.mxu0 %v1964
      %2191 = vmatprep.subr.mxu0 0.0
      %2192 = vmatpush2.msra.mxu0 0.0
      %2193 = vmatprep.subr.mxu0 0.0
      %2194 = vmatpush2.msra.mxu0 0.0
      %2195 = vmatprep.subr.mxu0 0.0
      %2196 = vmatpush2.msra.mxu0 0.0
      %2197 = vmatprep.subr.mxu0 0.0
      %2198 = vmatpush2.msra.mxu0 0.0
      %2199 = vmatprep.subr.mxu0 0.0
      %2200 = vmatpush2.msra.mxu0 0.0
      %2201 = vmatprep.subr.mxu0 0.0
      %2202 = vmatpush2.msra.mxu0 0.0
      %2203 = vmatprep.subr.mxu0 0.0
      %2204 = vmatpush2.msra.mxu0 0.0
      %2205 = vmatprep.subr.mxu0 0.0
      %2206 = vmatpush2.msra.mxu0 0.0
      %2207 = vmatprep.subr.mxu0 0.0
      %2208 = vmatpush2.msra.mxu0 0.0
      %2209 = vmatprep.subr.mxu0 0.0
      %2210 = vmatpush2.msra.mxu0 0.0
      %2211 = vmatprep.subr.mxu0 0.0
      %2212 = vmatpush2.msra.mxu0 0.0
      %2213 = vmatprep.subr.mxu0 0.0
      %2214 = vmatpush2.msra.mxu0 0.0
      %2215 = vmatprep.subr.mxu0 0.0
      %2216 = vmatpush2.msra.mxu0 0.0
      %2217 = vmatprep.subr.mxu0 0.0
      %2218 = vmatpush2.msra.mxu0 0.0
      %2219 = vmatprep.subr.mxu0 0.0
      %2220 = vmatpush2.msra.mxu0 0.0
      %2221 = vmatprep.subr.mxu0 0.0
      %2222 = vmatpush2.msra.mxu0 0.0
      %2223 = vmatprep.mubr.f32.mxu0 0.0
      %2224 = vmatmul.mubr.f32.gmra.mxu0 %v1987
      %v2225 = vpop.f32.mrf.mxu0
      %v2226 = vadd.f32 0.0, %v2225
      %v2227 = vpop.f32.mrf.mxu0
      %2228 = vmatprep.mubr.f32.mxu0 0.0
      %2229 = vmatmul.mubr.f32.gmra.mxu0 %v1990
      %v2230 = vpop.f32.mrf.mxu0
      %v2231 = vadd.f32 0.0, %v2230
      %v2232 = vpop.f32.mrf.mxu0
      %2233 = vmatprep.mubr.f32.mxu0 0.0
      %2234 = vmatmul.mubr.f32.gmra.mxu0 %v1993
      %v2235 = vpop.f32.mrf.mxu0
      %v2236 = vadd.f32 0.0, %v2235
      %v2237 = vpop.f32.mrf.mxu0
      %2238 = vmatprep.mubr.f32.mxu0 0.0
      %2239 = vmatmul.mubr.f32.gmra.mxu0 %v1996
      %v2240 = vpop.f32.mrf.mxu0
      %v2241 = vadd.f32 0.0, %v2240
      %v2242 = vpop.f32.mrf.mxu0
      %2243 = vmatprep.mubr.f32.mxu0 0.0
      %2244 = vmatmul.mubr.f32.gmra.mxu0 %v1999
      %v2245 = vpop.f32.mrf.mxu0
      %v2246 = vadd.f32 0.0, %v2245
      %v2247 = vpop.f32.mrf.mxu0
      %2248 = vmatprep.mubr.f32.mxu0 0.0
      %2249 = vmatmul.mubr.f32.gmra.mxu0 %v2002
      %v2250 = vpop.f32.mrf.mxu0
      %v2251 = vadd.f32 0.0, %v2250
      %v2252 = vpop.f32.mrf.mxu0
      %2253 = vmatprep.mubr.f32.mxu0 0.0
      %2254 = vmatmul.mubr.f32.gmra.mxu0 %v2005
      %v2255 = vpop.f32.mrf.mxu0
      %v2256 = vadd.f32 0.0, %v2255
      %v2257 = vpop.f32.mrf.mxu0
      %2258 = vmatprep.mubr.f32.mxu0 0.0
      %2259 = vmatmul.mubr.f32.gmra.mxu0 %v2008
      %v2260 = vpop.f32.mrf.mxu0
      %v2261 = vadd.f32 0.0, %v2260
      %v2262 = vpop.f32.mrf.mxu0
      %2263 = vmatprep.mubr.f32.mxu0 0.0
      %2264 = vmatmul.mubr.f32.gmra.mxu0 %v2011
      %v2265 = vpop.f32.mrf.mxu0
      %v2266 = vadd.f32 0.0, %v2265
      %v2267 = vpop.f32.mrf.mxu0
      %2268 = vmatprep.mubr.f32.mxu0 0.0
      %2269 = vmatmul.mubr.f32.gmra.mxu0 %v2014
      %v2270 = vpop.f32.mrf.mxu0
      %v2271 = vadd.f32 0.0, %v2270
      %v2272 = vpop.f32.mrf.mxu0
      %2273 = vmatprep.mubr.f32.mxu0 0.0
      %2274 = vmatmul.mubr.f32.gmra.mxu0 %v2017
      %v2275 = vpop.f32.mrf.mxu0
      %v2276 = vadd.f32 0.0, %v2275
      %v2277 = vpop.f32.mrf.mxu0
      %2278 = vmatprep.mubr.f32.mxu0 0.0
      %2279 = vmatmul.mubr.f32.gmra.mxu0 %v2020
      %v2280 = vpop.f32.mrf.mxu0
      %v2281 = vadd.f32 0.0, %v2280
      %v2282 = vpop.f32.mrf.mxu0
      %2283 = vdwg.mxu0
      %v2284 = vadd.f32 %v1913, %v2089
      %v2285 = vadd.f32 %v1914, %v2091
      %v2286 = vadd.f32 %v1915, %v2226
      %v2287 = vadd.f32 %v1916, %v2095
      %v2288 = vadd.f32 %v1917, %v2097
      %v2289 = vadd.f32 %v1918, %v2231
      %v2290 = vadd.f32 %v1919, %v2101
      %v2291 = vadd.f32 %v1920, %v2103
      %v2292 = vadd.f32 %v1921, %v2236
      %v2293 = vadd.f32 %v1922, %v2107
      %v2294 = vadd.f32 %v1923, %v2109
      %v2295 = vadd.f32 %v1924, %v2241
      %v2296 = vadd.f32 %v1925, %v2113
      %v2297 = vadd.f32 %v1926, %v2115
      %v2298 = vadd.f32 %v1927, %v2246
      %v2299 = vadd.f32 %v1928, %v2119
      %v2300 = vadd.f32 %v1929, %v2121
      %v2301 = vadd.f32 %v1930, %v2251
      %v2302 = vadd.f32 %v1931, %v2125
      %v2303 = vadd.f32 %v1932, %v2127
      %v2304 = vadd.f32 %v1933, %v2256
      %v2305 = vadd.f32 %v1934, %v2131
      %v2306 = vadd.f32 %v1935, %v2133
      %v2307 = vadd.f32 %v1936, %v2261
      %v2308 = vadd.f32 %v1937, %v2137
      %v2309 = vadd.f32 %v1938, %v2139
      %v2310 = vadd.f32 %v1939, %v2266
      %v2311 = vadd.f32 %v1940, %v2143
      %v2312 = vadd.f32 %v1941, %v2145
      %v2313 = vadd.f32 %v1942, %v2271
      %v2314 = vadd.f32 %v1943, %v2149
      %v2315 = vadd.f32 %v1944, %v2151
      %v2316 = vadd.f32 %v1945, %v2276
      %v2317 = vadd.f32 %v1946, %v2155
      %v2318 = vadd.f32 %v1947, %v2157
      %v2319 = vadd.f32 %v1948, %v2281
      %v2320 = vld [vmem:[#allocation2 + $0x6] sm:$0xff]
      %v2321 = vld [vmem:[#allocation2 + $0xe] sm:$0xff]
      %v2322 = vld [vmem:[#allocation2 + $0x16] sm:$0xff]
      %v2323 = vld [vmem:[#allocation2 + $0x1e] sm:$0xff]
      %v2324 = vld [vmem:[#allocation2 + $0x26] sm:$0xff]
      %v2325 = vld [vmem:[#allocation2 + $0x2e] sm:$0xff]
      %v2326 = vld [vmem:[#allocation2 + $0x36] sm:$0xff]
      %v2327 = vld [vmem:[#allocation2 + $0x3e] sm:$0xff]
      %v2328 = vld [vmem:[#allocation2 + $0x46] sm:$0xff]
      %v2329 = vld [vmem:[#allocation2 + $0x4e] sm:$0xff]
      %v2330 = vld [vmem:[#allocation2 + $0x56] sm:$0xff]
      %v2331 = vld [vmem:[#allocation2 + $0x5e] sm:$0xff]
      %s2332 = scalar_lea.vmem %s2, 960
      %v2333 = vld [vmem:[%s2332] sm:$0xff]
      %v2334 = vld [vmem:[%s2332 + $0x8] sm:$0xff]
      %v2335 = vld [vmem:[%s2332 + $0x10] sm:$0xff]
      %v2336 = vld [vmem:[%s2332 + $0x18] sm:$0xff]
      %v2337 = vld [vmem:[%s2332 + $0x20] sm:$0xff]
      %v2338 = vld [vmem:[%s2332 + $0x28] sm:$0xff]
      %v2339 = vld [vmem:[%s2332 + $0x30] sm:$0xff]
      %v2340 = vld [vmem:[%s2332 + $0x38] sm:$0xff]
      %v2341 = vld [vmem:[%s2332 + $0x40] sm:$0xff]
      %v2342 = vld [vmem:[%s2332 + $0x48] sm:$0xff]
      %v2343 = vld [vmem:[%s2332 + $0x50] sm:$0xff]
      %v2344 = vld [vmem:[%s2332 + $0x58] sm:$0xff]
      %v2345 = vld [vmem:[%s2332 + $0x60] sm:$0xff]
      %v2346 = vld [vmem:[%s2332 + $0x68] sm:$0xff]
      %v2347 = vld [vmem:[%s2332 + $0x70] sm:$0xff]
      %v2348 = vld [vmem:[%s2332 + $0x78] sm:$0xff]
      %v2349 = vld [vmem:[%s2332 + $0x80] sm:$0xff]
      %v2350 = vld [vmem:[%s2332 + $0x88] sm:$0xff]
      %v2351 = vld [vmem:[%s2332 + $0x90] sm:$0xff]
      %v2352 = vld [vmem:[%s2332 + $0x98] sm:$0xff]
      %v2353 = vld [vmem:[%s2332 + $0xa0] sm:$0xff]
      %v2354 = vld [vmem:[%s2332 + $0xa8] sm:$0xff]
      %v2355 = vld [vmem:[%s2332 + $0xb0] sm:$0xff]
      %v2356 = vld [vmem:[%s2332 + $0xb8] sm:$0xff]
      %v2358 = vsel %vm524, %v2320, 0
      %v2361 = vsel %vm524, %v2321, 0
      %v2364 = vsel %vm524, %v2322, 0
      %v2367 = vsel %vm524, %v2323, 0
      %v2370 = vsel %vm524, %v2324, 0
      %v2373 = vsel %vm524, %v2325, 0
      %v2376 = vsel %vm524, %v2326, 0
      %v2379 = vsel %vm524, %v2327, 0
      %v2382 = vsel %vm524, %v2328, 0
      %v2385 = vsel %vm524, %v2329, 0
      %v2388 = vsel %vm524, %v2330, 0
      %v2391 = vsel %vm524, %v2331, 0
      %2393 = vmatprep.subr.mxu0 0.0
      %2394 = vmatpush1.msra.mxu0 0.0
      %2395 = vmatprep.subr.mxu0 0.0
      %2396 = vmatpush1.msra.mxu0 0.0
      %2397 = vmatprep.subr.mxu0 0.0
      %2398 = vmatpush1.msra.mxu0 0.0
      %2399 = vmatprep.subr.mxu0 0.0
      %2400 = vmatpush1.msra.mxu0 0.0
      %2401 = vmatprep.subr.mxu0 0.0
      %2402 = vmatpush1.msra.mxu0 0.0
      %2403 = vmatprep.subr.mxu0 0.0
      %2404 = vmatpush1.msra.mxu0 0.0
      %2405 = vmatprep.subr.mxu0 0.0
      %2406 = vmatpush1.msra.mxu0 0.0
      %2407 = vmatprep.subr.mxu0 0.0
      %2408 = vmatpush1.msra.mxu0 0.0
      %2409 = vmatprep.subr.mxu0 %v2355
      %2410 = vmatpush1.msra.mxu0 %v2354
      %2411 = vmatprep.subr.mxu0 %v2352
      %2412 = vmatpush1.msra.mxu0 %v2351
      %2413 = vmatprep.subr.mxu0 %v2349
      %2414 = vmatpush1.msra.mxu0 %v2348
      %2415 = vmatprep.subr.mxu0 %v2346
      %2416 = vmatpush1.msra.mxu0 %v2345
      %2417 = vmatprep.subr.mxu0 %v2343
      %2418 = vmatpush1.msra.mxu0 %v2342
      %2419 = vmatprep.subr.mxu0 %v2340
      %2420 = vmatpush1.msra.mxu0 %v2339
      %2421 = vmatprep.subr.mxu0 %v2337
      %2422 = vmatpush1.msra.mxu0 %v2336
      %2423 = vmatprep.subr.mxu0 %v2334
      %2424 = vmatpush1.msra.mxu0 %v2333
      %2425 = vmatprep.subr.mxu0 0.0
      %2426 = vmatpush2.msra.mxu0 0.0
      %2427 = vmatprep.subr.mxu0 0.0
      %2428 = vmatpush2.msra.mxu0 0.0
      %2429 = vmatprep.subr.mxu0 0.0
      %2430 = vmatpush2.msra.mxu0 0.0
      %2431 = vmatprep.subr.mxu0 0.0
      %2432 = vmatpush2.msra.mxu0 0.0
      %2433 = vmatprep.subr.mxu0 0.0
      %2434 = vmatpush2.msra.mxu0 0.0
      %2435 = vmatprep.subr.mxu0 0.0
      %2436 = vmatpush2.msra.mxu0 0.0
      %2437 = vmatprep.subr.mxu0 0.0
      %2438 = vmatpush2.msra.mxu0 0.0
      %2439 = vmatprep.subr.mxu0 0.0
      %2440 = vmatpush2.msra.mxu0 0.0
      %2441 = vmatprep.subr.mxu0 0.0
      %2442 = vmatpush2.msra.mxu0 0.0
      %2443 = vmatprep.subr.mxu0 0.0
      %2444 = vmatpush2.msra.mxu0 0.0
      %2445 = vmatprep.subr.mxu0 0.0
      %2446 = vmatpush2.msra.mxu0 0.0
      %2447 = vmatprep.subr.mxu0 0.0
      %2448 = vmatpush2.msra.mxu0 0.0
      %2449 = vmatprep.subr.mxu0 0.0
      %2450 = vmatpush2.msra.mxu0 0.0
      %2451 = vmatprep.subr.mxu0 0.0
      %2452 = vmatpush2.msra.mxu0 0.0
      %2453 = vmatprep.subr.mxu0 0.0
      %2454 = vmatpush2.msra.mxu0 0.0
      %2455 = vmatprep.subr.mxu0 0.0
      %2456 = vmatpush2.msra.mxu0 0.0
      %2457 = vmatprep.mubr.f32.mxu0 0.0
      %2458 = vmatmul.mubr.f32.gmra.mxu0 %v2358
      %v2459 = vpop.f32.mrf.mxu0
      %v2460 = vadd.f32 0.0, %v2459
      %v2461 = vpop.f32.mrf.mxu0
      %v2462 = vadd.f32 0.0, %v2461
      %2463 = vmatprep.mubr.f32.mxu0 0.0
      %2464 = vmatmul.mubr.f32.gmra.mxu0 %v2361
      %v2465 = vpop.f32.mrf.mxu0
      %v2466 = vadd.f32 0.0, %v2465
      %v2467 = vpop.f32.mrf.mxu0
      %v2468 = vadd.f32 0.0, %v2467
      %2469 = vmatprep.mubr.f32.mxu0 0.0
      %2470 = vmatmul.mubr.f32.gmra.mxu0 %v2364
      %v2471 = vpop.f32.mrf.mxu0
      %v2472 = vadd.f32 0.0, %v2471
      %v2473 = vpop.f32.mrf.mxu0
      %v2474 = vadd.f32 0.0, %v2473
      %2475 = vmatprep.mubr.f32.mxu0 0.0
      %2476 = vmatmul.mubr.f32.gmra.mxu0 %v2367
      %v2477 = vpop.f32.mrf.mxu0
      %v2478 = vadd.f32 0.0, %v2477
      %v2479 = vpop.f32.mrf.mxu0
      %v2480 = vadd.f32 0.0, %v2479
      %2481 = vmatprep.mubr.f32.mxu0 0.0
      %2482 = vmatmul.mubr.f32.gmra.mxu0 %v2370
      %v2483 = vpop.f32.mrf.mxu0
      %v2484 = vadd.f32 0.0, %v2483
      %v2485 = vpop.f32.mrf.mxu0
      %v2486 = vadd.f32 0.0, %v2485
      %2487 = vmatprep.mubr.f32.mxu0 0.0
      %2488 = vmatmul.mubr.f32.gmra.mxu0 %v2373
      %v2489 = vpop.f32.mrf.mxu0
      %v2490 = vadd.f32 0.0, %v2489
      %v2491 = vpop.f32.mrf.mxu0
      %v2492 = vadd.f32 0.0, %v2491
      %2493 = vmatprep.mubr.f32.mxu0 0.0
      %2494 = vmatmul.mubr.f32.gmra.mxu0 %v2376
      %v2495 = vpop.f32.mrf.mxu0
      %v2496 = vadd.f32 0.0, %v2495
      %v2497 = vpop.f32.mrf.mxu0
      %v2498 = vadd.f32 0.0, %v2497
      %2499 = vmatprep.mubr.f32.mxu0 0.0
      %2500 = vmatmul.mubr.f32.gmra.mxu0 %v2379
      %v2501 = vpop.f32.mrf.mxu0
      %v2502 = vadd.f32 0.0, %v2501
      %v2503 = vpop.f32.mrf.mxu0
      %v2504 = vadd.f32 0.0, %v2503
      %2505 = vmatprep.mubr.f32.mxu0 0.0
      %2506 = vmatmul.mubr.f32.gmra.mxu0 %v2382
      %v2507 = vpop.f32.mrf.mxu0
      %v2508 = vadd.f32 0.0, %v2507
      %v2509 = vpop.f32.mrf.mxu0
      %v2510 = vadd.f32 0.0, %v2509
      %2511 = vmatprep.mubr.f32.mxu0 0.0
      %2512 = vmatmul.mubr.f32.gmra.mxu0 %v2385
      %v2513 = vpop.f32.mrf.mxu0
      %v2514 = vadd.f32 0.0, %v2513
      %v2515 = vpop.f32.mrf.mxu0
      %v2516 = vadd.f32 0.0, %v2515
      %2517 = vmatprep.mubr.f32.mxu0 0.0
      %2518 = vmatmul.mubr.f32.gmra.mxu0 %v2388
      %v2519 = vpop.f32.mrf.mxu0
      %v2520 = vadd.f32 0.0, %v2519
      %v2521 = vpop.f32.mrf.mxu0
      %v2522 = vadd.f32 0.0, %v2521
      %2523 = vmatprep.mubr.f32.mxu0 0.0
      %2524 = vmatmul.mubr.f32.gmra.mxu0 %v2391
      %v2525 = vpop.f32.mrf.mxu0
      %v2526 = vadd.f32 0.0, %v2525
      %v2527 = vpop.f32.mrf.mxu0
      %v2528 = vadd.f32 0.0, %v2527
      %2529 = vdwg.mxu0
      %2530 = vmatprep.subr.mxu0 0.0
      %2531 = vmatpush1.msra.mxu0 0.0
      %2532 = vmatprep.subr.mxu0 0.0
      %2533 = vmatpush1.msra.mxu0 0.0
      %2534 = vmatprep.subr.mxu0 0.0
      %2535 = vmatpush1.msra.mxu0 0.0
      %2536 = vmatprep.subr.mxu0 0.0
      %2537 = vmatpush1.msra.mxu0 0.0
      %2538 = vmatprep.subr.mxu0 0.0
      %2539 = vmatpush1.msra.mxu0 0.0
      %2540 = vmatprep.subr.mxu0 0.0
      %2541 = vmatpush1.msra.mxu0 0.0
      %2542 = vmatprep.subr.mxu0 0.0
      %2543 = vmatpush1.msra.mxu0 0.0
      %2544 = vmatprep.subr.mxu0 0.0
      %2545 = vmatpush1.msra.mxu0 0.0
      %2546 = vmatprep.subr.mxu0 0.0
      %2547 = vmatpush1.msra.mxu0 %v2356
      %2548 = vmatprep.subr.mxu0 0.0
      %2549 = vmatpush1.msra.mxu0 %v2353
      %2550 = vmatprep.subr.mxu0 0.0
      %2551 = vmatpush1.msra.mxu0 %v2350
      %2552 = vmatprep.subr.mxu0 0.0
      %2553 = vmatpush1.msra.mxu0 %v2347
      %2554 = vmatprep.subr.mxu0 0.0
      %2555 = vmatpush1.msra.mxu0 %v2344
      %2556 = vmatprep.subr.mxu0 0.0
      %2557 = vmatpush1.msra.mxu0 %v2341
      %2558 = vmatprep.subr.mxu0 0.0
      %2559 = vmatpush1.msra.mxu0 %v2338
      %2560 = vmatprep.subr.mxu0 0.0
      %2561 = vmatpush1.msra.mxu0 %v2335
      %2562 = vmatprep.subr.mxu0 0.0
      %2563 = vmatpush2.msra.mxu0 0.0
      %2564 = vmatprep.subr.mxu0 0.0
      %2565 = vmatpush2.msra.mxu0 0.0
      %2566 = vmatprep.subr.mxu0 0.0
      %2567 = vmatpush2.msra.mxu0 0.0
      %2568 = vmatprep.subr.mxu0 0.0
      %2569 = vmatpush2.msra.mxu0 0.0
      %2570 = vmatprep.subr.mxu0 0.0
      %2571 = vmatpush2.msra.mxu0 0.0
      %2572 = vmatprep.subr.mxu0 0.0
      %2573 = vmatpush2.msra.mxu0 0.0
      %2574 = vmatprep.subr.mxu0 0.0
      %2575 = vmatpush2.msra.mxu0 0.0
      %2576 = vmatprep.subr.mxu0 0.0
      %2577 = vmatpush2.msra.mxu0 0.0
      %2578 = vmatprep.subr.mxu0 0.0
      %2579 = vmatpush2.msra.mxu0 0.0
      %2580 = vmatprep.subr.mxu0 0.0
      %2581 = vmatpush2.msra.mxu0 0.0
      %2582 = vmatprep.subr.mxu0 0.0
      %2583 = vmatpush2.msra.mxu0 0.0
      %2584 = vmatprep.subr.mxu0 0.0
      %2585 = vmatpush2.msra.mxu0 0.0
      %2586 = vmatprep.subr.mxu0 0.0
      %2587 = vmatpush2.msra.mxu0 0.0
      %2588 = vmatprep.subr.mxu0 0.0
      %2589 = vmatpush2.msra.mxu0 0.0
      %2590 = vmatprep.subr.mxu0 0.0
      %2591 = vmatpush2.msra.mxu0 0.0
      %2592 = vmatprep.subr.mxu0 0.0
      %2593 = vmatpush2.msra.mxu0 0.0
      %2594 = vmatprep.mubr.f32.mxu0 0.0
      %2595 = vmatmul.mubr.f32.gmra.mxu0 %v2358
      %v2596 = vpop.f32.mrf.mxu0
      %v2597 = vadd.f32 0.0, %v2596
      %v2598 = vpop.f32.mrf.mxu0
      %2599 = vmatprep.mubr.f32.mxu0 0.0
      %2600 = vmatmul.mubr.f32.gmra.mxu0 %v2361
      %v2601 = vpop.f32.mrf.mxu0
      %v2602 = vadd.f32 0.0, %v2601
      %v2603 = vpop.f32.mrf.mxu0
      %2604 = vmatprep.mubr.f32.mxu0 0.0
      %2605 = vmatmul.mubr.f32.gmra.mxu0 %v2364
      %v2606 = vpop.f32.mrf.mxu0
      %v2607 = vadd.f32 0.0, %v2606
      %v2608 = vpop.f32.mrf.mxu0
      %2609 = vmatprep.mubr.f32.mxu0 0.0
      %2610 = vmatmul.mubr.f32.gmra.mxu0 %v2367
      %v2611 = vpop.f32.mrf.mxu0
      %v2612 = vadd.f32 0.0, %v2611
      %v2613 = vpop.f32.mrf.mxu0
      %2614 = vmatprep.mubr.f32.mxu0 0.0
      %2615 = vmatmul.mubr.f32.gmra.mxu0 %v2370
      %v2616 = vpop.f32.mrf.mxu0
      %v2617 = vadd.f32 0.0, %v2616
      %v2618 = vpop.f32.mrf.mxu0
      %2619 = vmatprep.mubr.f32.mxu0 0.0
      %2620 = vmatmul.mubr.f32.gmra.mxu0 %v2373
      %v2621 = vpop.f32.mrf.mxu0
      %v2622 = vadd.f32 0.0, %v2621
      %v2623 = vpop.f32.mrf.mxu0
      %2624 = vmatprep.mubr.f32.mxu0 0.0
      %2625 = vmatmul.mubr.f32.gmra.mxu0 %v2376
      %v2626 = vpop.f32.mrf.mxu0
      %v2627 = vadd.f32 0.0, %v2626
      %v2628 = vpop.f32.mrf.mxu0
      %2629 = vmatprep.mubr.f32.mxu0 0.0
      %2630 = vmatmul.mubr.f32.gmra.mxu0 %v2379
      %v2631 = vpop.f32.mrf.mxu0
      %v2632 = vadd.f32 0.0, %v2631
      %v2633 = vpop.f32.mrf.mxu0
      %2634 = vmatprep.mubr.f32.mxu0 0.0
      %2635 = vmatmul.mubr.f32.gmra.mxu0 %v2382
      %v2636 = vpop.f32.mrf.mxu0
      %v2637 = vadd.f32 0.0, %v2636
      %v2638 = vpop.f32.mrf.mxu0
      %2639 = vmatprep.mubr.f32.mxu0 0.0
      %2640 = vmatmul.mubr.f32.gmra.mxu0 %v2385
      %v2641 = vpop.f32.mrf.mxu0
      %v2642 = vadd.f32 0.0, %v2641
      %v2643 = vpop.f32.mrf.mxu0
      %2644 = vmatprep.mubr.f32.mxu0 0.0
      %2645 = vmatmul.mubr.f32.gmra.mxu0 %v2388
      %v2646 = vpop.f32.mrf.mxu0
      %v2647 = vadd.f32 0.0, %v2646
      %v2648 = vpop.f32.mrf.mxu0
      %2649 = vmatprep.mubr.f32.mxu0 0.0
      %2650 = vmatmul.mubr.f32.gmra.mxu0 %v2391
      %v2651 = vpop.f32.mrf.mxu0
      %v2652 = vadd.f32 0.0, %v2651
      %v2653 = vpop.f32.mrf.mxu0
      %2654 = vdwg.mxu0
      %v2655 = vadd.f32 %v2284, %v2460
      %v2656 = vadd.f32 %v2285, %v2462
      %v2657 = vadd.f32 %v2286, %v2597
      %v2658 = vadd.f32 %v2287, %v2466
      %v2659 = vadd.f32 %v2288, %v2468
      %v2660 = vadd.f32 %v2289, %v2602
      %v2661 = vadd.f32 %v2290, %v2472
      %v2662 = vadd.f32 %v2291, %v2474
      %v2663 = vadd.f32 %v2292, %v2607
      %v2664 = vadd.f32 %v2293, %v2478
      %v2665 = vadd.f32 %v2294, %v2480
      %v2666 = vadd.f32 %v2295, %v2612
      %v2667 = vadd.f32 %v2296, %v2484
      %v2668 = vadd.f32 %v2297, %v2486
      %v2669 = vadd.f32 %v2298, %v2617
      %v2670 = vadd.f32 %v2299, %v2490
      %v2671 = vadd.f32 %v2300, %v2492
      %v2672 = vadd.f32 %v2301, %v2622
      %v2673 = vadd.f32 %v2302, %v2496
      %v2674 = vadd.f32 %v2303, %v2498
      %v2675 = vadd.f32 %v2304, %v2627
      %v2676 = vadd.f32 %v2305, %v2502
      %v2677 = vadd.f32 %v2306, %v2504
      %v2678 = vadd.f32 %v2307, %v2632
      %v2679 = vadd.f32 %v2308, %v2508
      %v2680 = vadd.f32 %v2309, %v2510
      %v2681 = vadd.f32 %v2310, %v2637
      %v2682 = vadd.f32 %v2311, %v2514
      %v2683 = vadd.f32 %v2312, %v2516
      %v2684 = vadd.f32 %v2313, %v2642
      %v2685 = vadd.f32 %v2314, %v2520
      %v2686 = vadd.f32 %v2315, %v2522
      %v2687 = vadd.f32 %v2316, %v2647
      %v2688 = vadd.f32 %v2317, %v2526
      %v2689 = vadd.f32 %v2318, %v2528
      %v2690 = vadd.f32 %v2319, %v2652
      %v2691 = vld [vmem:[#allocation2 + $0x7] sm:$0xff]
      %v2692 = vld [vmem:[#allocation2 + $0xf] sm:$0xff]
      %v2693 = vld [vmem:[#allocation2 + $0x17] sm:$0xff]
      %v2694 = vld [vmem:[#allocation2 + $0x1f] sm:$0xff]
      %v2695 = vld [vmem:[#allocation2 + $0x27] sm:$0xff]
      %v2696 = vld [vmem:[#allocation2 + $0x2f] sm:$0xff]
      %v2697 = vld [vmem:[#allocation2 + $0x37] sm:$0xff]
      %v2698 = vld [vmem:[#allocation2 + $0x3f] sm:$0xff]
      %v2699 = vld [vmem:[#allocation2 + $0x47] sm:$0xff]
      %v2700 = vld [vmem:[#allocation2 + $0x4f] sm:$0xff]
      %v2701 = vld [vmem:[#allocation2 + $0x57] sm:$0xff]
      %v2702 = vld [vmem:[#allocation2 + $0x5f] sm:$0xff]
      %s2703 = scalar_lea.vmem %s2, 1152
      %v2704 = vld [vmem:[%s2703] sm:$0xff]
      %v2705 = vld [vmem:[%s2703 + $0x8] sm:$0xff]
      %v2706 = vld [vmem:[%s2703 + $0x10] sm:$0xff]
      %v2707 = vld [vmem:[%s2703 + $0x18] sm:$0xff]
      %v2708 = vld [vmem:[%s2703 + $0x20] sm:$0xff]
      %v2709 = vld [vmem:[%s2703 + $0x28] sm:$0xff]
      %v2710 = vld [vmem:[%s2703 + $0x30] sm:$0xff]
      %v2711 = vld [vmem:[%s2703 + $0x38] sm:$0xff]
      %v2712 = vld [vmem:[%s2703 + $0x40] sm:$0xff]
      %v2713 = vld [vmem:[%s2703 + $0x48] sm:$0xff]
      %v2714 = vld [vmem:[%s2703 + $0x50] sm:$0xff]
      %v2715 = vld [vmem:[%s2703 + $0x58] sm:$0xff]
      %v2716 = vld [vmem:[%s2703 + $0x60] sm:$0xff]
      %v2717 = vld [vmem:[%s2703 + $0x68] sm:$0xff]
      %v2718 = vld [vmem:[%s2703 + $0x70] sm:$0xff]
      %v2719 = vld [vmem:[%s2703 + $0x78] sm:$0xff]
      %v2720 = vld [vmem:[%s2703 + $0x80] sm:$0xff]
      %v2721 = vld [vmem:[%s2703 + $0x88] sm:$0xff]
      %v2722 = vld [vmem:[%s2703 + $0x90] sm:$0xff]
      %v2723 = vld [vmem:[%s2703 + $0x98] sm:$0xff]
      %v2724 = vld [vmem:[%s2703 + $0xa0] sm:$0xff]
      %v2725 = vld [vmem:[%s2703 + $0xa8] sm:$0xff]
      %v2726 = vld [vmem:[%s2703 + $0xb0] sm:$0xff]
      %v2727 = vld [vmem:[%s2703 + $0xb8] sm:$0xff]
      %v2729 = vsel %vm524, %v2691, 0
      %v2732 = vsel %vm524, %v2692, 0
      %v2735 = vsel %vm524, %v2693, 0
      %v2738 = vsel %vm524, %v2694, 0
      %v2741 = vsel %vm524, %v2695, 0
      %v2744 = vsel %vm524, %v2696, 0
      %v2747 = vsel %vm524, %v2697, 0
      %v2750 = vsel %vm524, %v2698, 0
      %v2753 = vsel %vm524, %v2699, 0
      %v2756 = vsel %vm524, %v2700, 0
      %v2759 = vsel %vm524, %v2701, 0
      %v2762 = vsel %vm524, %v2702, 0
      %2764 = vmatprep.subr.mxu0 0.0
      %2765 = vmatpush1.msra.mxu0 0.0
      %2766 = vmatprep.subr.mxu0 0.0
      %2767 = vmatpush1.msra.mxu0 0.0
      %2768 = vmatprep.subr.mxu0 0.0
      %2769 = vmatpush1.msra.mxu0 0.0
      %2770 = vmatprep.subr.mxu0 0.0
      %2771 = vmatpush1.msra.mxu0 0.0
      %2772 = vmatprep.subr.mxu0 0.0
      %2773 = vmatpush1.msra.mxu0 0.0
      %2774 = vmatprep.subr.mxu0 0.0
      %2775 = vmatpush1.msra.mxu0 0.0
      %2776 = vmatprep.subr.mxu0 0.0
      %2777 = vmatpush1.msra.mxu0 0.0
      %2778 = vmatprep.subr.mxu0 0.0
      %2779 = vmatpush1.msra.mxu0 0.0
      %2780 = vmatprep.subr.mxu0 %v2726
      %2781 = vmatpush1.msra.mxu0 %v2725
      %2782 = vmatprep.subr.mxu0 %v2723
      %2783 = vmatpush1.msra.mxu0 %v2722
      %2784 = vmatprep.subr.mxu0 %v2720
      %2785 = vmatpush1.msra.mxu0 %v2719
      %2786 = vmatprep.subr.mxu0 %v2717
      %2787 = vmatpush1.msra.mxu0 %v2716
      %2788 = vmatprep.subr.mxu0 %v2714
      %2789 = vmatpush1.msra.mxu0 %v2713
      %2790 = vmatprep.subr.mxu0 %v2711
      %2791 = vmatpush1.msra.mxu0 %v2710
      %2792 = vmatprep.subr.mxu0 %v2708
      %2793 = vmatpush1.msra.mxu0 %v2707
      %2794 = vmatprep.subr.mxu0 %v2705
      %2795 = vmatpush1.msra.mxu0 %v2704
      %2796 = vmatprep.subr.mxu0 0.0
      %2797 = vmatpush2.msra.mxu0 0.0
      %2798 = vmatprep.subr.mxu0 0.0
      %2799 = vmatpush2.msra.mxu0 0.0
      %2800 = vmatprep.subr.mxu0 0.0
      %2801 = vmatpush2.msra.mxu0 0.0
      %2802 = vmatprep.subr.mxu0 0.0
      %2803 = vmatpush2.msra.mxu0 0.0
      %2804 = vmatprep.subr.mxu0 0.0
      %2805 = vmatpush2.msra.mxu0 0.0
      %2806 = vmatprep.subr.mxu0 0.0
      %2807 = vmatpush2.msra.mxu0 0.0
      %2808 = vmatprep.subr.mxu0 0.0
      %2809 = vmatpush2.msra.mxu0 0.0
      %2810 = vmatprep.subr.mxu0 0.0
      %2811 = vmatpush2.msra.mxu0 0.0
      %2812 = vmatprep.subr.mxu0 0.0
      %2813 = vmatpush2.msra.mxu0 0.0
      %2814 = vmatprep.subr.mxu0 0.0
      %2815 = vmatpush2.msra.mxu0 0.0
      %2816 = vmatprep.subr.mxu0 0.0
      %2817 = vmatpush2.msra.mxu0 0.0
      %2818 = vmatprep.subr.mxu0 0.0
      %2819 = vmatpush2.msra.mxu0 0.0
      %2820 = vmatprep.subr.mxu0 0.0
      %2821 = vmatpush2.msra.mxu0 0.0
      %2822 = vmatprep.subr.mxu0 0.0
      %2823 = vmatpush2.msra.mxu0 0.0
      %2824 = vmatprep.subr.mxu0 0.0
      %2825 = vmatpush2.msra.mxu0 0.0
      %2826 = vmatprep.subr.mxu0 0.0
      %2827 = vmatpush2.msra.mxu0 0.0
      %2828 = vmatprep.mubr.f32.mxu0 0.0
      %2829 = vmatmul.mubr.f32.gmra.mxu0 %v2729
      %v2830 = vpop.f32.mrf.mxu0
      %v2831 = vadd.f32 0.0, %v2830
      %v2832 = vpop.f32.mrf.mxu0
      %v2833 = vadd.f32 0.0, %v2832
      %2834 = vmatprep.mubr.f32.mxu0 0.0
      %2835 = vmatmul.mubr.f32.gmra.mxu0 %v2732
      %v2836 = vpop.f32.mrf.mxu0
      %v2837 = vadd.f32 0.0, %v2836
      %v2838 = vpop.f32.mrf.mxu0
      %v2839 = vadd.f32 0.0, %v2838
      %2840 = vmatprep.mubr.f32.mxu0 0.0
      %2841 = vmatmul.mubr.f32.gmra.mxu0 %v2735
      %v2842 = vpop.f32.mrf.mxu0
      %v2843 = vadd.f32 0.0, %v2842
      %v2844 = vpop.f32.mrf.mxu0
      %v2845 = vadd.f32 0.0, %v2844
      %2846 = vmatprep.mubr.f32.mxu0 0.0
      %2847 = vmatmul.mubr.f32.gmra.mxu0 %v2738
      %v2848 = vpop.f32.mrf.mxu0
      %v2849 = vadd.f32 0.0, %v2848
      %v2850 = vpop.f32.mrf.mxu0
      %v2851 = vadd.f32 0.0, %v2850
      %2852 = vmatprep.mubr.f32.mxu0 0.0
      %2853 = vmatmul.mubr.f32.gmra.mxu0 %v2741
      %v2854 = vpop.f32.mrf.mxu0
      %v2855 = vadd.f32 0.0, %v2854
      %v2856 = vpop.f32.mrf.mxu0
      %v2857 = vadd.f32 0.0, %v2856
      %2858 = vmatprep.mubr.f32.mxu0 0.0
      %2859 = vmatmul.mubr.f32.gmra.mxu0 %v2744
      %v2860 = vpop.f32.mrf.mxu0
      %v2861 = vadd.f32 0.0, %v2860
      %v2862 = vpop.f32.mrf.mxu0
      %v2863 = vadd.f32 0.0, %v2862
      %2864 = vmatprep.mubr.f32.mxu0 0.0
      %2865 = vmatmul.mubr.f32.gmra.mxu0 %v2747
      %v2866 = vpop.f32.mrf.mxu0
      %v2867 = vadd.f32 0.0, %v2866
      %v2868 = vpop.f32.mrf.mxu0
      %v2869 = vadd.f32 0.0, %v2868
      %2870 = vmatprep.mubr.f32.mxu0 0.0
      %2871 = vmatmul.mubr.f32.gmra.mxu0 %v2750
      %v2872 = vpop.f32.mrf.mxu0
      %v2873 = vadd.f32 0.0, %v2872
      %v2874 = vpop.f32.mrf.mxu0
      %v2875 = vadd.f32 0.0, %v2874
      %2876 = vmatprep.mubr.f32.mxu0 0.0
      %2877 = vmatmul.mubr.f32.gmra.mxu0 %v2753
      %v2878 = vpop.f32.mrf.mxu0
      %v2879 = vadd.f32 0.0, %v2878
      %v2880 = vpop.f32.mrf.mxu0
      %v2881 = vadd.f32 0.0, %v2880
      %2882 = vmatprep.mubr.f32.mxu0 0.0
      %2883 = vmatmul.mubr.f32.gmra.mxu0 %v2756
      %v2884 = vpop.f32.mrf.mxu0
      %v2885 = vadd.f32 0.0, %v2884
      %v2886 = vpop.f32.mrf.mxu0
      %v2887 = vadd.f32 0.0, %v2886
      %2888 = vmatprep.mubr.f32.mxu0 0.0
      %2889 = vmatmul.mubr.f32.gmra.mxu0 %v2759
      %v2890 = vpop.f32.mrf.mxu0
      %v2891 = vadd.f32 0.0, %v2890
      %v2892 = vpop.f32.mrf.mxu0
      %v2893 = vadd.f32 0.0, %v2892
      %2894 = vmatprep.mubr.f32.mxu0 0.0
      %2895 = vmatmul.mubr.f32.gmra.mxu0 %v2762
      %v2896 = vpop.f32.mrf.mxu0
      %v2897 = vadd.f32 0.0, %v2896
      %v2898 = vpop.f32.mrf.mxu0
      %v2899 = vadd.f32 0.0, %v2898
      %2900 = vdwg.mxu0
      %2901 = vmatprep.subr.mxu0 0.0
      %2902 = vmatpush1.msra.mxu0 0.0
      %2903 = vmatprep.subr.mxu0 0.0
      %2904 = vmatpush1.msra.mxu0 0.0
      %2905 = vmatprep.subr.mxu0 0.0
      %2906 = vmatpush1.msra.mxu0 0.0
      %2907 = vmatprep.subr.mxu0 0.0
      %2908 = vmatpush1.msra.mxu0 0.0
      %2909 = vmatprep.subr.mxu0 0.0
      %2910 = vmatpush1.msra.mxu0 0.0
      %2911 = vmatprep.subr.mxu0 0.0
      %2912 = vmatpush1.msra.mxu0 0.0
      %2913 = vmatprep.subr.mxu0 0.0
      %2914 = vmatpush1.msra.mxu0 0.0
      %2915 = vmatprep.subr.mxu0 0.0
      %2916 = vmatpush1.msra.mxu0 0.0
      %2917 = vmatprep.subr.mxu0 0.0
      %2918 = vmatpush1.msra.mxu0 %v2727
      %2919 = vmatprep.subr.mxu0 0.0
      %2920 = vmatpush1.msra.mxu0 %v2724
      %2921 = vmatprep.subr.mxu0 0.0
      %2922 = vmatpush1.msra.mxu0 %v2721
      %2923 = vmatprep.subr.mxu0 0.0
      %2924 = vmatpush1.msra.mxu0 %v2718
      %2925 = vmatprep.subr.mxu0 0.0
      %2926 = vmatpush1.msra.mxu0 %v2715
      %2927 = vmatprep.subr.mxu0 0.0
      %2928 = vmatpush1.msra.mxu0 %v2712
      %2929 = vmatprep.subr.mxu0 0.0
      %2930 = vmatpush1.msra.mxu0 %v2709
      %2931 = vmatprep.subr.mxu0 0.0
      %2932 = vmatpush1.msra.mxu0 %v2706
      %2933 = vmatprep.subr.mxu0 0.0
      %2934 = vmatpush2.msra.mxu0 0.0
      %2935 = vmatprep.subr.mxu0 0.0
      %2936 = vmatpush2.msra.mxu0 0.0
      %2937 = vmatprep.subr.mxu0 0.0
      %2938 = vmatpush2.msra.mxu0 0.0
      %2939 = vmatprep.subr.mxu0 0.0
      %2940 = vmatpush2.msra.mxu0 0.0
      %2941 = vmatprep.subr.mxu0 0.0
      %2942 = vmatpush2.msra.mxu0 0.0
      %2943 = vmatprep.subr.mxu0 0.0
      %2944 = vmatpush2.msra.mxu0 0.0
      %2945 = vmatprep.subr.mxu0 0.0
      %2946 = vmatpush2.msra.mxu0 0.0
      %2947 = vmatprep.subr.mxu0 0.0
      %2948 = vmatpush2.msra.mxu0 0.0
      %2949 = vmatprep.subr.mxu0 0.0
      %2950 = vmatpush2.msra.mxu0 0.0
      %2951 = vmatprep.subr.mxu0 0.0
      %2952 = vmatpush2.msra.mxu0 0.0
      %2953 = vmatprep.subr.mxu0 0.0
      %2954 = vmatpush2.msra.mxu0 0.0
      %2955 = vmatprep.subr.mxu0 0.0
      %2956 = vmatpush2.msra.mxu0 0.0
      %2957 = vmatprep.subr.mxu0 0.0
      %2958 = vmatpush2.msra.mxu0 0.0
      %2959 = vmatprep.subr.mxu0 0.0
      %2960 = vmatpush2.msra.mxu0 0.0
      %2961 = vmatprep.subr.mxu0 0.0
      %2962 = vmatpush2.msra.mxu0 0.0
      %2963 = vmatprep.subr.mxu0 0.0
      %2964 = vmatpush2.msra.mxu0 0.0
      %2965 = vmatprep.mubr.f32.mxu0 0.0
      %2966 = vmatmul.mubr.f32.gmra.mxu0 %v2729
      %v2967 = vpop.f32.mrf.mxu0
      %v2968 = vadd.f32 0.0, %v2967
      %v2969 = vpop.f32.mrf.mxu0
      %2970 = vmatprep.mubr.f32.mxu0 0.0
      %2971 = vmatmul.mubr.f32.gmra.mxu0 %v2732
      %v2972 = vpop.f32.mrf.mxu0
      %v2973 = vadd.f32 0.0, %v2972
      %v2974 = vpop.f32.mrf.mxu0
      %2975 = vmatprep.mubr.f32.mxu0 0.0
      %2976 = vmatmul.mubr.f32.gmra.mxu0 %v2735
      %v2977 = vpop.f32.mrf.mxu0
      %v2978 = vadd.f32 0.0, %v2977
      %v2979 = vpop.f32.mrf.mxu0
      %2980 = vmatprep.mubr.f32.mxu0 0.0
      %2981 = vmatmul.mubr.f32.gmra.mxu0 %v2738
      %v2982 = vpop.f32.mrf.mxu0
      %v2983 = vadd.f32 0.0, %v2982
      %v2984 = vpop.f32.mrf.mxu0
      %2985 = vmatprep.mubr.f32.mxu0 0.0
      %2986 = vmatmul.mubr.f32.gmra.mxu0 %v2741
      %v2987 = vpop.f32.mrf.mxu0
      %v2988 = vadd.f32 0.0, %v2987
      %v2989 = vpop.f32.mrf.mxu0
      %2990 = vmatprep.mubr.f32.mxu0 0.0
      %2991 = vmatmul.mubr.f32.gmra.mxu0 %v2744
      %v2992 = vpop.f32.mrf.mxu0
      %v2993 = vadd.f32 0.0, %v2992
      %v2994 = vpop.f32.mrf.mxu0
      %2995 = vmatprep.mubr.f32.mxu0 0.0
      %2996 = vmatmul.mubr.f32.gmra.mxu0 %v2747
      %v2997 = vpop.f32.mrf.mxu0
      %v2998 = vadd.f32 0.0, %v2997
      %v2999 = vpop.f32.mrf.mxu0
      %3000 = vmatprep.mubr.f32.mxu0 0.0
      %3001 = vmatmul.mubr.f32.gmra.mxu0 %v2750
      %v3002 = vpop.f32.mrf.mxu0
      %v3003 = vadd.f32 0.0, %v3002
      %v3004 = vpop.f32.mrf.mxu0
      %3005 = vmatprep.mubr.f32.mxu0 0.0
      %3006 = vmatmul.mubr.f32.gmra.mxu0 %v2753
      %v3007 = vpop.f32.mrf.mxu0
      %v3008 = vadd.f32 0.0, %v3007
      %v3009 = vpop.f32.mrf.mxu0
      %3010 = vmatprep.mubr.f32.mxu0 0.0
      %3011 = vmatmul.mubr.f32.gmra.mxu0 %v2756
      %v3012 = vpop.f32.mrf.mxu0
      %v3013 = vadd.f32 0.0, %v3012
      %v3014 = vpop.f32.mrf.mxu0
      %3015 = vmatprep.mubr.f32.mxu0 0.0
      %3016 = vmatmul.mubr.f32.gmra.mxu0 %v2759
      %v3017 = vpop.f32.mrf.mxu0
      %v3018 = vadd.f32 0.0, %v3017
      %v3019 = vpop.f32.mrf.mxu0
      %3020 = vmatprep.mubr.f32.mxu0 0.0
      %3021 = vmatmul.mubr.f32.gmra.mxu0 %v2762
      %v3022 = vpop.f32.mrf.mxu0
      %v3023 = vadd.f32 0.0, %v3022
      %v3024 = vpop.f32.mrf.mxu0
      %3025 = vdwg.mxu0
      %v3026 = vadd.f32 %v2655, %v2831
      %v3027 = vadd.f32 %v2656, %v2833
      %v3028 = vadd.f32 %v2657, %v2968
      %v3029 = vadd.f32 %v2658, %v2837
      %v3030 = vadd.f32 %v2659, %v2839
      %v3031 = vadd.f32 %v2660, %v2973
      %v3032 = vadd.f32 %v2661, %v2843
      %v3033 = vadd.f32 %v2662, %v2845
      %v3034 = vadd.f32 %v2663, %v2978
      %v3035 = vadd.f32 %v2664, %v2849
      %v3036 = vadd.f32 %v2665, %v2851
      %v3037 = vadd.f32 %v2666, %v2983
      %v3038 = vadd.f32 %v2667, %v2855
      %v3039 = vadd.f32 %v2668, %v2857
      %v3040 = vadd.f32 %v2669, %v2988
      %v3041 = vadd.f32 %v2670, %v2861
      %v3042 = vadd.f32 %v2671, %v2863
      %v3043 = vadd.f32 %v2672, %v2993
      %v3044 = vadd.f32 %v2673, %v2867
      %v3045 = vadd.f32 %v2674, %v2869
      %v3046 = vadd.f32 %v2675, %v2998
      %v3047 = vadd.f32 %v2676, %v2873
      %v3048 = vadd.f32 %v2677, %v2875
      %v3049 = vadd.f32 %v2678, %v3003
      %v3050 = vadd.f32 %v2679, %v2879
      %v3051 = vadd.f32 %v2680, %v2881
      %v3052 = vadd.f32 %v2681, %v3008
      %v3053 = vadd.f32 %v2682, %v2885
      %v3054 = vadd.f32 %v2683, %v2887
      %v3055 = vadd.f32 %v2684, %v3013
      %v3056 = vadd.f32 %v2685, %v2891
      %v3057 = vadd.f32 %v2686, %v2893
      %v3058 = vadd.f32 %v2687, %v3018
      %v3059 = vadd.f32 %v2688, %v2897
      %v3060 = vadd.f32 %v2689, %v2899
      %v3061 = vadd.f32 %v2690, %v3023
      %v3062 = vld [vmem:[%s3] sm:$0x7]
      %v3064 = vlaneseq
      %v3065 = vshrl.u32 %v3064, 7
      %v3066 = vsub.s32 0, %v3065
      %v3067 = vrot.slane %v3062, %v3066
      %v3068 = vlaneseq
      %v3069 = vshrl.u32 %v3068, 7
      %v3070 = vsub.s32 1, %v3069
      %v3071 = vrot.slane %v3062, %v3070
      %v3072 = vlaneseq
      %v3073 = vshrl.u32 %v3072, 7
      %v3074 = vsub.s32 2, %v3073
      %v3075 = vrot.slane %v3062, %v3074
      %v3079 = vadd.f32 %v3026, %v3067
      %v3080 = vadd.f32 %v3027, %v3071
      %v3081 = vadd.f32 %v3028, %v3075
      %v3082 = vadd.f32 %v3029, %v3067
      %v3083 = vadd.f32 %v3030, %v3071
      %v3084 = vadd.f32 %v3031, %v3075
      %v3085 = vadd.f32 %v3032, %v3067
      %v3086 = vadd.f32 %v3033, %v3071
      %v3087 = vadd.f32 %v3034, %v3075
      %v3088 = vadd.f32 %v3035, %v3067
      %v3089 = vadd.f32 %v3036, %v3071
      %v3090 = vadd.f32 %v3037, %v3075
      %v3091 = vadd.f32 %v3038, %v3067
      %v3092 = vadd.f32 %v3039, %v3071
      %v3093 = vadd.f32 %v3040, %v3075
      %v3094 = vadd.f32 %v3041, %v3067
      %v3095 = vadd.f32 %v3042, %v3071
      %v3096 = vadd.f32 %v3043, %v3075
      %v3097 = vadd.f32 %v3044, %v3067
      %v3098 = vadd.f32 %v3045, %v3071
      %v3099 = vadd.f32 %v3046, %v3075
      %v3100 = vadd.f32 %v3047, %v3067
      %v3101 = vadd.f32 %v3048, %v3071
      %v3102 = vadd.f32 %v3049, %v3075
      %v3103 = vadd.f32 %v3050, %v3067
      %v3104 = vadd.f32 %v3051, %v3071
      %v3105 = vadd.f32 %v3052, %v3075
      %v3106 = vadd.f32 %v3053, %v3067
      %v3107 = vadd.f32 %v3054, %v3071
      %v3108 = vadd.f32 %v3055, %v3075
      %v3109 = vadd.f32 %v3056, %v3067
      %v3110 = vadd.f32 %v3057, %v3071
      %v3111 = vadd.f32 %v3058, %v3075
      %v3112 = vadd.f32 %v3059, %v3067
      %v3113 = vadd.f32 %v3060, %v3071
      %v3114 = vadd.f32 %v3061, %v3075
      %v3115 = vmax.f32 %v3079, 0.0
      %v3116 = vmax.f32 %v3080, 0.0
      %v3117 = vmax.f32 %v3081, 0.0
      %v3118 = vmax.f32 %v3082, 0.0
      %v3119 = vmax.f32 %v3083, 0.0
      %v3120 = vmax.f32 %v3084, 0.0
      %v3121 = vmax.f32 %v3085, 0.0
      %v3122 = vmax.f32 %v3086, 0.0
      %v3123 = vmax.f32 %v3087, 0.0
      %v3124 = vmax.f32 %v3088, 0.0
      %v3125 = vmax.f32 %v3089, 0.0
      %v3126 = vmax.f32 %v3090, 0.0
      %v3127 = vmax.f32 %v3091, 0.0
      %v3128 = vmax.f32 %v3092, 0.0
      %v3129 = vmax.f32 %v3093, 0.0
      %v3130 = vmax.f32 %v3094, 0.0
      %v3131 = vmax.f32 %v3095, 0.0
      %v3132 = vmax.f32 %v3096, 0.0
      %v3133 = vmax.f32 %v3097, 0.0
      %v3134 = vmax.f32 %v3098, 0.0
      %v3135 = vmax.f32 %v3099, 0.0
      %v3136 = vmax.f32 %v3100, 0.0
      %v3137 = vmax.f32 %v3101, 0.0
      %v3138 = vmax.f32 %v3102, 0.0
      %v3139 = vmax.f32 %v3103, 0.0
      %v3140 = vmax.f32 %v3104, 0.0
      %v3141 = vmax.f32 %v3105, 0.0
      %v3142 = vmax.f32 %v3106, 0.0
      %v3143 = vmax.f32 %v3107, 0.0
      %v3144 = vmax.f32 %v3108, 0.0
      %v3145 = vmax.f32 %v3109, 0.0
      %v3146 = vmax.f32 %v3110, 0.0
      %v3147 = vmax.f32 %v3111, 0.0
      %v3148 = vmax.f32 %v3112, 0.0
      %v3149 = vmax.f32 %v3113, 0.0
      %v3150 = vmax.f32 %v3114, 0.0
      %3151 = vst [vmem:[#allocation3] sm:$0xf] 0.0
      %3153 = vset.pattern.permute.xlu0 0
      %3154 = vperm.xlu0 %3153, %v510
      %v3155 = vpop.permute.xlu0 %3154
      %3158 = vset.pattern.permute.xlu0 0
      %3159 = vperm.xlu0 %3158, %v511
      %v3160 = vpop.permute.xlu0 %3159
      %3163 = vset.pattern.permute.xlu0 0
      %3164 = vperm.xlu0 %3163, %v512
      %v3165 = vpop.permute.xlu0 %3164
      %3168 = vset.pattern.permute.xlu0 0
      %3169 = vperm.xlu0 %3168, %v513
      %v3170 = vpop.permute.xlu0 %3169
      %3173 = vset.pattern.permute.xlu0 0
      %3174 = vperm.xlu0 %3173, %v514
      %v3175 = vpop.permute.xlu0 %3174
      %3178 = vset.pattern.permute.xlu0 0
      %3179 = vperm.xlu0 %3178, %v515
      %v3180 = vpop.permute.xlu0 %3179
      %3183 = vset.pattern.permute.xlu0 0
      %3184 = vperm.xlu0 %3183, %v516
      %v3185 = vpop.permute.xlu0 %3184
      %3188 = vset.pattern.permute.xlu0 0
      %3189 = vperm.xlu0 %3188, %v517
      %v3190 = vpop.permute.xlu0 %3189
      %3193 = vset.pattern.permute.xlu0 0
      %3194 = vperm.xlu0 %3193, %v518
      %v3195 = vpop.permute.xlu0 %3194
      %3198 = vset.pattern.permute.xlu0 0
      %3199 = vperm.xlu0 %3198, %v519
      %v3200 = vpop.permute.xlu0 %3199
      %3203 = vset.pattern.permute.xlu0 0
      %3204 = vperm.xlu0 %3203, %v520
      %v3205 = vpop.permute.xlu0 %3204
      %3208 = vset.pattern.permute.xlu0 0
      %3209 = vperm.xlu0 %3208, %v521
      %v3210 = vpop.permute.xlu0 %3209
      %v3212 = vmul.f32 %v3115, %v3155
      %v3213 = vmul.f32 %v3118, %v3160
      %v3214 = vmul.f32 %v3121, %v3165
      %v3215 = vmul.f32 %v3124, %v3170
      %v3216 = vmul.f32 %v3127, %v3175
      %v3217 = vmul.f32 %v3130, %v3180
      %v3218 = vmul.f32 %v3133, %v3185
      %v3219 = vmul.f32 %v3136, %v3190
      %v3220 = vmul.f32 %v3139, %v3195
      %v3221 = vmul.f32 %v3142, %v3200
      %v3222 = vmul.f32 %v3145, %v3205
      %v3223 = vmul.f32 %v3148, %v3210
      %3224 = vst [vmem:[#allocation3 + $0x4] sm:$0xff] %v3212
      %3225 = vst [vmem:[#allocation3 + $0xc] sm:$0xff] %v3213
      %3226 = vst [vmem:[#allocation3 + $0x14] sm:$0xff] %v3214
      %3227 = vst [vmem:[#allocation3 + $0x1c] sm:$0xff] %v3215
      %3228 = vst [vmem:[#allocation3 + $0x24] sm:$0xff] %v3216
      %3229 = vst [vmem:[#allocation3 + $0x2c] sm:$0xff] %v3217
      %3230 = vst [vmem:[#allocation3 + $0x34] sm:$0xff] %v3218
      %3231 = vst [vmem:[#allocation3 + $0x3c] sm:$0xff] %v3219
      %3232 = vst [vmem:[#allocation3 + $0x44] sm:$0xff] %v3220
      %3233 = vst [vmem:[#allocation3 + $0x4c] sm:$0xff] %v3221
      %3234 = vst [vmem:[#allocation3 + $0x54] sm:$0xff] %v3222
      %3235 = vst [vmem:[#allocation3 + $0x5c] sm:$0xff] %v3223
      %3236 = vst [vmem:[#allocation3 + $0x64] sm:$0xf] 0.0
      %v3237 = vld [vmem:[#allocation3 + $0x3] sm:$0xff]
      %v3238 = vld [vmem:[#allocation3 + $0xb] sm:$0xff]
      %v3239 = vld [vmem:[#allocation3 + $0x13] sm:$0xff]
      %v3240 = vld [vmem:[#allocation3 + $0x1b] sm:$0xff]
      %v3241 = vld [vmem:[#allocation3 + $0x23] sm:$0xff]
      %v3242 = vld [vmem:[#allocation3 + $0x2b] sm:$0xff]
      %v3243 = vld [vmem:[#allocation3 + $0x33] sm:$0xff]
      %v3244 = vld [vmem:[#allocation3 + $0x3b] sm:$0xff]
      %v3245 = vld [vmem:[#allocation3 + $0x43] sm:$0xff]
      %v3246 = vld [vmem:[#allocation3 + $0x4b] sm:$0xff]
      %v3247 = vld [vmem:[#allocation3 + $0x53] sm:$0xff]
      %v3248 = vld [vmem:[#allocation3 + $0x5b] sm:$0xff]
      %v3249 = vld [vmem:[%s4] sm:$0xff]
      %v3250 = vld [vmem:[%s4 + $0x8] sm:$0xff]
      %v3251 = vld [vmem:[%s4 + $0x10] sm:$0xff]
      %v3252 = vld [vmem:[%s4 + $0x18] sm:$0xff]
      %v3253 = vld [vmem:[%s4 + $0x20] sm:$0xff]
      %v3254 = vld [vmem:[%s4 + $0x28] sm:$0xff]
      %v3255 = vld [vmem:[%s4 + $0x30] sm:$0xff]
      %v3256 = vld [vmem:[%s4 + $0x38] sm:$0xff]
      %v3257 = vld [vmem:[%s4 + $0x40] sm:$0xff]
      %v3258 = vld [vmem:[%s4 + $0x48] sm:$0xff]
      %v3259 = vld [vmem:[%s4 + $0x50] sm:$0xff]
      %v3260 = vld [vmem:[%s4 + $0x58] sm:$0xff]
      %v3261 = vld [vmem:[%s4 + $0x60] sm:$0xff]
      %v3262 = vld [vmem:[%s4 + $0x68] sm:$0xff]
      %v3263 = vld [vmem:[%s4 + $0x70] sm:$0xff]
      %v3264 = vld [vmem:[%s4 + $0x78] sm:$0xff]
      %v3265 = vld [vmem:[#allocation3 + $0x4] sm:$0xff]
      %v3266 = vld [vmem:[#allocation3 + $0xc] sm:$0xff]
      %v3267 = vld [vmem:[#allocation3 + $0x14] sm:$0xff]
      %v3268 = vld [vmem:[#allocation3 + $0x1c] sm:$0xff]
      %v3269 = vld [vmem:[#allocation3 + $0x24] sm:$0xff]
      %v3270 = vld [vmem:[#allocation3 + $0x2c] sm:$0xff]
      %v3271 = vld [vmem:[#allocation3 + $0x34] sm:$0xff]
      %v3272 = vld [vmem:[#allocation3 + $0x3c] sm:$0xff]
      %v3273 = vld [vmem:[#allocation3 + $0x44] sm:$0xff]
      %v3274 = vld [vmem:[#allocation3 + $0x4c] sm:$0xff]
      %v3275 = vld [vmem:[#allocation3 + $0x54] sm:$0xff]
      %v3276 = vld [vmem:[#allocation3 + $0x5c] sm:$0xff]
      %s3277 = scalar_lea.vmem %s4, 128
      %v3278 = vld [vmem:[%s3277] sm:$0xff]
      %v3279 = vld [vmem:[%s3277 + $0x8] sm:$0xff]
      %v3280 = vld [vmem:[%s3277 + $0x10] sm:$0xff]
      %v3281 = vld [vmem:[%s3277 + $0x18] sm:$0xff]
      %v3282 = vld [vmem:[%s3277 + $0x20] sm:$0xff]
      %v3283 = vld [vmem:[%s3277 + $0x28] sm:$0xff]
      %v3284 = vld [vmem:[%s3277 + $0x30] sm:$0xff]
      %v3285 = vld [vmem:[%s3277 + $0x38] sm:$0xff]
      %v3286 = vld [vmem:[%s3277 + $0x40] sm:$0xff]
      %v3287 = vld [vmem:[%s3277 + $0x48] sm:$0xff]
      %v3288 = vld [vmem:[%s3277 + $0x50] sm:$0xff]
      %v3289 = vld [vmem:[%s3277 + $0x58] sm:$0xff]
      %v3290 = vld [vmem:[%s3277 + $0x60] sm:$0xff]
      %v3291 = vld [vmem:[%s3277 + $0x68] sm:$0xff]
      %v3292 = vld [vmem:[%s3277 + $0x70] sm:$0xff]
      %v3293 = vld [vmem:[%s3277 + $0x78] sm:$0xff]
      %3294 = vmatprep.subr.mxu0 0.0
      %3295 = vmatpush1.msra.mxu0 %v3293
      %3296 = vmatprep.subr.mxu0 0.0
      %3297 = vmatpush1.msra.mxu0 %v3292
      %3298 = vmatprep.subr.mxu0 0.0
      %3299 = vmatpush1.msra.mxu0 %v3291
      %3300 = vmatprep.subr.mxu0 0.0
      %3301 = vmatpush1.msra.mxu0 %v3290
      %3302 = vmatprep.subr.mxu0 0.0
      %3303 = vmatpush1.msra.mxu0 %v3289
      %3304 = vmatprep.subr.mxu0 0.0
      %3305 = vmatpush1.msra.mxu0 %v3288
      %3306 = vmatprep.subr.mxu0 0.0
      %3307 = vmatpush1.msra.mxu0 %v3287
      %3308 = vmatprep.subr.mxu0 0.0
      %3309 = vmatpush1.msra.mxu0 %v3286
      %3310 = vmatprep.subr.mxu0 0.0
      %3311 = vmatpush1.msra.mxu0 %v3285
      %3312 = vmatprep.subr.mxu0 0.0
      %3313 = vmatpush1.msra.mxu0 %v3284
      %3314 = vmatprep.subr.mxu0 0.0
      %3315 = vmatpush1.msra.mxu0 %v3283
      %3316 = vmatprep.subr.mxu0 0.0
      %3317 = vmatpush1.msra.mxu0 %v3282
      %3318 = vmatprep.subr.mxu0 0.0
      %3319 = vmatpush1.msra.mxu0 %v3281
      %3320 = vmatprep.subr.mxu0 0.0
      %3321 = vmatpush1.msra.mxu0 %v3280
      %3322 = vmatprep.subr.mxu0 0.0
      %3323 = vmatpush1.msra.mxu0 %v3279
      %3324 = vmatprep.subr.mxu0 0.0
      %3325 = vmatpush1.msra.mxu0 %v3278
      %3326 = vmatprep.subr.mxu0 0.0
      %3327 = vmatpush2.msra.mxu0 0.0
      %3328 = vmatprep.subr.mxu0 0.0
      %3329 = vmatpush2.msra.mxu0 0.0
      %3330 = vmatprep.subr.mxu0 0.0
      %3331 = vmatpush2.msra.mxu0 0.0
      %3332 = vmatprep.subr.mxu0 0.0
      %3333 = vmatpush2.msra.mxu0 0.0
      %3334 = vmatprep.subr.mxu0 0.0
      %3335 = vmatpush2.msra.mxu0 0.0
      %3336 = vmatprep.subr.mxu0 0.0
      %3337 = vmatpush2.msra.mxu0 0.0
      %3338 = vmatprep.subr.mxu0 0.0
      %3339 = vmatpush2.msra.mxu0 0.0
      %3340 = vmatprep.subr.mxu0 0.0
      %3341 = vmatpush2.msra.mxu0 0.0
      %3342 = vmatprep.subr.mxu0 0.0
      %3343 = vmatpush2.msra.mxu0 0.0
      %3344 = vmatprep.subr.mxu0 0.0
      %3345 = vmatpush2.msra.mxu0 0.0
      %3346 = vmatprep.subr.mxu0 0.0
      %3347 = vmatpush2.msra.mxu0 0.0
      %3348 = vmatprep.subr.mxu0 0.0
      %3349 = vmatpush2.msra.mxu0 0.0
      %3350 = vmatprep.subr.mxu0 0.0
      %3351 = vmatpush2.msra.mxu0 0.0
      %3352 = vmatprep.subr.mxu0 0.0
      %3353 = vmatpush2.msra.mxu0 0.0
      %3354 = vmatprep.subr.mxu0 0.0
      %3355 = vmatpush2.msra.mxu0 0.0
      %3356 = vmatprep.subr.mxu0 0.0
      %3357 = vmatpush2.msra.mxu0 0.0
      %3358 = vmatprep.mubr.f32.mxu0 0.0
      %3359 = vmatmul.mubr.f32.gmra.mxu0 %v3265
      %v3360 = vpop.f32.mrf.mxu0
      %v3361 = vadd.f32 0.0, %v3360
      %v3362 = vpop.f32.mrf.mxu0
      %3363 = vmatprep.mubr.f32.mxu0 0.0
      %3364 = vmatmul.mubr.f32.gmra.mxu0 %v3266
      %v3365 = vpop.f32.mrf.mxu0
      %v3366 = vadd.f32 0.0, %v3365
      %v3367 = vpop.f32.mrf.mxu0
      %3368 = vmatprep.mubr.f32.mxu0 0.0
      %3369 = vmatmul.mubr.f32.gmra.mxu0 %v3267
      %v3370 = vpop.f32.mrf.mxu0
      %v3371 = vadd.f32 0.0, %v3370
      %v3372 = vpop.f32.mrf.mxu0
      %3373 = vmatprep.mubr.f32.mxu0 0.0
      %3374 = vmatmul.mubr.f32.gmra.mxu0 %v3268
      %v3375 = vpop.f32.mrf.mxu0
      %v3376 = vadd.f32 0.0, %v3375
      %v3377 = vpop.f32.mrf.mxu0
      %3378 = vmatprep.mubr.f32.mxu0 0.0
      %3379 = vmatmul.mubr.f32.gmra.mxu0 %v3269
      %v3380 = vpop.f32.mrf.mxu0
      %v3381 = vadd.f32 0.0, %v3380
      %v3382 = vpop.f32.mrf.mxu0
      %3383 = vmatprep.mubr.f32.mxu0 0.0
      %3384 = vmatmul.mubr.f32.gmra.mxu0 %v3270
      %v3385 = vpop.f32.mrf.mxu0
      %v3386 = vadd.f32 0.0, %v3385
      %v3387 = vpop.f32.mrf.mxu0
      %3388 = vmatprep.mubr.f32.mxu0 0.0
      %3389 = vmatmul.mubr.f32.gmra.mxu0 %v3271
      %v3390 = vpop.f32.mrf.mxu0
      %v3391 = vadd.f32 0.0, %v3390
      %v3392 = vpop.f32.mrf.mxu0
      %3393 = vmatprep.mubr.f32.mxu0 0.0
      %3394 = vmatmul.mubr.f32.gmra.mxu0 %v3272
      %v3395 = vpop.f32.mrf.mxu0
      %v3396 = vadd.f32 0.0, %v3395
      %v3397 = vpop.f32.mrf.mxu0
      %3398 = vmatprep.mubr.f32.mxu0 0.0
      %3399 = vmatmul.mubr.f32.gmra.mxu0 %v3273
      %v3400 = vpop.f32.mrf.mxu0
      %v3401 = vadd.f32 0.0, %v3400
      %v3402 = vpop.f32.mrf.mxu0
      %3403 = vmatprep.mubr.f32.mxu0 0.0
      %3404 = vmatmul.mubr.f32.gmra.mxu0 %v3274
      %v3405 = vpop.f32.mrf.mxu0
      %v3406 = vadd.f32 0.0, %v3405
      %v3407 = vpop.f32.mrf.mxu0
      %3408 = vmatprep.mubr.f32.mxu0 0.0
      %3409 = vmatmul.mubr.f32.gmra.mxu0 %v3275
      %v3410 = vpop.f32.mrf.mxu0
      %v3411 = vadd.f32 0.0, %v3410
      %v3412 = vpop.f32.mrf.mxu0
      %3413 = vmatprep.mubr.f32.mxu0 0.0
      %3414 = vmatmul.mubr.f32.gmra.mxu0 %v3276
      %v3415 = vpop.f32.mrf.mxu0
      %v3416 = vadd.f32 0.0, %v3415
      %v3417 = vpop.f32.mrf.mxu0
      %3418 = vdwg.mxu0
      %3419 = vmatprep.subr.mxu0 0.0
      %3420 = vmatpush1.msra.mxu0 %v3264
      %3421 = vmatprep.subr.mxu0 0.0
      %3422 = vmatpush1.msra.mxu0 %v3263
      %3423 = vmatprep.subr.mxu0 0.0
      %3424 = vmatpush1.msra.mxu0 %v3262
      %3425 = vmatprep.subr.mxu0 0.0
      %3426 = vmatpush1.msra.mxu0 %v3261
      %3427 = vmatprep.subr.mxu0 0.0
      %3428 = vmatpush1.msra.mxu0 %v3260
      %3429 = vmatprep.subr.mxu0 0.0
      %3430 = vmatpush1.msra.mxu0 %v3259
      %3431 = vmatprep.subr.mxu0 0.0
      %3432 = vmatpush1.msra.mxu0 %v3258
      %3433 = vmatprep.subr.mxu0 0.0
      %3434 = vmatpush1.msra.mxu0 %v3257
      %3435 = vmatprep.subr.mxu0 0.0
      %3436 = vmatpush1.msra.mxu0 %v3256
      %3437 = vmatprep.subr.mxu0 0.0
      %3438 = vmatpush1.msra.mxu0 %v3255
      %3439 = vmatprep.subr.mxu0 0.0
      %3440 = vmatpush1.msra.mxu0 %v3254
      %3441 = vmatprep.subr.mxu0 0.0
      %3442 = vmatpush1.msra.mxu0 %v3253
      %3443 = vmatprep.subr.mxu0 0.0
      %3444 = vmatpush1.msra.mxu0 %v3252
      %3445 = vmatprep.subr.mxu0 0.0
      %3446 = vmatpush1.msra.mxu0 %v3251
      %3447 = vmatprep.subr.mxu0 0.0
      %3448 = vmatpush1.msra.mxu0 %v3250
      %3449 = vmatprep.subr.mxu0 0.0
      %3450 = vmatpush1.msra.mxu0 %v3249
      %3451 = vmatprep.subr.mxu0 0.0
      %3452 = vmatpush2.msra.mxu0 0.0
      %3453 = vmatprep.subr.mxu0 0.0
      %3454 = vmatpush2.msra.mxu0 0.0
      %3455 = vmatprep.subr.mxu0 0.0
      %3456 = vmatpush2.msra.mxu0 0.0
      %3457 = vmatprep.subr.mxu0 0.0
      %3458 = vmatpush2.msra.mxu0 0.0
      %3459 = vmatprep.subr.mxu0 0.0
      %3460 = vmatpush2.msra.mxu0 0.0
      %3461 = vmatprep.subr.mxu0 0.0
      %3462 = vmatpush2.msra.mxu0 0.0
      %3463 = vmatprep.subr.mxu0 0.0
      %3464 = vmatpush2.msra.mxu0 0.0
      %3465 = vmatprep.subr.mxu0 0.0
      %3466 = vmatpush2.msra.mxu0 0.0
      %3467 = vmatprep.subr.mxu0 0.0
      %3468 = vmatpush2.msra.mxu0 0.0
      %3469 = vmatprep.subr.mxu0 0.0
      %3470 = vmatpush2.msra.mxu0 0.0
      %3471 = vmatprep.subr.mxu0 0.0
      %3472 = vmatpush2.msra.mxu0 0.0
      %3473 = vmatprep.subr.mxu0 0.0
      %3474 = vmatpush2.msra.mxu0 0.0
      %3475 = vmatprep.subr.mxu0 0.0
      %3476 = vmatpush2.msra.mxu0 0.0
      %3477 = vmatprep.subr.mxu0 0.0
      %3478 = vmatpush2.msra.mxu0 0.0
      %3479 = vmatprep.subr.mxu0 0.0
      %3480 = vmatpush2.msra.mxu0 0.0
      %3481 = vmatprep.subr.mxu0 0.0
      %3482 = vmatpush2.msra.mxu0 0.0
      %3483 = vmatprep.mubr.f32.mxu0 0.0
      %3484 = vmatmul.mubr.f32.gmra.mxu0 %v3237
      %v3485 = vpop.f32.mrf.mxu0
      %v3486 = vadd.f32 %v3361, %v3485
      %v3487 = vpop.f32.mrf.mxu0
      %3488 = vmatprep.mubr.f32.mxu0 0.0
      %3489 = vmatmul.mubr.f32.gmra.mxu0 %v3238
      %v3490 = vpop.f32.mrf.mxu0
      %v3491 = vadd.f32 %v3366, %v3490
      %v3492 = vpop.f32.mrf.mxu0
      %3493 = vmatprep.mubr.f32.mxu0 0.0
      %3494 = vmatmul.mubr.f32.gmra.mxu0 %v3239
      %v3495 = vpop.f32.mrf.mxu0
      %v3496 = vadd.f32 %v3371, %v3495
      %v3497 = vpop.f32.mrf.mxu0
      %3498 = vmatprep.mubr.f32.mxu0 0.0
      %3499 = vmatmul.mubr.f32.gmra.mxu0 %v3240
      %v3500 = vpop.f32.mrf.mxu0
      %v3501 = vadd.f32 %v3376, %v3500
      %v3502 = vpop.f32.mrf.mxu0
      %3503 = vmatprep.mubr.f32.mxu0 0.0
      %3504 = vmatmul.mubr.f32.gmra.mxu0 %v3241
      %v3505 = vpop.f32.mrf.mxu0
      %v3506 = vadd.f32 %v3381, %v3505
      %v3507 = vpop.f32.mrf.mxu0
      %3508 = vmatprep.mubr.f32.mxu0 0.0
      %3509 = vmatmul.mubr.f32.gmra.mxu0 %v3242
      %v3510 = vpop.f32.mrf.mxu0
      %v3511 = vadd.f32 %v3386, %v3510
      %v3512 = vpop.f32.mrf.mxu0
      %3513 = vmatprep.mubr.f32.mxu0 0.0
      %3514 = vmatmul.mubr.f32.gmra.mxu0 %v3243
      %v3515 = vpop.f32.mrf.mxu0
      %v3516 = vadd.f32 %v3391, %v3515
      %v3517 = vpop.f32.mrf.mxu0
      %3518 = vmatprep.mubr.f32.mxu0 0.0
      %3519 = vmatmul.mubr.f32.gmra.mxu0 %v3244
      %v3520 = vpop.f32.mrf.mxu0
      %v3521 = vadd.f32 %v3396, %v3520
      %v3522 = vpop.f32.mrf.mxu0
      %3523 = vmatprep.mubr.f32.mxu0 0.0
      %3524 = vmatmul.mubr.f32.gmra.mxu0 %v3245
      %v3525 = vpop.f32.mrf.mxu0
      %v3526 = vadd.f32 %v3401, %v3525
      %v3527 = vpop.f32.mrf.mxu0
      %3528 = vmatprep.mubr.f32.mxu0 0.0
      %3529 = vmatmul.mubr.f32.gmra.mxu0 %v3246
      %v3530 = vpop.f32.mrf.mxu0
      %v3531 = vadd.f32 %v3406, %v3530
      %v3532 = vpop.f32.mrf.mxu0
      %3533 = vmatprep.mubr.f32.mxu0 0.0
      %3534 = vmatmul.mubr.f32.gmra.mxu0 %v3247
      %v3535 = vpop.f32.mrf.mxu0
      %v3536 = vadd.f32 %v3411, %v3535
      %v3537 = vpop.f32.mrf.mxu0
      %3538 = vmatprep.mubr.f32.mxu0 0.0
      %3539 = vmatmul.mubr.f32.gmra.mxu0 %v3248
      %v3540 = vpop.f32.mrf.mxu0
      %v3541 = vadd.f32 %v3416, %v3540
      %v3542 = vpop.f32.mrf.mxu0
      %3543 = vdwg.mxu0
      %v3544 = vld [vmem:[#allocation3 + $0x5] sm:$0xff]
      %v3545 = vld [vmem:[#allocation3 + $0xd] sm:$0xff]
      %v3546 = vld [vmem:[#allocation3 + $0x15] sm:$0xff]
      %v3547 = vld [vmem:[#allocation3 + $0x1d] sm:$0xff]
      %v3548 = vld [vmem:[#allocation3 + $0x25] sm:$0xff]
      %v3549 = vld [vmem:[#allocation3 + $0x2d] sm:$0xff]
      %v3550 = vld [vmem:[#allocation3 + $0x35] sm:$0xff]
      %v3551 = vld [vmem:[#allocation3 + $0x3d] sm:$0xff]
      %v3552 = vld [vmem:[#allocation3 + $0x45] sm:$0xff]
      %v3553 = vld [vmem:[#allocation3 + $0x4d] sm:$0xff]
      %v3554 = vld [vmem:[#allocation3 + $0x55] sm:$0xff]
      %v3555 = vld [vmem:[#allocation3 + $0x5d] sm:$0xff]
      %s3556 = scalar_lea.vmem %s4, 256
      %v3557 = vld [vmem:[%s3556] sm:$0xff]
      %v3558 = vld [vmem:[%s3556 + $0x8] sm:$0xff]
      %v3559 = vld [vmem:[%s3556 + $0x10] sm:$0xff]
      %v3560 = vld [vmem:[%s3556 + $0x18] sm:$0xff]
      %v3561 = vld [vmem:[%s3556 + $0x20] sm:$0xff]
      %v3562 = vld [vmem:[%s3556 + $0x28] sm:$0xff]
      %v3563 = vld [vmem:[%s3556 + $0x30] sm:$0xff]
      %v3564 = vld [vmem:[%s3556 + $0x38] sm:$0xff]
      %v3565 = vld [vmem:[%s3556 + $0x40] sm:$0xff]
      %v3566 = vld [vmem:[%s3556 + $0x48] sm:$0xff]
      %v3567 = vld [vmem:[%s3556 + $0x50] sm:$0xff]
      %v3568 = vld [vmem:[%s3556 + $0x58] sm:$0xff]
      %v3569 = vld [vmem:[%s3556 + $0x60] sm:$0xff]
      %v3570 = vld [vmem:[%s3556 + $0x68] sm:$0xff]
      %v3571 = vld [vmem:[%s3556 + $0x70] sm:$0xff]
      %v3572 = vld [vmem:[%s3556 + $0x78] sm:$0xff]
      %3573 = vmatprep.subr.mxu0 0.0
      %3574 = vmatpush1.msra.mxu0 %v3572
      %3575 = vmatprep.subr.mxu0 0.0
      %3576 = vmatpush1.msra.mxu0 %v3571
      %3577 = vmatprep.subr.mxu0 0.0
      %3578 = vmatpush1.msra.mxu0 %v3570
      %3579 = vmatprep.subr.mxu0 0.0
      %3580 = vmatpush1.msra.mxu0 %v3569
      %3581 = vmatprep.subr.mxu0 0.0
      %3582 = vmatpush1.msra.mxu0 %v3568
      %3583 = vmatprep.subr.mxu0 0.0
      %3584 = vmatpush1.msra.mxu0 %v3567
      %3585 = vmatprep.subr.mxu0 0.0
      %3586 = vmatpush1.msra.mxu0 %v3566
      %3587 = vmatprep.subr.mxu0 0.0
      %3588 = vmatpush1.msra.mxu0 %v3565
      %3589 = vmatprep.subr.mxu0 0.0
      %3590 = vmatpush1.msra.mxu0 %v3564
      %3591 = vmatprep.subr.mxu0 0.0
      %3592 = vmatpush1.msra.mxu0 %v3563
      %3593 = vmatprep.subr.mxu0 0.0
      %3594 = vmatpush1.msra.mxu0 %v3562
      %3595 = vmatprep.subr.mxu0 0.0
      %3596 = vmatpush1.msra.mxu0 %v3561
      %3597 = vmatprep.subr.mxu0 0.0
      %3598 = vmatpush1.msra.mxu0 %v3560
      %3599 = vmatprep.subr.mxu0 0.0
      %3600 = vmatpush1.msra.mxu0 %v3559
      %3601 = vmatprep.subr.mxu0 0.0
      %3602 = vmatpush1.msra.mxu0 %v3558
      %3603 = vmatprep.subr.mxu0 0.0
      %3604 = vmatpush1.msra.mxu0 %v3557
      %3605 = vmatprep.subr.mxu0 0.0
      %3606 = vmatpush2.msra.mxu0 0.0
      %3607 = vmatprep.subr.mxu0 0.0
      %3608 = vmatpush2.msra.mxu0 0.0
      %3609 = vmatprep.subr.mxu0 0.0
      %3610 = vmatpush2.msra.mxu0 0.0
      %3611 = vmatprep.subr.mxu0 0.0
      %3612 = vmatpush2.msra.mxu0 0.0
      %3613 = vmatprep.subr.mxu0 0.0
      %3614 = vmatpush2.msra.mxu0 0.0
      %3615 = vmatprep.subr.mxu0 0.0
      %3616 = vmatpush2.msra.mxu0 0.0
      %3617 = vmatprep.subr.mxu0 0.0
      %3618 = vmatpush2.msra.mxu0 0.0
      %3619 = vmatprep.subr.mxu0 0.0
      %3620 = vmatpush2.msra.mxu0 0.0
      %3621 = vmatprep.subr.mxu0 0.0
      %3622 = vmatpush2.msra.mxu0 0.0
      %3623 = vmatprep.subr.mxu0 0.0
      %3624 = vmatpush2.msra.mxu0 0.0
      %3625 = vmatprep.subr.mxu0 0.0
      %3626 = vmatpush2.msra.mxu0 0.0
      %3627 = vmatprep.subr.mxu0 0.0
      %3628 = vmatpush2.msra.mxu0 0.0
      %3629 = vmatprep.subr.mxu0 0.0
      %3630 = vmatpush2.msra.mxu0 0.0
      %3631 = vmatprep.subr.mxu0 0.0
      %3632 = vmatpush2.msra.mxu0 0.0
      %3633 = vmatprep.subr.mxu0 0.0
      %3634 = vmatpush2.msra.mxu0 0.0
      %3635 = vmatprep.subr.mxu0 0.0
      %3636 = vmatpush2.msra.mxu0 0.0
      %3637 = vmatprep.mubr.f32.mxu0 0.0
      %3638 = vmatmul.mubr.f32.gmra.mxu0 %v3544
      %v3639 = vpop.f32.mrf.mxu0
      %v3640 = vadd.f32 0.0, %v3639
      %v3641 = vpop.f32.mrf.mxu0
      %3642 = vmatprep.mubr.f32.mxu0 0.0
      %3643 = vmatmul.mubr.f32.gmra.mxu0 %v3545
      %v3644 = vpop.f32.mrf.mxu0
      %v3645 = vadd.f32 0.0, %v3644
      %v3646 = vpop.f32.mrf.mxu0
      %3647 = vmatprep.mubr.f32.mxu0 0.0
      %3648 = vmatmul.mubr.f32.gmra.mxu0 %v3546
      %v3649 = vpop.f32.mrf.mxu0
      %v3650 = vadd.f32 0.0, %v3649
      %v3651 = vpop.f32.mrf.mxu0
      %3652 = vmatprep.mubr.f32.mxu0 0.0
      %3653 = vmatmul.mubr.f32.gmra.mxu0 %v3547
      %v3654 = vpop.f32.mrf.mxu0
      %v3655 = vadd.f32 0.0, %v3654
      %v3656 = vpop.f32.mrf.mxu0
      %3657 = vmatprep.mubr.f32.mxu0 0.0
      %3658 = vmatmul.mubr.f32.gmra.mxu0 %v3548
      %v3659 = vpop.f32.mrf.mxu0
      %v3660 = vadd.f32 0.0, %v3659
      %v3661 = vpop.f32.mrf.mxu0
      %3662 = vmatprep.mubr.f32.mxu0 0.0
      %3663 = vmatmul.mubr.f32.gmra.mxu0 %v3549
      %v3664 = vpop.f32.mrf.mxu0
      %v3665 = vadd.f32 0.0, %v3664
      %v3666 = vpop.f32.mrf.mxu0
      %3667 = vmatprep.mubr.f32.mxu0 0.0
      %3668 = vmatmul.mubr.f32.gmra.mxu0 %v3550
      %v3669 = vpop.f32.mrf.mxu0
      %v3670 = vadd.f32 0.0, %v3669
      %v3671 = vpop.f32.mrf.mxu0
      %3672 = vmatprep.mubr.f32.mxu0 0.0
      %3673 = vmatmul.mubr.f32.gmra.mxu0 %v3551
      %v3674 = vpop.f32.mrf.mxu0
      %v3675 = vadd.f32 0.0, %v3674
      %v3676 = vpop.f32.mrf.mxu0
      %3677 = vmatprep.mubr.f32.mxu0 0.0
      %3678 = vmatmul.mubr.f32.gmra.mxu0 %v3552
      %v3679 = vpop.f32.mrf.mxu0
      %v3680 = vadd.f32 0.0, %v3679
      %v3681 = vpop.f32.mrf.mxu0
      %3682 = vmatprep.mubr.f32.mxu0 0.0
      %3683 = vmatmul.mubr.f32.gmra.mxu0 %v3553
      %v3684 = vpop.f32.mrf.mxu0
      %v3685 = vadd.f32 0.0, %v3684
      %v3686 = vpop.f32.mrf.mxu0
      %3687 = vmatprep.mubr.f32.mxu0 0.0
      %3688 = vmatmul.mubr.f32.gmra.mxu0 %v3554
      %v3689 = vpop.f32.mrf.mxu0
      %v3690 = vadd.f32 0.0, %v3689
      %v3691 = vpop.f32.mrf.mxu0
      %3692 = vmatprep.mubr.f32.mxu0 0.0
      %3693 = vmatmul.mubr.f32.gmra.mxu0 %v3555
      %v3694 = vpop.f32.mrf.mxu0
      %v3695 = vadd.f32 0.0, %v3694
      %v3696 = vpop.f32.mrf.mxu0
      %3697 = vdwg.mxu0
      %v3698 = vadd.f32 %v3486, %v3640
      %v3699 = vadd.f32 %v3491, %v3645
      %v3700 = vadd.f32 %v3496, %v3650
      %v3701 = vadd.f32 %v3501, %v3655
      %v3702 = vadd.f32 %v3506, %v3660
      %v3703 = vadd.f32 %v3511, %v3665
      %v3704 = vadd.f32 %v3516, %v3670
      %v3705 = vadd.f32 %v3521, %v3675
      %v3706 = vadd.f32 %v3526, %v3680
      %v3707 = vadd.f32 %v3531, %v3685
      %v3708 = vadd.f32 %v3536, %v3690
      %v3709 = vadd.f32 %v3541, %v3695
      %v3710 = vld [vmem:[%s5] sm:$0x1]
      %v3712 = vlaneseq
      %v3713 = vshrl.u32 %v3712, 7
      %v3714 = vsub.s32 0, %v3713
      %v3715 = vrot.slane %v3710, %v3714
      %v3717 = vadd.f32 %v3698, %v3715
      %v3718 = vadd.f32 %v3699, %v3715
      %v3719 = vadd.f32 %v3700, %v3715
      %v3720 = vadd.f32 %v3701, %v3715
      %v3721 = vadd.f32 %v3702, %v3715
      %v3722 = vadd.f32 %v3703, %v3715
      %v3723 = vadd.f32 %v3704, %v3715
      %v3724 = vadd.f32 %v3705, %v3715
      %v3725 = vadd.f32 %v3706, %v3715
      %v3726 = vadd.f32 %v3707, %v3715
      %v3727 = vadd.f32 %v3708, %v3715
      %v3728 = vadd.f32 %v3709, %v3715
      %v3729 = vmax.f32 %v3717, 0.0
      %v3730 = vmax.f32 %v3718, 0.0
      %v3731 = vmax.f32 %v3719, 0.0
      %v3732 = vmax.f32 %v3720, 0.0
      %v3733 = vmax.f32 %v3721, 0.0
      %v3734 = vmax.f32 %v3722, 0.0
      %v3735 = vmax.f32 %v3723, 0.0
      %v3736 = vmax.f32 %v3724, 0.0
      %v3737 = vmax.f32 %v3725, 0.0
      %v3738 = vmax.f32 %v3726, 0.0
      %v3739 = vmax.f32 %v3727, 0.0
      %v3740 = vmax.f32 %v3728, 0.0
      %v3741 = vld [vmem:[%s6] sm:$0xff]
      %v3742 = vld [vmem:[%s6 + $0x8] sm:$0xff]
      %v3743 = vld [vmem:[%s6 + $0x10] sm:$0xff]
      %v3744 = vld [vmem:[%s6 + $0x18] sm:$0xff]
      %v3745 = vld [vmem:[%s6 + $0x20] sm:$0xff]
      %v3746 = vld [vmem:[%s6 + $0x28] sm:$0xff]
      %v3747 = vld [vmem:[%s6 + $0x30] sm:$0xff]
      %v3748 = vld [vmem:[%s6 + $0x38] sm:$0xff]
      %v3749 = vld [vmem:[%s6 + $0x40] sm:$0xff]
      %v3750 = vld [vmem:[%s6 + $0x48] sm:$0xff]
      %v3751 = vld [vmem:[%s6 + $0x50] sm:$0xff]
      %v3752 = vld [vmem:[%s6 + $0x58] sm:$0xff]
      %v3753 = vld [vmem:[%s6 + $0x60] sm:$0xff]
      %v3754 = vld [vmem:[%s6 + $0x68] sm:$0xff]
      %v3755 = vld [vmem:[%s6 + $0x70] sm:$0xff]
      %v3756 = vld [vmem:[%s6 + $0x78] sm:$0xff]
      %v3757 = vld [vmem:[%s7] sm:$0x1]
      %v3759 = vlaneseq
      %v3760 = vshrl.u32 %v3759, 7
      %v3761 = vsub.s32 0, %v3760
      %v3762 = vrot.slane %v3757, %v3761
      %3764 = vmatprep.subr.mxu0 0.0
      %3765 = vmatpush1.msra.mxu0 %v3756
      %3766 = vmatprep.subr.mxu0 0.0
      %3767 = vmatpush1.msra.mxu0 %v3755
      %3768 = vmatprep.subr.mxu0 0.0
      %3769 = vmatpush1.msra.mxu0 %v3754
      %3770 = vmatprep.subr.mxu0 0.0
      %3771 = vmatpush1.msra.mxu0 %v3753
      %3772 = vmatprep.subr.mxu0 0.0
      %3773 = vmatpush1.msra.mxu0 %v3752
      %3774 = vmatprep.subr.mxu0 0.0
      %3775 = vmatpush1.msra.mxu0 %v3751
      %3776 = vmatprep.subr.mxu0 0.0
      %3777 = vmatpush1.msra.mxu0 %v3750
      %3778 = vmatprep.subr.mxu0 0.0
      %3779 = vmatpush1.msra.mxu0 %v3749
      %3780 = vmatprep.subr.mxu0 0.0
      %3781 = vmatpush1.msra.mxu0 %v3748
      %3782 = vmatprep.subr.mxu0 0.0
      %3783 = vmatpush1.msra.mxu0 %v3747
      %3784 = vmatprep.subr.mxu0 0.0
      %3785 = vmatpush1.msra.mxu0 %v3746
      %3786 = vmatprep.subr.mxu0 0.0
      %3787 = vmatpush1.msra.mxu0 %v3745
      %3788 = vmatprep.subr.mxu0 0.0
      %3789 = vmatpush1.msra.mxu0 %v3744
      %3790 = vmatprep.subr.mxu0 0.0
      %3791 = vmatpush1.msra.mxu0 %v3743
      %3792 = vmatprep.subr.mxu0 0.0
      %3793 = vmatpush1.msra.mxu0 %v3742
      %3794 = vmatprep.subr.mxu0 0.0
      %3795 = vmatpush1.msra.mxu0 %v3741
      %3796 = vmatprep.subr.mxu0 0.0
      %3797 = vmatpush2.msra.mxu0 0.0
      %3798 = vmatprep.subr.mxu0 0.0
      %3799 = vmatpush2.msra.mxu0 0.0
      %3800 = vmatprep.subr.mxu0 0.0
      %3801 = vmatpush2.msra.mxu0 0.0
      %3802 = vmatprep.subr.mxu0 0.0
      %3803 = vmatpush2.msra.mxu0 0.0
      %3804 = vmatprep.subr.mxu0 0.0
      %3805 = vmatpush2.msra.mxu0 0.0
      %3806 = vmatprep.subr.mxu0 0.0
      %3807 = vmatpush2.msra.mxu0 0.0
      %3808 = vmatprep.subr.mxu0 0.0
      %3809 = vmatpush2.msra.mxu0 0.0
      %3810 = vmatprep.subr.mxu0 0.0
      %3811 = vmatpush2.msra.mxu0 0.0
      %3812 = vmatprep.subr.mxu0 0.0
      %3813 = vmatpush2.msra.mxu0 0.0
      %3814 = vmatprep.subr.mxu0 0.0
      %3815 = vmatpush2.msra.mxu0 0.0
      %3816 = vmatprep.subr.mxu0 0.0
      %3817 = vmatpush2.msra.mxu0 0.0
      %3818 = vmatprep.subr.mxu0 0.0
      %3819 = vmatpush2.msra.mxu0 0.0
      %3820 = vmatprep.subr.mxu0 0.0
      %3821 = vmatpush2.msra.mxu0 0.0
      %3822 = vmatprep.subr.mxu0 0.0
      %3823 = vmatpush2.msra.mxu0 0.0
      %3824 = vmatprep.subr.mxu0 0.0
      %3825 = vmatpush2.msra.mxu0 0.0
      %3826 = vmatprep.subr.mxu0 0.0
      %3827 = vmatpush2.msra.mxu0 0.0
      %3828 = vmatprep.mubr.f32.mxu0 0.0
      %3829 = vmatmul.mubr.f32.gmra.mxu0 %v3729
      %v3830 = vpop.f32.mrf.mxu0
      %v3831 = vadd.f32 %v3762, %v3830
      %v3832 = vpop.f32.mrf.mxu0
      %3833 = vmatprep.mubr.f32.mxu0 0.0
      %3834 = vmatmul.mubr.f32.gmra.mxu0 %v3730
      %v3835 = vpop.f32.mrf.mxu0
      %v3836 = vadd.f32 %v3762, %v3835
      %v3837 = vpop.f32.mrf.mxu0
      %3838 = vmatprep.mubr.f32.mxu0 0.0
      %3839 = vmatmul.mubr.f32.gmra.mxu0 %v3731
      %v3840 = vpop.f32.mrf.mxu0
      %v3841 = vadd.f32 %v3762, %v3840
      %v3842 = vpop.f32.mrf.mxu0
      %3843 = vmatprep.mubr.f32.mxu0 0.0
      %3844 = vmatmul.mubr.f32.gmra.mxu0 %v3732
      %v3845 = vpop.f32.mrf.mxu0
      %v3846 = vadd.f32 %v3762, %v3845
      %v3847 = vpop.f32.mrf.mxu0
      %3848 = vmatprep.mubr.f32.mxu0 0.0
      %3849 = vmatmul.mubr.f32.gmra.mxu0 %v3733
      %v3850 = vpop.f32.mrf.mxu0
      %v3851 = vadd.f32 %v3762, %v3850
      %v3852 = vpop.f32.mrf.mxu0
      %3853 = vmatprep.mubr.f32.mxu0 0.0
      %3854 = vmatmul.mubr.f32.gmra.mxu0 %v3734
      %v3855 = vpop.f32.mrf.mxu0
      %v3856 = vadd.f32 %v3762, %v3855
      %v3857 = vpop.f32.mrf.mxu0
      %3858 = vmatprep.mubr.f32.mxu0 0.0
      %3859 = vmatmul.mubr.f32.gmra.mxu0 %v3735
      %v3860 = vpop.f32.mrf.mxu0
      %v3861 = vadd.f32 %v3762, %v3860
      %v3862 = vpop.f32.mrf.mxu0
      %3863 = vmatprep.mubr.f32.mxu0 0.0
      %3864 = vmatmul.mubr.f32.gmra.mxu0 %v3736
      %v3865 = vpop.f32.mrf.mxu0
      %v3866 = vadd.f32 %v3762, %v3865
      %v3867 = vpop.f32.mrf.mxu0
      %3868 = vmatprep.mubr.f32.mxu0 0.0
      %3869 = vmatmul.mubr.f32.gmra.mxu0 %v3737
      %v3870 = vpop.f32.mrf.mxu0
      %v3871 = vadd.f32 %v3762, %v3870
      %v3872 = vpop.f32.mrf.mxu0
      %3873 = vmatprep.mubr.f32.mxu0 0.0
      %3874 = vmatmul.mubr.f32.gmra.mxu0 %v3738
      %v3875 = vpop.f32.mrf.mxu0
      %v3876 = vadd.f32 %v3762, %v3875
      %v3877 = vpop.f32.mrf.mxu0
      %3878 = vmatprep.mubr.f32.mxu0 0.0
      %3879 = vmatmul.mubr.f32.gmra.mxu0 %v3739
      %v3880 = vpop.f32.mrf.mxu0
      %v3881 = vadd.f32 %v3762, %v3880
      %v3882 = vpop.f32.mrf.mxu0
      %3883 = vmatprep.mubr.f32.mxu0 0.0
      %3884 = vmatmul.mubr.f32.gmra.mxu0 %v3740
      %v3885 = vpop.f32.mrf.mxu0
      %v3886 = vadd.f32 %v3762, %v3885
      %v3887 = vpop.f32.mrf.mxu0
      %3888 = vmatprep.mubr.f32.mxu0 0.0
      %3889 = vmatmul.mubr.f32.gmra.mxu0 %v3117
      %v3890 = vpop.f32.mrf.mxu0
      %v3891 = vadd.f32 %v3762, %v3890
      %v3892 = vpop.f32.mrf.mxu0
      %3893 = vmatprep.mubr.f32.mxu0 0.0
      %3894 = vmatmul.mubr.f32.gmra.mxu0 %v3120
      %v3895 = vpop.f32.mrf.mxu0
      %v3896 = vadd.f32 %v3762, %v3895
      %v3897 = vpop.f32.mrf.mxu0
      %3898 = vmatprep.mubr.f32.mxu0 0.0
      %3899 = vmatmul.mubr.f32.gmra.mxu0 %v3123
      %v3900 = vpop.f32.mrf.mxu0
      %v3901 = vadd.f32 %v3762, %v3900
      %v3902 = vpop.f32.mrf.mxu0
      %3903 = vmatprep.mubr.f32.mxu0 0.0
      %3904 = vmatmul.mubr.f32.gmra.mxu0 %v3126
      %v3905 = vpop.f32.mrf.mxu0
      %v3906 = vadd.f32 %v3762, %v3905
      %v3907 = vpop.f32.mrf.mxu0
      %3908 = vmatprep.mubr.f32.mxu0 0.0
      %3909 = vmatmul.mubr.f32.gmra.mxu0 %v3129
      %v3910 = vpop.f32.mrf.mxu0
      %v3911 = vadd.f32 %v3762, %v3910
      %v3912 = vpop.f32.mrf.mxu0
      %3913 = vmatprep.mubr.f32.mxu0 0.0
      %3914 = vmatmul.mubr.f32.gmra.mxu0 %v3132
      %v3915 = vpop.f32.mrf.mxu0
      %v3916 = vadd.f32 %v3762, %v3915
      %v3917 = vpop.f32.mrf.mxu0
      %3918 = vmatprep.mubr.f32.mxu0 0.0
      %3919 = vmatmul.mubr.f32.gmra.mxu0 %v3135
      %v3920 = vpop.f32.mrf.mxu0
      %v3921 = vadd.f32 %v3762, %v3920
      %v3922 = vpop.f32.mrf.mxu0
      %3923 = vmatprep.mubr.f32.mxu0 0.0
      %3924 = vmatmul.mubr.f32.gmra.mxu0 %v3138
      %v3925 = vpop.f32.mrf.mxu0
      %v3926 = vadd.f32 %v3762, %v3925
      %v3927 = vpop.f32.mrf.mxu0
      %3928 = vmatprep.mubr.f32.mxu0 0.0
      %3929 = vmatmul.mubr.f32.gmra.mxu0 %v3141
      %v3930 = vpop.f32.mrf.mxu0
      %v3931 = vadd.f32 %v3762, %v3930
      %v3932 = vpop.f32.mrf.mxu0
      %3933 = vmatprep.mubr.f32.mxu0 0.0
      %3934 = vmatmul.mubr.f32.gmra.mxu0 %v3144
      %v3935 = vpop.f32.mrf.mxu0
      %v3936 = vadd.f32 %v3762, %v3935
      %v3937 = vpop.f32.mrf.mxu0
      %3938 = vmatprep.mubr.f32.mxu0 0.0
      %3939 = vmatmul.mubr.f32.gmra.mxu0 %v3147
      %v3940 = vpop.f32.mrf.mxu0
      %v3941 = vadd.f32 %v3762, %v3940
      %v3942 = vpop.f32.mrf.mxu0
      %3943 = vmatprep.mubr.f32.mxu0 0.0
      %3944 = vmatmul.mubr.f32.gmra.mxu0 %v3150
      %v3945 = vpop.f32.mrf.mxu0
      %v3946 = vadd.f32 %v3762, %v3945
      %v3947 = vpop.f32.mrf.mxu0
      %3948 = vdwg.mxu0
      %v3949 = vadd.f32 %v498, %v3831
      %v3950 = vadd.f32 %v499, %v3836
      %v3951 = vadd.f32 %v500, %v3841
      %v3952 = vadd.f32 %v501, %v3846
      %v3953 = vadd.f32 %v502, %v3851
      %v3954 = vadd.f32 %v503, %v3856
      %v3955 = vadd.f32 %v504, %v3861
      %v3956 = vadd.f32 %v505, %v3866
      %v3957 = vadd.f32 %v506, %v3871
      %v3958 = vadd.f32 %v507, %v3876
      %v3959 = vadd.f32 %v508, %v3881
      %v3960 = vadd.f32 %v509, %v3886
      %v3961 = vmax.f32 %v3949, 0.0
      %v3962 = vmax.f32 %v3950, 0.0
      %v3963 = vmax.f32 %v3951, 0.0
      %v3964 = vmax.f32 %v3952, 0.0
      %v3965 = vmax.f32 %v3953, 0.0
      %v3966 = vmax.f32 %v3954, 0.0
      %v3967 = vmax.f32 %v3955, 0.0
      %v3968 = vmax.f32 %v3956, 0.0
      %v3969 = vmax.f32 %v3957, 0.0
      %v3970 = vmax.f32 %v3958, 0.0
      %v3971 = vmax.f32 %v3959, 0.0
      %v3972 = vmax.f32 %v3960, 0.0
      %v3973 = vadd.f32 %v498, %v3891
      %v3974 = vadd.f32 %v499, %v3896
      %v3975 = vadd.f32 %v500, %v3901
      %v3976 = vadd.f32 %v501, %v3906
      %v3977 = vadd.f32 %v502, %v3911
      %v3978 = vadd.f32 %v503, %v3916
      %v3979 = vadd.f32 %v504, %v3921
      %v3980 = vadd.f32 %v505, %v3926
      %v3981 = vadd.f32 %v506, %v3931
      %v3982 = vadd.f32 %v507, %v3936
      %v3983 = vadd.f32 %v508, %v3941
      %v3984 = vadd.f32 %v509, %v3946
      %v3985 = vmax.f32 %v3973, 0.0
      %v3986 = vmax.f32 %v3974, 0.0
      %v3987 = vmax.f32 %v3975, 0.0
      %v3988 = vmax.f32 %v3976, 0.0
      %v3989 = vmax.f32 %v3977, 0.0
      %v3990 = vmax.f32 %v3978, 0.0
      %v3991 = vmax.f32 %v3979, 0.0
      %v3992 = vmax.f32 %v3980, 0.0
      %v3993 = vmax.f32 %v3981, 0.0
      %v3994 = vmax.f32 %v3982, 0.0
      %v3995 = vmax.f32 %v3983, 0.0
      %v3996 = vmax.f32 %v3984, 0.0
      %v3997 = vld [vmem:[%s8] sm:$0xff]
      %v3998 = vld [vmem:[%s8 + $0x8] sm:$0xff]
      %v3999 = vld [vmem:[%s8 + $0x10] sm:$0xff]
      %v4000 = vld [vmem:[%s8 + $0x18] sm:$0xff]
      %v4001 = vld [vmem:[%s8 + $0x20] sm:$0xff]
      %v4002 = vld [vmem:[%s8 + $0x28] sm:$0xff]
      %v4003 = vld [vmem:[%s8 + $0x30] sm:$0xff]
      %v4004 = vld [vmem:[%s8 + $0x38] sm:$0xff]
      %v4005 = vld [vmem:[%s8 + $0x40] sm:$0xff]
      %v4006 = vld [vmem:[%s8 + $0x48] sm:$0xff]
      %v4007 = vld [vmem:[%s8 + $0x50] sm:$0xff]
      %v4008 = vld [vmem:[%s8 + $0x58] sm:$0xff]
      %v4009 = vld [vmem:[%s8 + $0x60] sm:$0xff]
      %v4010 = vld [vmem:[%s8 + $0x68] sm:$0xff]
      %v4011 = vld [vmem:[%s8 + $0x70] sm:$0xff]
      %v4012 = vld [vmem:[%s8 + $0x78] sm:$0xff]
      %4013 = vmatprep.subr.mxu0 0.0
      %4014 = vmatpush1.msra.mxu0 %v4012
      %4015 = vmatprep.subr.mxu0 0.0
      %4016 = vmatpush1.msra.mxu0 %v4011
      %4017 = vmatprep.subr.mxu0 0.0
      %4018 = vmatpush1.msra.mxu0 %v4010
      %4019 = vmatprep.subr.mxu0 0.0
      %4020 = vmatpush1.msra.mxu0 %v4009
      %4021 = vmatprep.subr.mxu0 0.0
      %4022 = vmatpush1.msra.mxu0 %v4008
      %4023 = vmatprep.subr.mxu0 0.0
      %4024 = vmatpush1.msra.mxu0 %v4007
      %4025 = vmatprep.subr.mxu0 0.0
      %4026 = vmatpush1.msra.mxu0 %v4006
      %4027 = vmatprep.subr.mxu0 0.0
      %4028 = vmatpush1.msra.mxu0 %v4005
      %4029 = vmatprep.subr.mxu0 0.0
      %4030 = vmatpush1.msra.mxu0 %v4004
      %4031 = vmatprep.subr.mxu0 0.0
      %4032 = vmatpush1.msra.mxu0 %v4003
      %4033 = vmatprep.subr.mxu0 0.0
      %4034 = vmatpush1.msra.mxu0 %v4002
      %4035 = vmatprep.subr.mxu0 0.0
      %4036 = vmatpush1.msra.mxu0 %v4001
      %4037 = vmatprep.subr.mxu0 0.0
      %4038 = vmatpush1.msra.mxu0 %v4000
      %4039 = vmatprep.subr.mxu0 0.0
      %4040 = vmatpush1.msra.mxu0 %v3999
      %4041 = vmatprep.subr.mxu0 0.0
      %4042 = vmatpush1.msra.mxu0 %v3998
      %4043 = vmatprep.subr.mxu0 0.0
      %4044 = vmatpush1.msra.mxu0 %v3997
      %4045 = vmatprep.subr.mxu0 0.0
      %4046 = vmatpush2.msra.mxu0 0.0
      %4047 = vmatprep.subr.mxu0 0.0
      %4048 = vmatpush2.msra.mxu0 0.0
      %4049 = vmatprep.subr.mxu0 0.0
      %4050 = vmatpush2.msra.mxu0 0.0
      %4051 = vmatprep.subr.mxu0 0.0
      %4052 = vmatpush2.msra.mxu0 0.0
      %4053 = vmatprep.subr.mxu0 0.0
      %4054 = vmatpush2.msra.mxu0 0.0
      %4055 = vmatprep.subr.mxu0 0.0
      %4056 = vmatpush2.msra.mxu0 0.0
      %4057 = vmatprep.subr.mxu0 0.0
      %4058 = vmatpush2.msra.mxu0 0.0
      %4059 = vmatprep.subr.mxu0 0.0
      %4060 = vmatpush2.msra.mxu0 0.0
      %4061 = vmatprep.subr.mxu0 0.0
      %4062 = vmatpush2.msra.mxu0 0.0
      %4063 = vmatprep.subr.mxu0 0.0
      %4064 = vmatpush2.msra.mxu0 0.0
      %4065 = vmatprep.subr.mxu0 0.0
      %4066 = vmatpush2.msra.mxu0 0.0
      %4067 = vmatprep.subr.mxu0 0.0
      %4068 = vmatpush2.msra.mxu0 0.0
      %4069 = vmatprep.subr.mxu0 0.0
      %4070 = vmatpush2.msra.mxu0 0.0
      %4071 = vmatprep.subr.mxu0 0.0
      %4072 = vmatpush2.msra.mxu0 0.0
      %4073 = vmatprep.subr.mxu0 0.0
      %4074 = vmatpush2.msra.mxu0 0.0
      %4075 = vmatprep.subr.mxu0 0.0
      %4076 = vmatpush2.msra.mxu0 0.0
      %4077 = vmatprep.mubr.f32.mxu0 0.0
      %4078 = vmatmul.mubr.f32.gmra.mxu0 %v3116
      %v4079 = vpop.f32.mrf.mxu0
      %v4080 = vadd.f32 0.0, %v4079
      %v4081 = vpop.f32.mrf.mxu0
      %4082 = vmatprep.mubr.f32.mxu0 0.0
      %4083 = vmatmul.mubr.f32.gmra.mxu0 %v3119
      %v4084 = vpop.f32.mrf.mxu0
      %v4085 = vadd.f32 0.0, %v4084
      %v4086 = vpop.f32.mrf.mxu0
      %4087 = vmatprep.mubr.f32.mxu0 0.0
      %4088 = vmatmul.mubr.f32.gmra.mxu0 %v3122
      %v4089 = vpop.f32.mrf.mxu0
      %v4090 = vadd.f32 0.0, %v4089
      %v4091 = vpop.f32.mrf.mxu0
      %4092 = vmatprep.mubr.f32.mxu0 0.0
      %4093 = vmatmul.mubr.f32.gmra.mxu0 %v3125
      %v4094 = vpop.f32.mrf.mxu0
      %v4095 = vadd.f32 0.0, %v4094
      %v4096 = vpop.f32.mrf.mxu0
      %4097 = vmatprep.mubr.f32.mxu0 0.0
      %4098 = vmatmul.mubr.f32.gmra.mxu0 %v3128
      %v4099 = vpop.f32.mrf.mxu0
      %v4100 = vadd.f32 0.0, %v4099
      %v4101 = vpop.f32.mrf.mxu0
      %4102 = vmatprep.mubr.f32.mxu0 0.0
      %4103 = vmatmul.mubr.f32.gmra.mxu0 %v3131
      %v4104 = vpop.f32.mrf.mxu0
      %v4105 = vadd.f32 0.0, %v4104
      %v4106 = vpop.f32.mrf.mxu0
      %4107 = vmatprep.mubr.f32.mxu0 0.0
      %4108 = vmatmul.mubr.f32.gmra.mxu0 %v3134
      %v4109 = vpop.f32.mrf.mxu0
      %v4110 = vadd.f32 0.0, %v4109
      %v4111 = vpop.f32.mrf.mxu0
      %4112 = vmatprep.mubr.f32.mxu0 0.0
      %4113 = vmatmul.mubr.f32.gmra.mxu0 %v3137
      %v4114 = vpop.f32.mrf.mxu0
      %v4115 = vadd.f32 0.0, %v4114
      %v4116 = vpop.f32.mrf.mxu0
      %4117 = vmatprep.mubr.f32.mxu0 0.0
      %4118 = vmatmul.mubr.f32.gmra.mxu0 %v3140
      %v4119 = vpop.f32.mrf.mxu0
      %v4120 = vadd.f32 0.0, %v4119
      %v4121 = vpop.f32.mrf.mxu0
      %4122 = vmatprep.mubr.f32.mxu0 0.0
      %4123 = vmatmul.mubr.f32.gmra.mxu0 %v3143
      %v4124 = vpop.f32.mrf.mxu0
      %v4125 = vadd.f32 0.0, %v4124
      %v4126 = vpop.f32.mrf.mxu0
      %4127 = vmatprep.mubr.f32.mxu0 0.0
      %4128 = vmatmul.mubr.f32.gmra.mxu0 %v3146
      %v4129 = vpop.f32.mrf.mxu0
      %v4130 = vadd.f32 0.0, %v4129
      %v4131 = vpop.f32.mrf.mxu0
      %4132 = vmatprep.mubr.f32.mxu0 0.0
      %4133 = vmatmul.mubr.f32.gmra.mxu0 %v3149
      %v4134 = vpop.f32.mrf.mxu0
      %v4135 = vadd.f32 0.0, %v4134
      %v4136 = vpop.f32.mrf.mxu0
      %4137 = vdwg.mxu0
      %v4138 = vadd.f32 %v498, %v4080
      %v4139 = vadd.f32 %v499, %v4085
      %v4140 = vadd.f32 %v500, %v4090
      %v4141 = vadd.f32 %v501, %v4095
      %v4142 = vadd.f32 %v502, %v4100
      %v4143 = vadd.f32 %v503, %v4105
      %v4144 = vadd.f32 %v504, %v4110
      %v4145 = vadd.f32 %v505, %v4115
      %v4146 = vadd.f32 %v506, %v4120
      %v4147 = vadd.f32 %v507, %v4125
      %v4148 = vadd.f32 %v508, %v4130
      %v4149 = vadd.f32 %v509, %v4135
      %v4150 = vld [vmem:[%s10] sm:$0x1]
      %v4152 = vlaneseq
      %v4153 = vshrl.u32 %v4152, 7
      %v4154 = vsub.s32 0, %v4153
      %v4155 = vrot.slane %v4150, %v4154
      %v4157 = vadd.f32 %v4138, %v4155
      %v4158 = vadd.f32 %v4139, %v4155
      %v4159 = vadd.f32 %v4140, %v4155
      %v4160 = vadd.f32 %v4141, %v4155
      %v4161 = vadd.f32 %v4142, %v4155
      %v4162 = vadd.f32 %v4143, %v4155
      %v4163 = vadd.f32 %v4144, %v4155
      %v4164 = vadd.f32 %v4145, %v4155
      %v4165 = vadd.f32 %v4146, %v4155
      %v4166 = vadd.f32 %v4147, %v4155
      %v4167 = vadd.f32 %v4148, %v4155
      %v4168 = vadd.f32 %v4149, %v4155
      %v4169 = vmax.f32 %v4157, 0.0
      %v4170 = vmax.f32 %v4158, 0.0
      %v4171 = vmax.f32 %v4159, 0.0
      %v4172 = vmax.f32 %v4160, 0.0
      %v4173 = vmax.f32 %v4161, 0.0
      %v4174 = vmax.f32 %v4162, 0.0
      %v4175 = vmax.f32 %v4163, 0.0
      %v4176 = vmax.f32 %v4164, 0.0
      %v4177 = vmax.f32 %v4165, 0.0
      %v4178 = vmax.f32 %v4166, 0.0
      %v4179 = vmax.f32 %v4167, 0.0
      %v4180 = vmax.f32 %v4168, 0.0
      %v4181 = vld [vmem:[%s11] sm:$0xff]
      %v4182 = vld [vmem:[%s11 + $0x8] sm:$0xff]
      %v4183 = vld [vmem:[%s11 + $0x10] sm:$0xff]
      %v4184 = vld [vmem:[%s11 + $0x18] sm:$0xff]
      %v4185 = vld [vmem:[%s11 + $0x20] sm:$0xff]
      %v4186 = vld [vmem:[%s11 + $0x28] sm:$0xff]
      %v4187 = vld [vmem:[%s11 + $0x30] sm:$0xff]
      %v4188 = vld [vmem:[%s11 + $0x38] sm:$0xff]
      %v4189 = vld [vmem:[%s12] sm:$0x1]
      %v4191 = vlaneseq
      %v4192 = vshrl.u32 %v4191, 7
      %v4193 = vsub.s32 0, %v4192
      %v4194 = vrot.slane %v4189, %v4193
      %v4197 = vsel %vm524, %v498, 0
      %v4200 = vsel %vm524, %v499, 0
      %v4203 = vsel %vm524, %v500, 0
      %v4206 = vsel %vm524, %v501, 0
      %v4209 = vsel %vm524, %v502, 0
      %v4212 = vsel %vm524, %v503, 0
      %v4215 = vsel %vm524, %v504, 0
      %v4218 = vsel %vm524, %v505, 0
      %v4221 = vsel %vm524, %v506, 0
      %v4224 = vsel %vm524, %v507, 0
      %v4227 = vsel %vm524, %v508, 0
      %v4230 = vsel %vm524, %v509, 0
      %4232 = vmatprep.subr.mxu0 0.0
      %4233 = vmatpush1.msra.mxu0 0.0
      %4234 = vmatprep.subr.mxu0 0.0
      %4235 = vmatpush1.msra.mxu0 0.0
      %4236 = vmatprep.subr.mxu0 0.0
      %4237 = vmatpush1.msra.mxu0 0.0
      %4238 = vmatprep.subr.mxu0 0.0
      %4239 = vmatpush1.msra.mxu0 0.0
      %4240 = vmatprep.subr.mxu0 0.0
      %4241 = vmatpush1.msra.mxu0 0.0
      %4242 = vmatprep.subr.mxu0 0.0
      %4243 = vmatpush1.msra.mxu0 0.0
      %4244 = vmatprep.subr.mxu0 0.0
      %4245 = vmatpush1.msra.mxu0 0.0
      %4246 = vmatprep.subr.mxu0 0.0
      %4247 = vmatpush1.msra.mxu0 0.0
      %4248 = vmatprep.subr.mxu0 0.0
      %4249 = vmatpush1.msra.mxu0 %v4188
      %4250 = vmatprep.subr.mxu0 0.0
      %4251 = vmatpush1.msra.mxu0 %v4187
      %4252 = vmatprep.subr.mxu0 0.0
      %4253 = vmatpush1.msra.mxu0 %v4186
      %4254 = vmatprep.subr.mxu0 0.0
      %4255 = vmatpush1.msra.mxu0 %v4185
      %4256 = vmatprep.subr.mxu0 0.0
      %4257 = vmatpush1.msra.mxu0 %v4184
      %4258 = vmatprep.subr.mxu0 0.0
      %4259 = vmatpush1.msra.mxu0 %v4183
      %4260 = vmatprep.subr.mxu0 0.0
      %4261 = vmatpush1.msra.mxu0 %v4182
      %4262 = vmatprep.subr.mxu0 0.0
      %4263 = vmatpush1.msra.mxu0 %v4181
      %4264 = vmatprep.subr.mxu0 0.0
      %4265 = vmatpush2.msra.mxu0 0.0
      %4266 = vmatprep.subr.mxu0 0.0
      %4267 = vmatpush2.msra.mxu0 0.0
      %4268 = vmatprep.subr.mxu0 0.0
      %4269 = vmatpush2.msra.mxu0 0.0
      %4270 = vmatprep.subr.mxu0 0.0
      %4271 = vmatpush2.msra.mxu0 0.0
      %4272 = vmatprep.subr.mxu0 0.0
      %4273 = vmatpush2.msra.mxu0 0.0
      %4274 = vmatprep.subr.mxu0 0.0
      %4275 = vmatpush2.msra.mxu0 0.0
      %4276 = vmatprep.subr.mxu0 0.0
      %4277 = vmatpush2.msra.mxu0 0.0
      %4278 = vmatprep.subr.mxu0 0.0
      %4279 = vmatpush2.msra.mxu0 0.0
      %4280 = vmatprep.subr.mxu0 0.0
      %4281 = vmatpush2.msra.mxu0 0.0
      %4282 = vmatprep.subr.mxu0 0.0
      %4283 = vmatpush2.msra.mxu0 0.0
      %4284 = vmatprep.subr.mxu0 0.0
      %4285 = vmatpush2.msra.mxu0 0.0
      %4286 = vmatprep.subr.mxu0 0.0
      %4287 = vmatpush2.msra.mxu0 0.0
      %4288 = vmatprep.subr.mxu0 0.0
      %4289 = vmatpush2.msra.mxu0 0.0
      %4290 = vmatprep.subr.mxu0 0.0
      %4291 = vmatpush2.msra.mxu0 0.0
      %4292 = vmatprep.subr.mxu0 0.0
      %4293 = vmatpush2.msra.mxu0 0.0
      %4294 = vmatprep.subr.mxu0 0.0
      %4295 = vmatpush2.msra.mxu0 0.0
      %4296 = vmatprep.mubr.f32.mxu0 0.0
      %4297 = vmatmul.mubr.f32.gmra.mxu0 %v4197
      %v4298 = vpop.f32.mrf.mxu0
      %v4299 = vadd.f32 %v4194, %v4298
      %v4300 = vpop.f32.mrf.mxu0
      %4301 = vmatprep.mubr.f32.mxu0 0.0
      %4302 = vmatmul.mubr.f32.gmra.mxu0 %v4200
      %v4303 = vpop.f32.mrf.mxu0
      %v4304 = vadd.f32 %v4194, %v4303
      %v4305 = vpop.f32.mrf.mxu0
      %4306 = vmatprep.mubr.f32.mxu0 0.0
      %4307 = vmatmul.mubr.f32.gmra.mxu0 %v4203
      %v4308 = vpop.f32.mrf.mxu0
      %v4309 = vadd.f32 %v4194, %v4308
      %v4310 = vpop.f32.mrf.mxu0
      %4311 = vmatprep.mubr.f32.mxu0 0.0
      %4312 = vmatmul.mubr.f32.gmra.mxu0 %v4206
      %v4313 = vpop.f32.mrf.mxu0
      %v4314 = vadd.f32 %v4194, %v4313
      %v4315 = vpop.f32.mrf.mxu0
      %4316 = vmatprep.mubr.f32.mxu0 0.0
      %4317 = vmatmul.mubr.f32.gmra.mxu0 %v4209
      %v4318 = vpop.f32.mrf.mxu0
      %v4319 = vadd.f32 %v4194, %v4318
      %v4320 = vpop.f32.mrf.mxu0
      %4321 = vmatprep.mubr.f32.mxu0 0.0
      %4322 = vmatmul.mubr.f32.gmra.mxu0 %v4212
      %v4323 = vpop.f32.mrf.mxu0
      %v4324 = vadd.f32 %v4194, %v4323
      %v4325 = vpop.f32.mrf.mxu0
      %4326 = vmatprep.mubr.f32.mxu0 0.0
      %4327 = vmatmul.mubr.f32.gmra.mxu0 %v4215
      %v4328 = vpop.f32.mrf.mxu0
      %v4329 = vadd.f32 %v4194, %v4328
      %v4330 = vpop.f32.mrf.mxu0
      %4331 = vmatprep.mubr.f32.mxu0 0.0
      %4332 = vmatmul.mubr.f32.gmra.mxu0 %v4218
      %v4333 = vpop.f32.mrf.mxu0
      %v4334 = vadd.f32 %v4194, %v4333
      %v4335 = vpop.f32.mrf.mxu0
      %4336 = vmatprep.mubr.f32.mxu0 0.0
      %4337 = vmatmul.mubr.f32.gmra.mxu0 %v4221
      %v4338 = vpop.f32.mrf.mxu0
      %v4339 = vadd.f32 %v4194, %v4338
      %v4340 = vpop.f32.mrf.mxu0
      %4341 = vmatprep.mubr.f32.mxu0 0.0
      %4342 = vmatmul.mubr.f32.gmra.mxu0 %v4224
      %v4343 = vpop.f32.mrf.mxu0
      %v4344 = vadd.f32 %v4194, %v4343
      %v4345 = vpop.f32.mrf.mxu0
      %4346 = vmatprep.mubr.f32.mxu0 0.0
      %4347 = vmatmul.mubr.f32.gmra.mxu0 %v4227
      %v4348 = vpop.f32.mrf.mxu0
      %v4349 = vadd.f32 %v4194, %v4348
      %v4350 = vpop.f32.mrf.mxu0
      %4351 = vmatprep.mubr.f32.mxu0 0.0
      %4352 = vmatmul.mubr.f32.gmra.mxu0 %v4230
      %v4353 = vpop.f32.mrf.mxu0
      %v4354 = vadd.f32 %v4194, %v4353
      %v4355 = vpop.f32.mrf.mxu0
      %4356 = vdwg.mxu0
      %4369 = vrot.lane.b32.xlu0 %v4169, 64
      %v4370 = vpop.permute.xlu0 %4369
      %4371 = vrot.lane.b32.xlu0 %v4170, 64
      %v4372 = vpop.permute.xlu0 %4371
      %4373 = vrot.lane.b32.xlu0 %v4171, 64
      %v4374 = vpop.permute.xlu0 %4373
      %4375 = vrot.lane.b32.xlu0 %v4172, 64
      %v4376 = vpop.permute.xlu0 %4375
      %4377 = vrot.lane.b32.xlu0 %v4173, 64
      %v4378 = vpop.permute.xlu0 %4377
      %4379 = vrot.lane.b32.xlu0 %v4174, 64
      %v4380 = vpop.permute.xlu0 %4379
      %4381 = vrot.lane.b32.xlu0 %v4175, 64
      %v4382 = vpop.permute.xlu0 %4381
      %4383 = vrot.lane.b32.xlu0 %v4176, 64
      %v4384 = vpop.permute.xlu0 %4383
      %4385 = vrot.lane.b32.xlu0 %v4177, 64
      %v4386 = vpop.permute.xlu0 %4385
      %4387 = vrot.lane.b32.xlu0 %v4178, 64
      %v4388 = vpop.permute.xlu0 %4387
      %4389 = vrot.lane.b32.xlu0 %v4179, 64
      %v4390 = vpop.permute.xlu0 %4389
      %4391 = vrot.lane.b32.xlu0 %v4180, 64
      %v4392 = vpop.permute.xlu0 %4391
      %4417 = vrot.lane.b32.xlu0 %v4299, 64
      %v4418 = vpop.permute.xlu0 %4417
      %4419 = vrot.lane.b32.xlu0 %v4304, 64
      %v4420 = vpop.permute.xlu0 %4419
      %4421 = vrot.lane.b32.xlu0 %v4309, 64
      %v4422 = vpop.permute.xlu0 %4421
      %4423 = vrot.lane.b32.xlu0 %v4314, 64
      %v4424 = vpop.permute.xlu0 %4423
      %4425 = vrot.lane.b32.xlu0 %v4319, 64
      %v4426 = vpop.permute.xlu0 %4425
      %4427 = vrot.lane.b32.xlu0 %v4324, 64
      %v4428 = vpop.permute.xlu0 %4427
      %4429 = vrot.lane.b32.xlu0 %v4329, 64
      %v4430 = vpop.permute.xlu0 %4429
      %4431 = vrot.lane.b32.xlu0 %v4334, 64
      %v4432 = vpop.permute.xlu0 %4431
      %4433 = vrot.lane.b32.xlu0 %v4339, 64
      %v4434 = vpop.permute.xlu0 %4433
      %4435 = vrot.lane.b32.xlu0 %v4344, 64
      %v4436 = vpop.permute.xlu0 %4435
      %4437 = vrot.lane.b32.xlu0 %v4349, 64
      %v4438 = vpop.permute.xlu0 %4437
      %4439 = vrot.lane.b32.xlu0 %v4354, 64
      %v4440 = vpop.permute.xlu0 %4439
      %v4453 = vsel %vm524, %v3961, %v4370
      %v4454 = vsel %vm524, %v3962, %v4372
      %v4455 = vsel %vm524, %v3963, %v4374
      %v4456 = vsel %vm524, %v3964, %v4376
      %v4457 = vsel %vm524, %v3965, %v4378
      %v4458 = vsel %vm524, %v3966, %v4380
      %v4459 = vsel %vm524, %v3967, %v4382
      %v4460 = vsel %vm524, %v3968, %v4384
      %v4461 = vsel %vm524, %v3969, %v4386
      %v4462 = vsel %vm524, %v3970, %v4388
      %v4463 = vsel %vm524, %v3971, %v4390
      %v4464 = vsel %vm524, %v3972, %v4392
      %v4465 = vsel %vm524, %v3985, %v4418
      %v4466 = vsel %vm524, %v3986, %v4420
      %v4467 = vsel %vm524, %v3987, %v4422
      %v4468 = vsel %vm524, %v3988, %v4424
      %v4469 = vsel %vm524, %v3989, %v4426
      %v4470 = vsel %vm524, %v3990, %v4428
      %v4471 = vsel %vm524, %v3991, %v4430
      %v4472 = vsel %vm524, %v3992, %v4432
      %v4473 = vsel %vm524, %v3993, %v4434
      %v4474 = vsel %vm524, %v3994, %v4436
      %v4475 = vsel %vm524, %v3995, %v4438
      %v4476 = vsel %vm524, %v3996, %v4440
      %v4477 = vld [vmem:[%s9] sm:$0xff]
      %v4478 = vld [vmem:[%s9 + $0x8] sm:$0xff]
      %v4479 = vld [vmem:[%s9 + $0x10] sm:$0xff]
      %v4480 = vld [vmem:[%s9 + $0x18] sm:$0xff]
      %v4481 = vld [vmem:[%s9 + $0x20] sm:$0xff]
      %v4482 = vld [vmem:[%s9 + $0x28] sm:$0xff]
      %v4483 = vld [vmem:[%s9 + $0x30] sm:$0xff]
      %v4484 = vld [vmem:[%s9 + $0x38] sm:$0xff]
      %v4485 = vld [vmem:[%s9 + $0x40] sm:$0xff]
      %v4486 = vld [vmem:[%s9 + $0x48] sm:$0xff]
      %v4487 = vld [vmem:[%s9 + $0x50] sm:$0xff]
      %v4488 = vld [vmem:[%s9 + $0x58] sm:$0xff]
      %v4489 = vld [vmem:[%s9 + $0x60] sm:$0xff]
      %v4490 = vld [vmem:[%s9 + $0x68] sm:$0xff]
      %v4491 = vld [vmem:[%s9 + $0x70] sm:$0xff]
      %v4492 = vld [vmem:[%s9 + $0x78] sm:$0xff]
      %v4493 = vld [vmem:[%s9 + $0x80] sm:$0xff]
      %v4494 = vld [vmem:[%s9 + $0x88] sm:$0xff]
      %v4495 = vld [vmem:[%s9 + $0x90] sm:$0xff]
      %v4496 = vld [vmem:[%s9 + $0x98] sm:$0xff]
      %v4497 = vld [vmem:[%s9 + $0xa0] sm:$0xff]
      %v4498 = vld [vmem:[%s9 + $0xa8] sm:$0xff]
      %v4499 = vld [vmem:[%s9 + $0xb0] sm:$0xff]
      %v4500 = vld [vmem:[%s9 + $0xb8] sm:$0xff]
      %v4501 = vld [vmem:[%s9 + $0xc0] sm:$0xff]
      %v4502 = vld [vmem:[%s9 + $0xc8] sm:$0xff]
      %v4503 = vld [vmem:[%s9 + $0xd0] sm:$0xff]
      %v4504 = vld [vmem:[%s9 + $0xd8] sm:$0xff]
      %v4505 = vld [vmem:[%s9 + $0xe0] sm:$0xff]
      %v4506 = vld [vmem:[%s9 + $0xe8] sm:$0xff]
      %v4507 = vld [vmem:[%s9 + $0xf0] sm:$0xff]
      %v4508 = vld [vmem:[%s9 + $0xf8] sm:$0xff]
      %4509 = vmatprep.subr.mxu0 0.0
      %4510 = vmatpush1.msra.mxu0 %v4492
      %4511 = vmatprep.subr.mxu0 0.0
      %4512 = vmatpush1.msra.mxu0 %v4491
      %4513 = vmatprep.subr.mxu0 0.0
      %4514 = vmatpush1.msra.mxu0 %v4490
      %4515 = vmatprep.subr.mxu0 0.0
      %4516 = vmatpush1.msra.mxu0 %v4489
      %4517 = vmatprep.subr.mxu0 0.0
      %4518 = vmatpush1.msra.mxu0 %v4488
      %4519 = vmatprep.subr.mxu0 0.0
      %4520 = vmatpush1.msra.mxu0 %v4487
      %4521 = vmatprep.subr.mxu0 0.0
      %4522 = vmatpush1.msra.mxu0 %v4486
      %4523 = vmatprep.subr.mxu0 0.0
      %4524 = vmatpush1.msra.mxu0 %v4485
      %4525 = vmatprep.subr.mxu0 0.0
      %4526 = vmatpush1.msra.mxu0 %v4484
      %4527 = vmatprep.subr.mxu0 0.0
      %4528 = vmatpush1.msra.mxu0 %v4483
      %4529 = vmatprep.subr.mxu0 0.0
      %4530 = vmatpush1.msra.mxu0 %v4482
      %4531 = vmatprep.subr.mxu0 0.0
      %4532 = vmatpush1.msra.mxu0 %v4481
      %4533 = vmatprep.subr.mxu0 0.0
      %4534 = vmatpush1.msra.mxu0 %v4480
      %4535 = vmatprep.subr.mxu0 0.0
      %4536 = vmatpush1.msra.mxu0 %v4479
      %4537 = vmatprep.subr.mxu0 0.0
      %4538 = vmatpush1.msra.mxu0 %v4478
      %4539 = vmatprep.subr.mxu0 0.0
      %4540 = vmatpush1.msra.mxu0 %v4477
      %4541 = vmatprep.subr.mxu0 0.0
      %4542 = vmatpush2.msra.mxu0 %v4508
      %4543 = vmatprep.subr.mxu0 0.0
      %4544 = vmatpush2.msra.mxu0 %v4507
      %4545 = vmatprep.subr.mxu0 0.0
      %4546 = vmatpush2.msra.mxu0 %v4506
      %4547 = vmatprep.subr.mxu0 0.0
      %4548 = vmatpush2.msra.mxu0 %v4505
      %4549 = vmatprep.subr.mxu0 0.0
      %4550 = vmatpush2.msra.mxu0 %v4504
      %4551 = vmatprep.subr.mxu0 0.0
      %4552 = vmatpush2.msra.mxu0 %v4503
      %4553 = vmatprep.subr.mxu0 0.0
      %4554 = vmatpush2.msra.mxu0 %v4502
      %4555 = vmatprep.subr.mxu0 0.0
      %4556 = vmatpush2.msra.mxu0 %v4501
      %4557 = vmatprep.subr.mxu0 0.0
      %4558 = vmatpush2.msra.mxu0 %v4500
      %4559 = vmatprep.subr.mxu0 0.0
      %4560 = vmatpush2.msra.mxu0 %v4499
      %4561 = vmatprep.subr.mxu0 0.0
      %4562 = vmatpush2.msra.mxu0 %v4498
      %4563 = vmatprep.subr.mxu0 0.0
      %4564 = vmatpush2.msra.mxu0 %v4497
      %4565 = vmatprep.subr.mxu0 0.0
      %4566 = vmatpush2.msra.mxu0 %v4496
      %4567 = vmatprep.subr.mxu0 0.0
      %4568 = vmatpush2.msra.mxu0 %v4495
      %4569 = vmatprep.subr.mxu0 0.0
      %4570 = vmatpush2.msra.mxu0 %v4494
      %4571 = vmatprep.subr.mxu0 0.0
      %4572 = vmatpush2.msra.mxu0 %v4493
      %4573 = vmatprep.mubr.f32.mxu0 %v4465
      %4574 = vmatmul.mubr.f32.gmra.mxu0 %v4453
      %v4575 = vpop.f32.mrf.mxu0
      %v4576 = vadd.f32 %v4155, %v4575
      %v4577 = vpop.f32.mrf.mxu0
      %4578 = vmatprep.mubr.f32.mxu0 %v4466
      %4579 = vmatmul.mubr.f32.gmra.mxu0 %v4454
      %v4580 = vpop.f32.mrf.mxu0
      %v4581 = vadd.f32 %v4155, %v4580
      %v4582 = vpop.f32.mrf.mxu0
      %4583 = vmatprep.mubr.f32.mxu0 %v4467
      %4584 = vmatmul.mubr.f32.gmra.mxu0 %v4455
      %v4585 = vpop.f32.mrf.mxu0
      %v4586 = vadd.f32 %v4155, %v4585
      %v4587 = vpop.f32.mrf.mxu0
      %4588 = vmatprep.mubr.f32.mxu0 %v4468
      %4589 = vmatmul.mubr.f32.gmra.mxu0 %v4456
      %v4590 = vpop.f32.mrf.mxu0
      %v4591 = vadd.f32 %v4155, %v4590
      %v4592 = vpop.f32.mrf.mxu0
      %4593 = vmatprep.mubr.f32.mxu0 %v4469
      %4594 = vmatmul.mubr.f32.gmra.mxu0 %v4457
      %v4595 = vpop.f32.mrf.mxu0
      %v4596 = vadd.f32 %v4155, %v4595
      %v4597 = vpop.f32.mrf.mxu0
      %4598 = vmatprep.mubr.f32.mxu0 %v4470
      %4599 = vmatmul.mubr.f32.gmra.mxu0 %v4458
      %v4600 = vpop.f32.mrf.mxu0
      %v4601 = vadd.f32 %v4155, %v4600
      %v4602 = vpop.f32.mrf.mxu0
      %4603 = vmatprep.mubr.f32.mxu0 %v4471
      %4604 = vmatmul.mubr.f32.gmra.mxu0 %v4459
      %v4605 = vpop.f32.mrf.mxu0
      %v4606 = vadd.f32 %v4155, %v4605
      %v4607 = vpop.f32.mrf.mxu0
      %4608 = vmatprep.mubr.f32.mxu0 %v4472
      %4609 = vmatmul.mubr.f32.gmra.mxu0 %v4460
      %v4610 = vpop.f32.mrf.mxu0
      %v4611 = vadd.f32 %v4155, %v4610
      %v4612 = vpop.f32.mrf.mxu0
      %4613 = vmatprep.mubr.f32.mxu0 %v4473
      %4614 = vmatmul.mubr.f32.gmra.mxu0 %v4461
      %v4615 = vpop.f32.mrf.mxu0
      %v4616 = vadd.f32 %v4155, %v4615
      %v4617 = vpop.f32.mrf.mxu0
      %4618 = vmatprep.mubr.f32.mxu0 %v4474
      %4619 = vmatmul.mubr.f32.gmra.mxu0 %v4462
      %v4620 = vpop.f32.mrf.mxu0
      %v4621 = vadd.f32 %v4155, %v4620
      %v4622 = vpop.f32.mrf.mxu0
      %4623 = vmatprep.mubr.f32.mxu0 %v4475
      %4624 = vmatmul.mubr.f32.gmra.mxu0 %v4463
      %v4625 = vpop.f32.mrf.mxu0
      %v4626 = vadd.f32 %v4155, %v4625
      %v4627 = vpop.f32.mrf.mxu0
      %4628 = vmatprep.mubr.f32.mxu0 %v4476
      %4629 = vmatmul.mubr.f32.gmra.mxu0 %v4464
      %v4630 = vpop.f32.mrf.mxu0
      %v4631 = vadd.f32 %v4155, %v4630
      %v4632 = vpop.f32.mrf.mxu0
      %4633 = vdwg.mxu0
      %v4634 = vadd.f32 %v498, %v4576
      %v4635 = vadd.f32 %v499, %v4581
      %v4636 = vadd.f32 %v500, %v4586
      %v4637 = vadd.f32 %v501, %v4591
      %v4638 = vadd.f32 %v502, %v4596
      %v4639 = vadd.f32 %v503, %v4601
      %v4640 = vadd.f32 %v504, %v4606
      %v4641 = vadd.f32 %v505, %v4611
      %v4642 = vadd.f32 %v506, %v4616
      %v4643 = vadd.f32 %v507, %v4621
      %v4644 = vadd.f32 %v508, %v4626
      %v4645 = vadd.f32 %v509, %v4631
      %v4646 = vmax.f32 %v4634, 0.0
      %v4647 = vmax.f32 %v4635, 0.0
      %v4648 = vmax.f32 %v4636, 0.0
      %v4649 = vmax.f32 %v4637, 0.0
      %v4650 = vmax.f32 %v4638, 0.0
      %v4651 = vmax.f32 %v4639, 0.0
      %v4652 = vmax.f32 %v4640, 0.0
      %v4653 = vmax.f32 %v4641, 0.0
      %v4654 = vmax.f32 %v4642, 0.0
      %v4655 = vmax.f32 %v4643, 0.0
      %v4656 = vmax.f32 %v4644, 0.0
      %v4657 = vmax.f32 %v4645, 0.0
      %v4658 = vld [vmem:[%s13] sm:$0xff]
      %v4659 = vld [vmem:[%s13 + $0x8] sm:$0xff]
      %v4660 = vld [vmem:[%s13 + $0x10] sm:$0xff]
      %v4661 = vld [vmem:[%s13 + $0x18] sm:$0xff]
      %v4662 = vld [vmem:[%s13 + $0x20] sm:$0xff]
      %v4663 = vld [vmem:[%s13 + $0x28] sm:$0xff]
      %v4664 = vld [vmem:[%s13 + $0x30] sm:$0xff]
      %v4665 = vld [vmem:[%s13 + $0x38] sm:$0xff]
      %v4666 = vld [vmem:[%s14] sm:$0x1]
      %v4668 = vlaneseq
      %v4669 = vshrl.u32 %v4668, 7
      %v4670 = vsub.s32 0, %v4669
      %v4671 = vrot.slane %v4666, %v4670
      %v4674 = vsel %vm524, %v4646, 0
      %v4677 = vsel %vm524, %v4647, 0
      %v4680 = vsel %vm524, %v4648, 0
      %v4683 = vsel %vm524, %v4649, 0
      %v4686 = vsel %vm524, %v4650, 0
      %v4689 = vsel %vm524, %v4651, 0
      %v4692 = vsel %vm524, %v4652, 0
      %v4695 = vsel %vm524, %v4653, 0
      %v4698 = vsel %vm524, %v4654, 0
      %v4701 = vsel %vm524, %v4655, 0
      %v4704 = vsel %vm524, %v4656, 0
      %v4707 = vsel %vm524, %v4657, 0
      %4709 = vmatprep.subr.mxu0 0.0
      %4710 = vmatpush1.msra.mxu0 0.0
      %4711 = vmatprep.subr.mxu0 0.0
      %4712 = vmatpush1.msra.mxu0 0.0
      %4713 = vmatprep.subr.mxu0 0.0
      %4714 = vmatpush1.msra.mxu0 0.0
      %4715 = vmatprep.subr.mxu0 0.0
      %4716 = vmatpush1.msra.mxu0 0.0
      %4717 = vmatprep.subr.mxu0 0.0
      %4718 = vmatpush1.msra.mxu0 0.0
      %4719 = vmatprep.subr.mxu0 0.0
      %4720 = vmatpush1.msra.mxu0 0.0
      %4721 = vmatprep.subr.mxu0 0.0
      %4722 = vmatpush1.msra.mxu0 0.0
      %4723 = vmatprep.subr.mxu0 0.0
      %4724 = vmatpush1.msra.mxu0 0.0
      %4725 = vmatprep.subr.mxu0 0.0
      %4726 = vmatpush1.msra.mxu0 %v4665
      %4727 = vmatprep.subr.mxu0 0.0
      %4728 = vmatpush1.msra.mxu0 %v4664
      %4729 = vmatprep.subr.mxu0 0.0
      %4730 = vmatpush1.msra.mxu0 %v4663
      %4731 = vmatprep.subr.mxu0 0.0
      %4732 = vmatpush1.msra.mxu0 %v4662
      %4733 = vmatprep.subr.mxu0 0.0
      %4734 = vmatpush1.msra.mxu0 %v4661
      %4735 = vmatprep.subr.mxu0 0.0
      %4736 = vmatpush1.msra.mxu0 %v4660
      %4737 = vmatprep.subr.mxu0 0.0
      %4738 = vmatpush1.msra.mxu0 %v4659
      %4739 = vmatprep.subr.mxu0 0.0
      %4740 = vmatpush1.msra.mxu0 %v4658
      %4741 = vmatprep.subr.mxu0 0.0
      %4742 = vmatpush2.msra.mxu0 0.0
      %4743 = vmatprep.subr.mxu0 0.0
      %4744 = vmatpush2.msra.mxu0 0.0
      %4745 = vmatprep.subr.mxu0 0.0
      %4746 = vmatpush2.msra.mxu0 0.0
      %4747 = vmatprep.subr.mxu0 0.0
      %4748 = vmatpush2.msra.mxu0 0.0
      %4749 = vmatprep.subr.mxu0 0.0
      %4750 = vmatpush2.msra.mxu0 0.0
      %4751 = vmatprep.subr.mxu0 0.0
      %4752 = vmatpush2.msra.mxu0 0.0
      %4753 = vmatprep.subr.mxu0 0.0
      %4754 = vmatpush2.msra.mxu0 0.0
      %4755 = vmatprep.subr.mxu0 0.0
      %4756 = vmatpush2.msra.mxu0 0.0
      %4757 = vmatprep.subr.mxu0 0.0
      %4758 = vmatpush2.msra.mxu0 0.0
      %4759 = vmatprep.subr.mxu0 0.0
      %4760 = vmatpush2.msra.mxu0 0.0
      %4761 = vmatprep.subr.mxu0 0.0
      %4762 = vmatpush2.msra.mxu0 0.0
      %4763 = vmatprep.subr.mxu0 0.0
      %4764 = vmatpush2.msra.mxu0 0.0
      %4765 = vmatprep.subr.mxu0 0.0
      %4766 = vmatpush2.msra.mxu0 0.0
      %4767 = vmatprep.subr.mxu0 0.0
      %4768 = vmatpush2.msra.mxu0 0.0
      %4769 = vmatprep.subr.mxu0 0.0
      %4770 = vmatpush2.msra.mxu0 0.0
      %4771 = vmatprep.subr.mxu0 0.0
      %4772 = vmatpush2.msra.mxu0 0.0
      %4773 = vmatprep.mubr.f32.mxu0 0.0
      %4774 = vmatmul.mubr.f32.gmra.mxu0 %v4674
      %v4775 = vpop.f32.mrf.mxu0
      %v4776 = vadd.f32 %v4671, %v4775
      %v4777 = vpop.f32.mrf.mxu0
      %4778 = vmatprep.mubr.f32.mxu0 0.0
      %4779 = vmatmul.mubr.f32.gmra.mxu0 %v4677
      %v4780 = vpop.f32.mrf.mxu0
      %v4781 = vadd.f32 %v4671, %v4780
      %v4782 = vpop.f32.mrf.mxu0
      %4783 = vmatprep.mubr.f32.mxu0 0.0
      %4784 = vmatmul.mubr.f32.gmra.mxu0 %v4680
      %v4785 = vpop.f32.mrf.mxu0
      %v4786 = vadd.f32 %v4671, %v4785
      %v4787 = vpop.f32.mrf.mxu0
      %4788 = vmatprep.mubr.f32.mxu0 0.0
      %4789 = vmatmul.mubr.f32.gmra.mxu0 %v4683
      %v4790 = vpop.f32.mrf.mxu0
      %v4791 = vadd.f32 %v4671, %v4790
      %v4792 = vpop.f32.mrf.mxu0
      %4793 = vmatprep.mubr.f32.mxu0 0.0
      %4794 = vmatmul.mubr.f32.gmra.mxu0 %v4686
      %v4795 = vpop.f32.mrf.mxu0
      %v4796 = vadd.f32 %v4671, %v4795
      %v4797 = vpop.f32.mrf.mxu0
      %4798 = vmatprep.mubr.f32.mxu0 0.0
      %4799 = vmatmul.mubr.f32.gmra.mxu0 %v4689
      %v4800 = vpop.f32.mrf.mxu0
      %v4801 = vadd.f32 %v4671, %v4800
      %v4802 = vpop.f32.mrf.mxu0
      %4803 = vmatprep.mubr.f32.mxu0 0.0
      %4804 = vmatmul.mubr.f32.gmra.mxu0 %v4692
      %v4805 = vpop.f32.mrf.mxu0
      %v4806 = vadd.f32 %v4671, %v4805
      %v4807 = vpop.f32.mrf.mxu0
      %4808 = vmatprep.mubr.f32.mxu0 0.0
      %4809 = vmatmul.mubr.f32.gmra.mxu0 %v4695
      %v4810 = vpop.f32.mrf.mxu0
      %v4811 = vadd.f32 %v4671, %v4810
      %v4812 = vpop.f32.mrf.mxu0
      %4813 = vmatprep.mubr.f32.mxu0 0.0
      %4814 = vmatmul.mubr.f32.gmra.mxu0 %v4698
      %v4815 = vpop.f32.mrf.mxu0
      %v4816 = vadd.f32 %v4671, %v4815
      %v4817 = vpop.f32.mrf.mxu0
      %4818 = vmatprep.mubr.f32.mxu0 0.0
      %4819 = vmatmul.mubr.f32.gmra.mxu0 %v4701
      %v4820 = vpop.f32.mrf.mxu0
      %v4821 = vadd.f32 %v4671, %v4820
      %v4822 = vpop.f32.mrf.mxu0
      %4823 = vmatprep.mubr.f32.mxu0 0.0
      %4824 = vmatmul.mubr.f32.gmra.mxu0 %v4704
      %v4825 = vpop.f32.mrf.mxu0
      %v4826 = vadd.f32 %v4671, %v4825
      %v4827 = vpop.f32.mrf.mxu0
      %4828 = vmatprep.mubr.f32.mxu0 0.0
      %4829 = vmatmul.mubr.f32.gmra.mxu0 %v4707
      %v4830 = vpop.f32.mrf.mxu0
      %v4831 = vadd.f32 %v4671, %v4830
      %v4832 = vpop.f32.mrf.mxu0
      %4833 = vdwg.mxu0
      %4834 = vst [vmem:[%s496] sm:$0xff] %v4776
      %4835 = vst [vmem:[%s496 + $0x8] sm:$0xff] %v4781
      %4836 = vst [vmem:[%s496 + $0x10] sm:$0xff] %v4786
      %4837 = vst [vmem:[%s496 + $0x18] sm:$0xff] %v4791
      %4838 = vst [vmem:[%s496 + $0x20] sm:$0xff] %v4796
      %4839 = vst [vmem:[%s496 + $0x28] sm:$0xff] %v4801
      %4840 = vst [vmem:[%s496 + $0x30] sm:$0xff] %v4806
      %4841 = vst [vmem:[%s496 + $0x38] sm:$0xff] %v4811
      %4842 = vst [vmem:[%s496 + $0x40] sm:$0xff] %v4816
      %4843 = vst [vmem:[%s496 + $0x48] sm:$0xff] %v4821
      %4844 = vst [vmem:[%s496 + $0x50] sm:$0xff] %v4826
      %4845 = vst [vmem:[%s496 + $0x58] sm:$0xff] %v4831
      %s4846 = smul.u32 12, %s26
      %p4847 = scmp.lt.s32.totalorder %s4846, 23
      %s4848 = scalar_select %p4847, %s4846, 23
      %s4849 = smul.addr %s4848, 8
      %s4850 = scalar_lea.vmem %s15, %s4849
      // Predicated region
      $region81: #{mdfc4_forward.1} parent=79 // pred_check
        %p4851 = pneg %p364
      $region82: #{mdfc4_forward.1} parent=79 // pred_check_branch
        %4853 = sbr.rel (%p4851) target = $region84
      $region83: #{mdfc4_forward.1} parent=79 // pred_region
        %s4854 = smul.u32 12, %s26
      $region84: #{mdfc4_forward.1} parent=79 // pred_fallthru
        _
    $region80: #{mdfc4_forward.1} parent=5 // pred_fallthru
      _
    %p4855 = scmp.le.s32.totalorder 2, %s21
    // Predicated region
    $region85: #{mdfc4_forward.1} parent=5 // pred_check
      %p4856 = pneg %p4855
    $region86: #{mdfc4_forward.1} parent=5 // pred_check_branch
      %4858 = sbr.rel (%p4856) target = $region88
    $region87: #{mdfc4_forward.1} parent=5 // pred_region
      %s4859 = ssub.s32 %s21, 2
      // Predicated region
      $region89: #{mdfc4_forward.1} parent=87 // pred_check
        %p4860 = pneg %p370
      $region90: #{mdfc4_forward.1} parent=87 // pred_check_branch
        %4862 = sbr.rel (%p4860) target = $region92
      $region91: #{mdfc4_forward.1} parent=87 // pred_region
        %s4863 = smul.u32 12, %s27
        %p4864 = scmp.lt.s32.totalorder %s4863, 23
        %s4865 = scalar_select %p4864, %s4863, 23
        %s4866 = smul.addr %s4865, 8
        %s4867 = scalar_lea.vmem %s15, %s4866
      $region92: #{mdfc4_forward.1} parent=87 // pred_fallthru
        _
    $region88: #{mdfc4_forward.1} parent=5 // pred_fallthru
      _
  $region6: #{mdfc4_forward.1} parent=0 // loop_footer
    %s25 = sadd.s32 1, %s21
  $region7: #{mdfc4_forward.1} parent=0 // loop_footer_branch
    %20 = sbr.rel target = $region3
  $region8: #{mdfc4_forward.1} parent=0 // loop_exit
    _

</llo_original>
